<compile_context>
chip_gen: v6e
topology: v6e:2x2x1
jax: 0.10.0
libtpu: 0.0.40
codegen_flags: <defaults>
</compile_context>

<pallas_src>
import jax
import jax.numpy as jnp
from jax import lax
from jax.experimental import pallas as pl
from jax.experimental.pallas import tpu as pltpu

HIDDEN = 128
OUT = 2
OUT_PAD8 = 8   # layer-5 output rows padded to one sublane group; real outputs are rows [0, OUT)


def _sigmoid(h):
    # sigmoid(x) == 0.5 * tanh(0.5 * x) + 0.5  -> one EUP transcendental per element
    return 0.5 * jnp.tanh(0.5 * h) + 0.5


def pinn_mlp_kernel(x_ref, w1, b1, w2, b2, w3, b3, w4, b4, w5t, b5t, o_ref):
    # Layer 1: K=1 contraction == outer product -> pure VPU broadcast multiply.
    h = _sigmoid(x_ref[...] * w1[...] + b1[...])                 # (tm,1)*(1,128) -> (tm,128)
    # Layers 2-4: 128x128 matmuls on the MXU with f32 accumulation.
    # TODO(synk): optional bf16 weights/activations (2x MXU rate on v6e/v7x) would break
    # the 2e-5 f32 tolerance, so the kernel stays f32.
    h = _sigmoid(jnp.dot(h, w2[...], preferred_element_type=jnp.float32) + b2[...])
    h = _sigmoid(jnp.dot(h, w3[...], preferred_element_type=jnp.float32) + b3[...])
    h = _sigmoid(jnp.dot(h, w4[...], preferred_element_type=jnp.float32) + b4[...])
    # Layer 5, transposed: contract the 128 axis of w5t (8,128) against the 128 axis of
    # h (tm,128) -> (8, tm).  Batch lands on lanes (tm multiple of 128) so the store is a
    # dense unmasked vst, and writeback is 8*tm*4 bytes per tile instead of tm*128*4.
    y = lax.dot_general(w5t[...], h, (((1,), (1,)), ((), ())),
                        preferred_element_type=jnp.float32)
    o_ref[...] = (y + b5t[...]).astype(o_ref.dtype)


def prepare_params(params):
    """One-time parameter prep (hoisted out of the per-call wrapper): layer-5 weights are
    transposed to (out, in) layout and zero-padded to 8 output rows."""
    (w1, b1), (w2, b2), (w3, b3), (w4, b4), (w5, b5) = params
    w5t = jnp.zeros((OUT_PAD8, HIDDEN), jnp.float32).at[:OUT, :].set(w5.T)
    b5t = jnp.zeros((OUT_PAD8, 1), jnp.float32).at[:OUT, 0].set(jnp.reshape(b5, (-1,)))
    return (w1, b1, w2, b2, w3, b3, w4, b4, w5t, b5t)


def pinn_forward(x, prepped, *, tm=512):
    """Pallas forward pass of the PINN MLP.  x: (N, 1) float32 -> (N, 2) float32.

    For large collocation batches, sweep tm in {512, 1024, 2048}: fewer grid steps
    amortize the ~0.35us/step pipeline overhead.  Note the (tm, 1) x tile is lane-padded
    to (tm, 128) in VMEM (tm*128*4 bytes per buffer) -- fine up to tm=2048; don't scale
    tm assuming the x buffer is only tm*4 bytes.
    """
    (w1, b1, w2, b2, w3, b3, w4, b4, w5t, b5t) = prepped
    N = x.shape[0]

    # Keep >= 2 grid steps when N allows, so the "parallel" axis shards across both
    # TensorCores on v7x.  tm stays a multiple of 128 so the (8, tm) output block is
    # lane-dense, and a multiple of 8 for the (tm, 1) x block.
    tm_eff = min(tm, max(128, 128 * pl.cdiv(pl.cdiv(N, 2), 128)))
    n_blocks = pl.cdiv(N, tm_eff)
    n_pad = n_blocks * tm_eff
    x_pad = jnp.pad(x, ((0, n_pad - N), (0, 0))) if n_pad != N else x

    # Constant-index-map BlockSpecs: weights/biases stay VMEM-resident across grid steps.
    # Buffered(1): these blocks never change, so skip double-buffering them.
    resident = lambda shape: pl.BlockSpec(shape, lambda i: (0, 0),
                                          pipeline_mode=pl.Buffered(1))

    out = pl.pallas_call(
        pinn_mlp_kernel,
        out_shape=jax.ShapeDtypeStruct((OUT_PAD8, n_pad), jnp.float32),
        grid_spec=pltpu.PrefetchScalarGridSpec(
            num_scalar_prefetch=0,
            grid=(n_blocks,),
            in_specs=[
                pl.BlockSpec((tm_eff, 1), lambda i: (i, 0)),            # x tile
                resident((1, HIDDEN)), resident((1, HIDDEN)),            # W1, b1
                resident((HIDDEN, HIDDEN)), resident((1, HIDDEN)),       # W2, b2
                resident((HIDDEN, HIDDEN)), resident((1, HIDDEN)),       # W3, b3
                resident((HIDDEN, HIDDEN)), resident((1, HIDDEN)),       # W4, b4
                resident((OUT_PAD8, HIDDEN)), resident((OUT_PAD8, 1)),   # W5^T (pad), b5 (pad)
            ],
            out_specs=pl.BlockSpec((OUT_PAD8, tm_eff), lambda i: (0, i)),
        ),
        compiler_params=pltpu.CompilerParams(
            dimension_semantics=("parallel",),
            vmem_limit_bytes=16 << 20,   # tiny working set; headroom on v7x's 64 MiB VMEM
        ),
    )(x_pad, w1, b1, w2, b2, w3, b3, w4, b4, w5t, b5t)

    # (8, n_pad) transposed/padded output -> (N, 2)
    return out[:OUT, :N].T


def init_params(key):
    """Deterministic synthetic init mirroring the nn.Linear shapes of PINN.model."""
    dims = [(1, HIDDEN), (HIDDEN, HIDDEN), (HIDDEN, HIDDEN), (HIDDEN, HIDDEN), (HIDDEN, OUT)]
    params = []
    for (fan_in, fan_out) in dims:
        key, kw, kb = jax.random.split(key, 3)
        bound = 1.0 / jnp.sqrt(fan_in)
        w = jax.random.uniform(kw, (fan_in, fan_out), jnp.float32, -bound, bound)
        b = jax.random.uniform(kb, (1, fan_out), jnp.float32, -bound, bound)
        params.append((w, b))
    return params


def reference_forward(x, params):
    h = x
    for i, (w, b) in enumerate(params):
        h = h @ w + b
        if i < len(params) - 1:
            h = jax.nn.sigmoid(h)
    return h


if __name__ == "__main__":
    key = jax.random.PRNGKey(0)
    kx, kp = jax.random.split(key)

    # Ragged batch of scalar time inputs (exercises pad/slice and the >=2-step grid path).
    N = 1000
    x = jax.random.uniform(kx, (N, 1), jnp.float32)
    params = init_params(kp)
    prepped = prepare_params(params)   # one-time layer-5 pad/transpose, hoisted out of forward

    y = pinn_forward(x, prepped)
    jax.block_until_ready(y)

    y_ref = reference_forward(x, params)
    assert y.shape == (N, OUT)
    assert jnp.allclose(y, y_ref, atol=2e-5, rtol=2e-5)

    # NOTE: mu1..mu3 / omega1..omega3 are scalar nn.Parameters not used in forward();
    # enforce_non_negative() is a training-time clamp, not part of the forward pass.
    print("KERNEL_OK")
</pallas_src>

<mosaic_0001>
module attributes {stable_mosaic.version = 11 : i64} {
  func.func @pinn_mlp_kernel(%arg0: i32, %arg1: memref<512x1xf32, #tpu.memory_space<vmem>>, %arg2: memref<1x128xf32, #tpu.memory_space<vmem>>, %arg3: memref<1x128xf32, #tpu.memory_space<vmem>>, %arg4: memref<128x128xf32, #tpu.memory_space<vmem>>, %arg5: memref<1x128xf32, #tpu.memory_space<vmem>>, %arg6: memref<128x128xf32, #tpu.memory_space<vmem>>, %arg7: memref<1x128xf32, #tpu.memory_space<vmem>>, %arg8: memref<128x128xf32, #tpu.memory_space<vmem>>, %arg9: memref<1x128xf32, #tpu.memory_space<vmem>>, %arg10: memref<8x128xf32, #tpu.memory_space<vmem>>, %arg11: memref<8x1xf32, #tpu.memory_space<vmem>>, %arg12: memref<8x512xf32, #tpu.memory_space<vmem>>) attributes {dimension_semantics = [#tpu.dimension_semantics<parallel>], iteration_bounds = array<i64: 2>, scalar_prefetch = 0 : i64, scratch_operands = 0 : i64, tpu.core_type = #tpu.core_type<tc>, window_params = [{transform_indices = @transform_0, window_bounds = array<i64: 512, 1>}, {pipeline_mode = #tpu.pipeline_mode<synchronous>, transform_indices = @transform_1, window_bounds = array<i64: 1, 128>}, {pipeline_mode = #tpu.pipeline_mode<synchronous>, transform_indices = @transform_2, window_bounds = array<i64: 1, 128>}, {pipeline_mode = #tpu.pipeline_mode<synchronous>, transform_indices = @transform_3, window_bounds = array<i64: 128, 128>}, {pipeline_mode = #tpu.pipeline_mode<synchronous>, transform_indices = @transform_4, window_bounds = array<i64: 1, 128>}, {pipeline_mode = #tpu.pipeline_mode<synchronous>, transform_indices = @transform_5, window_bounds = array<i64: 128, 128>}, {pipeline_mode = #tpu.pipeline_mode<synchronous>, transform_indices = @transform_6, window_bounds = array<i64: 1, 128>}, {pipeline_mode = #tpu.pipeline_mode<synchronous>, transform_indices = @transform_7, window_bounds = array<i64: 128, 128>}, {pipeline_mode = #tpu.pipeline_mode<synchronous>, transform_indices = @transform_8, window_bounds = array<i64: 1, 128>}, {pipeline_mode = #tpu.pipeline_mode<synchronous>, transform_indices = @transform_9, window_bounds = array<i64: 8, 128>}, {pipeline_mode = #tpu.pipeline_mode<synchronous>, transform_indices = @transform_10, window_bounds = array<i64: 8, 1>}, {transform_indices = @transform_11, window_bounds = array<i64: 8, 512>}]} {
    %c0 = arith.constant 0 : index
    %c0_0 = arith.constant 0 : index
    %0 = vector.load %arg1[%c0, %c0_0] : memref<512x1xf32, #tpu.memory_space<vmem>>, vector<512x1xf32>
    %c0_1 = arith.constant 0 : index
    %c0_2 = arith.constant 0 : index
    %1 = vector.load %arg2[%c0_1, %c0_2] : memref<1x128xf32, #tpu.memory_space<vmem>>, vector<1x128xf32>
    %2 = vector.broadcast %0 : vector<512x1xf32> to vector<512x128xf32>
    %3 = vector.broadcast %1 : vector<1x128xf32> to vector<512x128xf32>
    %4 = arith.mulf %2, %3 : vector<512x128xf32>
    %c0_3 = arith.constant 0 : index
    %c0_4 = arith.constant 0 : index
    %5 = vector.load %arg3[%c0_3, %c0_4] : memref<1x128xf32, #tpu.memory_space<vmem>>, vector<1x128xf32>
    %6 = vector.broadcast %5 : vector<1x128xf32> to vector<512x128xf32>
    %7 = arith.addf %4, %6 : vector<512x128xf32>
    %cst = arith.constant 5.000000e-01 : f32
    %8 = vector.broadcast %cst : f32 to vector<512x128xf32>
    %9 = arith.mulf %8, %7 : vector<512x128xf32>
    %10 = math.tanh %9 : vector<512x128xf32>
    %cst_5 = arith.constant 5.000000e-01 : f32
    %11 = vector.broadcast %cst_5 : f32 to vector<512x128xf32>
    %12 = arith.mulf %11, %10 : vector<512x128xf32>
    %cst_6 = arith.constant 5.000000e-01 : f32
    %13 = vector.broadcast %cst_6 : f32 to vector<512x128xf32>
    %14 = arith.addf %12, %13 : vector<512x128xf32>
    %c0_7 = arith.constant 0 : index
    %c0_8 = arith.constant 0 : index
    %15 = vector.load %arg4[%c0_7, %c0_8] : memref<128x128xf32, #tpu.memory_space<vmem>>, vector<128x128xf32>
    %cst_9 = arith.constant dense<0.000000e+00> : vector<512x128xf32>
    %16 = tpu.matmul %14, %15, %cst_9 {dimension_numbers = #tpu.dot_dimension_numbers<[1], [0], [0], [1], [0, 0, 1, 1], [], []>} : vector<512x128xf32>, vector<128x128xf32>, vector<512x128xf32> -> vector<512x128xf32>
    %c0_10 = arith.constant 0 : index
    %c0_11 = arith.constant 0 : index
    %17 = vector.load %arg5[%c0_10, %c0_11] : memref<1x128xf32, #tpu.memory_space<vmem>>, vector<1x128xf32>
    %18 = vector.broadcast %17 : vector<1x128xf32> to vector<512x128xf32>
    %19 = arith.addf %16, %18 : vector<512x128xf32>
    %cst_12 = arith.constant 5.000000e-01 : f32
    %20 = vector.broadcast %cst_12 : f32 to vector<512x128xf32>
    %21 = arith.mulf %20, %19 : vector<512x128xf32>
    %22 = math.tanh %21 : vector<512x128xf32>
    %cst_13 = arith.constant 5.000000e-01 : f32
    %23 = vector.broadcast %cst_13 : f32 to vector<512x128xf32>
    %24 = arith.mulf %23, %22 : vector<512x128xf32>
    %cst_14 = arith.constant 5.000000e-01 : f32
    %25 = vector.broadcast %cst_14 : f32 to vector<512x128xf32>
    %26 = arith.addf %24, %25 : vector<512x128xf32>
    %c0_15 = arith.constant 0 : index
    %c0_16 = arith.constant 0 : index
    %27 = vector.load %arg6[%c0_15, %c0_16] : memref<128x128xf32, #tpu.memory_space<vmem>>, vector<128x128xf32>
    %cst_17 = arith.constant dense<0.000000e+00> : vector<512x128xf32>
    %28 = tpu.matmul %26, %27, %cst_17 {dimension_numbers = #tpu.dot_dimension_numbers<[1], [0], [0], [1], [0, 0, 1, 1], [], []>} : vector<512x128xf32>, vector<128x128xf32>, vector<512x128xf32> -> vector<512x128xf32>
    %c0_18 = arith.constant 0 : index
    %c0_19 = arith.constant 0 : index
    %29 = vector.load %arg7[%c0_18, %c0_19] : memref<1x128xf32, #tpu.memory_space<vmem>>, vector<1x128xf32>
    %30 = vector.broadcast %29 : vector<1x128xf32> to vector<512x128xf32>
    %31 = arith.addf %28, %30 : vector<512x128xf32>
    %cst_20 = arith.constant 5.000000e-01 : f32
    %32 = vector.broadcast %cst_20 : f32 to vector<512x128xf32>
    %33 = arith.mulf %32, %31 : vector<512x128xf32>
    %34 = math.tanh %33 : vector<512x128xf32>
    %cst_21 = arith.constant 5.000000e-01 : f32
    %35 = vector.broadcast %cst_21 : f32 to vector<512x128xf32>
    %36 = arith.mulf %35, %34 : vector<512x128xf32>
    %cst_22 = arith.constant 5.000000e-01 : f32
    %37 = vector.broadcast %cst_22 : f32 to vector<512x128xf32>
    %38 = arith.addf %36, %37 : vector<512x128xf32>
    %c0_23 = arith.constant 0 : index
    %c0_24 = arith.constant 0 : index
    %39 = vector.load %arg8[%c0_23, %c0_24] : memref<128x128xf32, #tpu.memory_space<vmem>>, vector<128x128xf32>
    %cst_25 = arith.constant dense<0.000000e+00> : vector<512x128xf32>
    %40 = tpu.matmul %38, %39, %cst_25 {dimension_numbers = #tpu.dot_dimension_numbers<[1], [0], [0], [1], [0, 0, 1, 1], [], []>} : vector<512x128xf32>, vector<128x128xf32>, vector<512x128xf32> -> vector<512x128xf32>
    %c0_26 = arith.constant 0 : index
    %c0_27 = arith.constant 0 : index
    %41 = vector.load %arg9[%c0_26, %c0_27] : memref<1x128xf32, #tpu.memory_space<vmem>>, vector<1x128xf32>
    %42 = vector.broadcast %41 : vector<1x128xf32> to vector<512x128xf32>
    %43 = arith.addf %40, %42 : vector<512x128xf32>
    %cst_28 = arith.constant 5.000000e-01 : f32
    %44 = vector.broadcast %cst_28 : f32 to vector<512x128xf32>
    %45 = arith.mulf %44, %43 : vector<512x128xf32>
    %46 = math.tanh %45 : vector<512x128xf32>
    %cst_29 = arith.constant 5.000000e-01 : f32
    %47 = vector.broadcast %cst_29 : f32 to vector<512x128xf32>
    %48 = arith.mulf %47, %46 : vector<512x128xf32>
    %cst_30 = arith.constant 5.000000e-01 : f32
    %49 = vector.broadcast %cst_30 : f32 to vector<512x128xf32>
    %50 = arith.addf %48, %49 : vector<512x128xf32>
    %c0_31 = arith.constant 0 : index
    %c0_32 = arith.constant 0 : index
    %51 = vector.load %arg10[%c0_31, %c0_32] : memref<8x128xf32, #tpu.memory_space<vmem>>, vector<8x128xf32>
    %cst_33 = arith.constant dense<0.000000e+00> : vector<8x512xf32>
    %52 = tpu.matmul %51, %50, %cst_33 {dimension_numbers = #tpu.dot_dimension_numbers<[1], [1], [0], [0], [0, 0, 1, 0], [], []>} : vector<8x128xf32>, vector<512x128xf32>, vector<8x512xf32> -> vector<8x512xf32>
    %c0_34 = arith.constant 0 : index
    %c0_35 = arith.constant 0 : index
    %53 = vector.load %arg11[%c0_34, %c0_35] : memref<8x1xf32, #tpu.memory_space<vmem>>, vector<8x1xf32>
    %54 = vector.broadcast %53 : vector<8x1xf32> to vector<8x512xf32>
    %55 = arith.addf %52, %54 : vector<8x512xf32>
    %c0_36 = arith.constant 0 : index
    %c0_37 = arith.constant 0 : index
    %56 = vector.load %arg12[%c0_36, %c0_37] : memref<8x512xf32, #tpu.memory_space<vmem>>, vector<8x512xf32>
    tpu.vector_store %arg12[%c0_36, %c0_37], %55 {strides = array<i32>} : memref<8x512xf32, #tpu.memory_space<vmem>>, vector<8x512xf32>,
    return
  }
  func.func @transform_0(%arg0: i32) -> (i32, i32) {
    %c0_i32 = arith.constant 0 : i32
    %c0_i32_0 = arith.constant 0 : i32
    return %arg0, %c0_i32 : i32, i32
  }
  func.func @transform_1(%arg0: i32) -> (i32, i32) {
    %c0_i32 = arith.constant 0 : i32
    %c0_i32_0 = arith.constant 0 : i32
    %c0_i32_1 = arith.constant 0 : i32
    return %c0_i32, %c0_i32_0 : i32, i32
  }
  func.func @transform_2(%arg0: i32) -> (i32, i32) {
    %c0_i32 = arith.constant 0 : i32
    %c0_i32_0 = arith.constant 0 : i32
    %c0_i32_1 = arith.constant 0 : i32
    return %c0_i32, %c0_i32_0 : i32, i32
  }
  func.func @transform_3(%arg0: i32) -> (i32, i32) {
    %c0_i32 = arith.constant 0 : i32
    %c0_i32_0 = arith.constant 0 : i32
    %c0_i32_1 = arith.constant 0 : i32
    return %c0_i32, %c0_i32_0 : i32, i32
  }
  func.func @transform_4(%arg0: i32) -> (i32, i32) {
    %c0_i32 = arith.constant 0 : i32
    %c0_i32_0 = arith.constant 0 : i32
    %c0_i32_1 = arith.constant 0 : i32
    return %c0_i32, %c0_i32_0 : i32, i32
  }
  func.func @transform_5(%arg0: i32) -> (i32, i32) {
    %c0_i32 = arith.constant 0 : i32
    %c0_i32_0 = arith.constant 0 : i32
    %c0_i32_1 = arith.constant 0 : i32
    return %c0_i32, %c0_i32_0 : i32, i32
  }
  func.func @transform_6(%arg0: i32) -> (i32, i32) {
    %c0_i32 = arith.constant 0 : i32
    %c0_i32_0 = arith.constant 0 : i32
    %c0_i32_1 = arith.constant 0 : i32
    return %c0_i32, %c0_i32_0 : i32, i32
  }
  func.func @transform_7(%arg0: i32) -> (i32, i32) {
    %c0_i32 = arith.constant 0 : i32
    %c0_i32_0 = arith.constant 0 : i32
    %c0_i32_1 = arith.constant 0 : i32
    return %c0_i32, %c0_i32_0 : i32, i32
  }
  func.func @transform_8(%arg0: i32) -> (i32, i32) {
    %c0_i32 = arith.constant 0 : i32
    %c0_i32_0 = arith.constant 0 : i32
    %c0_i32_1 = arith.constant 0 : i32
    return %c0_i32, %c0_i32_0 : i32, i32
  }
  func.func @transform_9(%arg0: i32) -> (i32, i32) {
    %c0_i32 = arith.constant 0 : i32
    %c0_i32_0 = arith.constant 0 : i32
    %c0_i32_1 = arith.constant 0 : i32
    return %c0_i32, %c0_i32_0 : i32, i32
  }
  func.func @transform_10(%arg0: i32) -> (i32, i32) {
    %c0_i32 = arith.constant 0 : i32
    %c0_i32_0 = arith.constant 0 : i32
    %c0_i32_1 = arith.constant 0 : i32
    return %c0_i32, %c0_i32_0 : i32, i32
  }
  func.func @transform_11(%arg0: i32) -> (i32, i32) {
    %c0_i32 = arith.constant 0 : i32
    %c0_i32_0 = arith.constant 0 : i32
    return %c0_i32, %arg0 : i32, i32
  }
}

</mosaic_0001>

<llo_original>
// kernel: tpu_custom_call.1
$region0: #{tpu_custom_call.1}
  #allocation0 [shape = 'u32[]', space=smem, size = 0x4, offset = 0x4, fixed_abs, tag = 'smem constant byte address 0x4 - core index']
  #allocation1 [shape = 'u32[144,128]{1,0:T(1,128)}', space=vmem, size = 0x12000, scoped, tag = 'internal scratch']
  %s0 = inlined_call_operand.vmem [shape: f32[1024,1], index: 0, kind: input, shape index: {}]
  %s1 = inlined_call_operand.vmem [shape: f32[1,128], index: 1, kind: input, shape index: {}]
  %s2 = inlined_call_operand.vmem [shape: f32[1,128], index: 2, kind: input, shape index: {}]
  %s3 = inlined_call_operand.vmem [shape: f32[128,128], index: 3, kind: input, shape index: {}]
  %s4 = inlined_call_operand.vmem [shape: f32[1,128], index: 4, kind: input, shape index: {}]
  %s5 = inlined_call_operand.vmem [shape: f32[128,128], index: 5, kind: input, shape index: {}]
  %s6 = inlined_call_operand.vmem [shape: f32[1,128], index: 6, kind: input, shape index: {}]
  %s7 = inlined_call_operand.vmem [shape: f32[128,128], index: 7, kind: input, shape index: {}]
  %s8 = inlined_call_operand.vmem [shape: f32[1,128], index: 8, kind: input, shape index: {}]
  %s9 = inlined_call_operand.vmem [shape: f32[8,128], index: 9, kind: input, shape index: {}]
  %s10 = inlined_call_operand.vmem [shape: f32[8,1], index: 10, kind: input, shape index: {}]
  %s11 = inlined_call_operand.hbm [shape: f32[8,1024], index: 11, kind: output, shape index: {}]
  %s12 = sld [smem:[#allocation0]]
  $region77: #{tpu_custom_call.1} parent=0
    _
  %s14 = ssub.s32 1, %s12
  %s15 = scalar_select 0, %s14, %s12
  $region1: #{tpu_custom_call.1} parent=0
    #allocation2 [shape = 'u8[32768]{0}', space=vmem, size = 0x8000, scoped, tag = 'output window, operand 0']
    #allocation3 [shape = 's32[2]{0}', space=sflag, size = 0x8, scoped, tag = 'scoped memory for tpu_custom_call.1']
    %16 = vsyncpa [#allocation3], 0
    %s17 = scalar_lea.sflag [#allocation3], 1
    %18 = vsyncpa %s17, 0
    loop: start=0, step=1, limit=4
    $region2: #{tpu_custom_call.1} parent=1 // loop_pre_header
      _
    $region3: #{tpu_custom_call.1} parent=1 // loop_header
      %s20 = sphi 0, %s24
      %p21 = scmp.ge.s32.totalorder %s20, 4
      %s30 = sphi 0, %s32
      %s33 = sphi 0, %s30
      %s34 = sphi 0, %s33
      %s50 = sphi 0, %s34
      %s54 = sphi 0, %s54
      %s56 = sphi 0, %s54
      %s57 = sphi 0, %s56
      %s71 = sphi 0, %s57
      %s75 = sphi 0, %s75
      %s77 = sphi 0, %s75
      %s78 = sphi 0, %s77
      %s92 = sphi 0, %s78
      %s96 = sphi 0, %s96
      %s98 = sphi 0, %s96
      %s99 = sphi 0, %s98
      %s113 = sphi 0, %s99
      %s117 = sphi 0, %s117
      %s119 = sphi 0, %s117
      %s120 = sphi 0, %s119
      %s134 = sphi 0, %s120
      %s138 = sphi 0, %s138
      %s140 = sphi 0, %s138
      %s141 = sphi 0, %s140
      %s155 = sphi 0, %s141
      %s159 = sphi 0, %s159
      %s161 = sphi 0, %s159
      %s162 = sphi 0, %s161
      %s176 = sphi 0, %s162
      %s180 = sphi 0, %s180
      %s182 = sphi 0, %s180
      %s183 = sphi 0, %s182
      %s197 = sphi 0, %s183
      %s201 = sphi 0, %s201
      %s203 = sphi 0, %s201
      %s204 = sphi 0, %s203
      %s218 = sphi 0, %s204
      %s222 = sphi 0, %s222
      %s224 = sphi 0, %s222
      %s225 = sphi 0, %s224
      %s239 = sphi 0, %s225
      %s243 = sphi 0, %s243
      %s245 = sphi 0, %s243
      %s246 = sphi 0, %s245
      %s260 = sphi 0, %s246
      %s266 = sphi 0, %s268
      %s269 = sphi 0, %s266
      %s270 = sphi 0, %s269
      %s286 = sphi 0, %s270
    $region4: #{tpu_custom_call.1} parent=1 // loop_header_branch
      %23 = sbr.rel (%p21) target = $region8
    $region5: #{tpu_custom_call.1} parent=1 // loop_body
      %s25 = ssub.s32 %s20, 1
      %s26 = ssub.s32 %s20, 2
      %s27 = sadd.s32 %s20, 1
      %s28 = ssub.s32 %s20, %s27
      %p29 = scmp.eq.s32.totalorder %s28, 0
      %s31 = sadd.s32 %s30, 1
      %s32 = scalar_select %p29, %s30, %s31
      %p35 = pneg %p29
      %p36 = scmp.eq.s32.totalorder %s20, 1
      %p37 = por %p35, %p36
      %p38 = scmp.ne.s32.totalorder %s30, %s33
      %p39 = scmp.eq.s32.totalorder %s20, 0
      %p40 = por %p38, %p39
      %p41 = scmp.ne.s32.totalorder %s30, %s33
      %p42 = scmp.eq.s32.totalorder %s25, 1
      %p43 = por %p41, %p42
      %p44 = scmp.ne.s32.totalorder %s33, %s34
      %p45 = scmp.eq.s32.totalorder %s25, 0
      %p46 = por %p44, %p45
      %p47 = scmp.ne.s32.totalorder %s33, %s34
      %p48 = scmp.eq.s32.totalorder %s26, 1
      %p49 = por %p47, %p48
      %p51 = scmp.ne.s32.totalorder %s34, %s50
      %p52 = scmp.eq.s32.totalorder %s26, 0
      %p53 = por %p51, %p52
      %s55 = sadd.s32 %s54, 1
      %p58 = scmp.eq.s32.totalorder %s20, 1
      %p59 = scmp.ne.s32.totalorder %s54, %s56
      %p60 = scmp.eq.s32.totalorder %s20, 0
      %p61 = por %p59, %p60
      %p62 = scmp.ne.s32.totalorder %s54, %s56
      %p63 = scmp.eq.s32.totalorder %s25, 1
      %p64 = por %p62, %p63
      %p65 = scmp.ne.s32.totalorder %s56, %s57
      %p66 = scmp.eq.s32.totalorder %s25, 0
      %p67 = por %p65, %p66
      %p68 = scmp.ne.s32.totalorder %s56, %s57
      %p69 = scmp.eq.s32.totalorder %s26, 1
      %p70 = por %p68, %p69
      %p72 = scmp.ne.s32.totalorder %s57, %s71
      %p73 = scmp.eq.s32.totalorder %s26, 0
      %p74 = por %p72, %p73
      %s76 = sadd.s32 %s75, 1
      %p79 = scmp.eq.s32.totalorder %s20, 1
      %p80 = scmp.ne.s32.totalorder %s75, %s77
      %p81 = scmp.eq.s32.totalorder %s20, 0
      %p82 = por %p80, %p81
      %p83 = scmp.ne.s32.totalorder %s75, %s77
      %p84 = scmp.eq.s32.totalorder %s25, 1
      %p85 = por %p83, %p84
      %p86 = scmp.ne.s32.totalorder %s77, %s78
      %p87 = scmp.eq.s32.totalorder %s25, 0
      %p88 = por %p86, %p87
      %p89 = scmp.ne.s32.totalorder %s77, %s78
      %p90 = scmp.eq.s32.totalorder %s26, 1
      %p91 = por %p89, %p90
      %p93 = scmp.ne.s32.totalorder %s78, %s92
      %p94 = scmp.eq.s32.totalorder %s26, 0
      %p95 = por %p93, %p94
      %s97 = sadd.s32 %s96, 1
      %p100 = scmp.eq.s32.totalorder %s20, 1
      %p101 = scmp.ne.s32.totalorder %s96, %s98
      %p102 = scmp.eq.s32.totalorder %s20, 0
      %p103 = por %p101, %p102
      %p104 = scmp.ne.s32.totalorder %s96, %s98
      %p105 = scmp.eq.s32.totalorder %s25, 1
      %p106 = por %p104, %p105
      %p107 = scmp.ne.s32.totalorder %s98, %s99
      %p108 = scmp.eq.s32.totalorder %s25, 0
      %p109 = por %p107, %p108
      %p110 = scmp.ne.s32.totalorder %s98, %s99
      %p111 = scmp.eq.s32.totalorder %s26, 1
      %p112 = por %p110, %p111
      %p114 = scmp.ne.s32.totalorder %s99, %s113
      %p115 = scmp.eq.s32.totalorder %s26, 0
      %p116 = por %p114, %p115
      %s118 = sadd.s32 %s117, 1
      %p121 = scmp.eq.s32.totalorder %s20, 1
      %p122 = scmp.ne.s32.totalorder %s117, %s119
      %p123 = scmp.eq.s32.totalorder %s20, 0
      %p124 = por %p122, %p123
      %p125 = scmp.ne.s32.totalorder %s117, %s119
      %p126 = scmp.eq.s32.totalorder %s25, 1
      %p127 = por %p125, %p126
      %p128 = scmp.ne.s32.totalorder %s119, %s120
      %p129 = scmp.eq.s32.totalorder %s25, 0
      %p130 = por %p128, %p129
      %p131 = scmp.ne.s32.totalorder %s119, %s120
      %p132 = scmp.eq.s32.totalorder %s26, 1
      %p133 = por %p131, %p132
      %p135 = scmp.ne.s32.totalorder %s120, %s134
      %p136 = scmp.eq.s32.totalorder %s26, 0
      %p137 = por %p135, %p136
      %s139 = sadd.s32 %s138, 1
      %p142 = scmp.eq.s32.totalorder %s20, 1
      %p143 = scmp.ne.s32.totalorder %s138, %s140
      %p144 = scmp.eq.s32.totalorder %s20, 0
      %p145 = por %p143, %p144
      %p146 = scmp.ne.s32.totalorder %s138, %s140
      %p147 = scmp.eq.s32.totalorder %s25, 1
      %p148 = por %p146, %p147
      %p149 = scmp.ne.s32.totalorder %s140, %s141
      %p150 = scmp.eq.s32.totalorder %s25, 0
      %p151 = por %p149, %p150
      %p152 = scmp.ne.s32.totalorder %s140, %s141
      %p153 = scmp.eq.s32.totalorder %s26, 1
      %p154 = por %p152, %p153
      %p156 = scmp.ne.s32.totalorder %s141, %s155
      %p157 = scmp.eq.s32.totalorder %s26, 0
      %p158 = por %p156, %p157
      %s160 = sadd.s32 %s159, 1
      %p163 = scmp.eq.s32.totalorder %s20, 1
      %p164 = scmp.ne.s32.totalorder %s159, %s161
      %p165 = scmp.eq.s32.totalorder %s20, 0
      %p166 = por %p164, %p165
      %p167 = scmp.ne.s32.totalorder %s159, %s161
      %p168 = scmp.eq.s32.totalorder %s25, 1
      %p169 = por %p167, %p168
      %p170 = scmp.ne.s32.totalorder %s161, %s162
      %p171 = scmp.eq.s32.totalorder %s25, 0
      %p172 = por %p170, %p171
      %p173 = scmp.ne.s32.totalorder %s161, %s162
      %p174 = scmp.eq.s32.totalorder %s26, 1
      %p175 = por %p173, %p174
      %p177 = scmp.ne.s32.totalorder %s162, %s176
      %p178 = scmp.eq.s32.totalorder %s26, 0
      %p179 = por %p177, %p178
      %s181 = sadd.s32 %s180, 1
      %p184 = scmp.eq.s32.totalorder %s20, 1
      %p185 = scmp.ne.s32.totalorder %s180, %s182
      %p186 = scmp.eq.s32.totalorder %s20, 0
      %p187 = por %p185, %p186
      %p188 = scmp.ne.s32.totalorder %s180, %s182
      %p189 = scmp.eq.s32.totalorder %s25, 1
      %p190 = por %p188, %p189
      %p191 = scmp.ne.s32.totalorder %s182, %s183
      %p192 = scmp.eq.s32.totalorder %s25, 0
      %p193 = por %p191, %p192
      %p194 = scmp.ne.s32.totalorder %s182, %s183
      %p195 = scmp.eq.s32.totalorder %s26, 1
      %p196 = por %p194, %p195
      %p198 = scmp.ne.s32.totalorder %s183, %s197
      %p199 = scmp.eq.s32.totalorder %s26, 0
      %p200 = por %p198, %p199
      %s202 = sadd.s32 %s201, 1
      %p205 = scmp.eq.s32.totalorder %s20, 1
      %p206 = scmp.ne.s32.totalorder %s201, %s203
      %p207 = scmp.eq.s32.totalorder %s20, 0
      %p208 = por %p206, %p207
      %p209 = scmp.ne.s32.totalorder %s201, %s203
      %p210 = scmp.eq.s32.totalorder %s25, 1
      %p211 = por %p209, %p210
      %p212 = scmp.ne.s32.totalorder %s203, %s204
      %p213 = scmp.eq.s32.totalorder %s25, 0
      %p214 = por %p212, %p213
      %p215 = scmp.ne.s32.totalorder %s203, %s204
      %p216 = scmp.eq.s32.totalorder %s26, 1
      %p217 = por %p215, %p216
      %p219 = scmp.ne.s32.totalorder %s204, %s218
      %p220 = scmp.eq.s32.totalorder %s26, 0
      %p221 = por %p219, %p220
      %s223 = sadd.s32 %s222, 1
      %p226 = scmp.eq.s32.totalorder %s20, 1
      %p227 = scmp.ne.s32.totalorder %s222, %s224
      %p228 = scmp.eq.s32.totalorder %s20, 0
      %p229 = por %p227, %p228
      %p230 = scmp.ne.s32.totalorder %s222, %s224
      %p231 = scmp.eq.s32.totalorder %s25, 1
      %p232 = por %p230, %p231
      %p233 = scmp.ne.s32.totalorder %s224, %s225
      %p234 = scmp.eq.s32.totalorder %s25, 0
      %p235 = por %p233, %p234
      %p236 = scmp.ne.s32.totalorder %s224, %s225
      %p237 = scmp.eq.s32.totalorder %s26, 1
      %p238 = por %p236, %p237
      %p240 = scmp.ne.s32.totalorder %s225, %s239
      %p241 = scmp.eq.s32.totalorder %s26, 0
      %p242 = por %p240, %p241
      %s244 = sadd.s32 %s243, 1
      %p247 = scmp.eq.s32.totalorder %s20, 1
      %p248 = scmp.ne.s32.totalorder %s243, %s245
      %p249 = scmp.eq.s32.totalorder %s20, 0
      %p250 = por %p248, %p249
      %p251 = scmp.ne.s32.totalorder %s243, %s245
      %p252 = scmp.eq.s32.totalorder %s25, 1
      %p253 = por %p251, %p252
      %p254 = scmp.ne.s32.totalorder %s245, %s246
      %p255 = scmp.eq.s32.totalorder %s25, 0
      %p256 = por %p254, %p255
      %p257 = scmp.ne.s32.totalorder %s245, %s246
      %p258 = scmp.eq.s32.totalorder %s26, 1
      %p259 = por %p257, %p258
      %p261 = scmp.ne.s32.totalorder %s246, %s260
      %p262 = scmp.eq.s32.totalorder %s26, 0
      %p263 = por %p261, %p262
      %s264 = ssub.s32 %s20, %s27
      %p265 = scmp.eq.s32.totalorder %s264, 0
      %s267 = sadd.s32 %s266, 1
      %s268 = scalar_select %p265, %s266, %s267
      %p271 = pneg %p265
      %p272 = scmp.eq.s32.totalorder %s20, 1
      %p273 = por %p271, %p272
      %p274 = scmp.ne.s32.totalorder %s266, %s269
      %p275 = scmp.eq.s32.totalorder %s20, 0
      %p276 = por %p274, %p275
      %p277 = scmp.ne.s32.totalorder %s266, %s269
      %p278 = scmp.eq.s32.totalorder %s25, 1
      %p279 = por %p277, %p278
      %p280 = scmp.ne.s32.totalorder %s269, %s270
      %p281 = scmp.eq.s32.totalorder %s25, 0
      %p282 = por %p280, %p281
      %p283 = scmp.ne.s32.totalorder %s269, %s270
      %p284 = scmp.eq.s32.totalorder %s26, 1
      %p285 = por %p283, %p284
      %p287 = scmp.ne.s32.totalorder %s270, %s286
      %p288 = scmp.eq.s32.totalorder %s26, 0
      %p289 = por %p287, %p288
      %p290 = scmp.le.s32.totalorder 1, %s20
      %p291 = scmp.lt.s32.totalorder %s20, 3
      %p292 = pnand %p290, %p291
      %p293 = pneg %p292
      // Predicated region
      $region9: #{tpu_custom_call.1} parent=5 // pred_check
        _
      $region10: #{tpu_custom_call.1} parent=5 // pred_check_branch
        %295 = sbr.rel (%p292) target = $region12
      $region11: #{tpu_custom_call.1} parent=5 // pred_region
        %s296 = ssub.s32 %s20, 1
        // Predicated region
        $region13: #{tpu_custom_call.1} parent=11 // pred_check
          %p297 = pneg %p67
        $region14: #{tpu_custom_call.1} parent=11 // pred_check_branch
          %299 = sbr.rel (%p297) target = $region16
        $region15: #{tpu_custom_call.1} parent=11 // pred_region
          _
        $region16: #{tpu_custom_call.1} parent=11 // pred_fallthru
          _
        // Predicated region
        $region17: #{tpu_custom_call.1} parent=11 // pred_check
          %p300 = pneg %p88
        $region18: #{tpu_custom_call.1} parent=11 // pred_check_branch
          %302 = sbr.rel (%p300) target = $region20
        $region19: #{tpu_custom_call.1} parent=11 // pred_region
          _
        $region20: #{tpu_custom_call.1} parent=11 // pred_fallthru
          _
        // Predicated region
        $region21: #{tpu_custom_call.1} parent=11 // pred_check
          %p303 = pneg %p109
        $region22: #{tpu_custom_call.1} parent=11 // pred_check_branch
          %305 = sbr.rel (%p303) target = $region24
        $region23: #{tpu_custom_call.1} parent=11 // pred_region
          _
        $region24: #{tpu_custom_call.1} parent=11 // pred_fallthru
          _
        // Predicated region
        $region25: #{tpu_custom_call.1} parent=11 // pred_check
          %p306 = pneg %p130
        $region26: #{tpu_custom_call.1} parent=11 // pred_check_branch
          %308 = sbr.rel (%p306) target = $region28
        $region27: #{tpu_custom_call.1} parent=11 // pred_region
          _
        $region28: #{tpu_custom_call.1} parent=11 // pred_fallthru
          _
        // Predicated region
        $region29: #{tpu_custom_call.1} parent=11 // pred_check
          %p309 = pneg %p151
        $region30: #{tpu_custom_call.1} parent=11 // pred_check_branch
          %311 = sbr.rel (%p309) target = $region32
        $region31: #{tpu_custom_call.1} parent=11 // pred_region
          _
        $region32: #{tpu_custom_call.1} parent=11 // pred_fallthru
          _
        // Predicated region
        $region33: #{tpu_custom_call.1} parent=11 // pred_check
          %p312 = pneg %p172
        $region34: #{tpu_custom_call.1} parent=11 // pred_check_branch
          %314 = sbr.rel (%p312) target = $region36
        $region35: #{tpu_custom_call.1} parent=11 // pred_region
          _
        $region36: #{tpu_custom_call.1} parent=11 // pred_fallthru
          _
        // Predicated region
        $region37: #{tpu_custom_call.1} parent=11 // pred_check
          %p315 = pneg %p193
        $region38: #{tpu_custom_call.1} parent=11 // pred_check_branch
          %317 = sbr.rel (%p315) target = $region40
        $region39: #{tpu_custom_call.1} parent=11 // pred_region
          _
        $region40: #{tpu_custom_call.1} parent=11 // pred_fallthru
          _
        // Predicated region
        $region41: #{tpu_custom_call.1} parent=11 // pred_check
          %p318 = pneg %p214
        $region42: #{tpu_custom_call.1} parent=11 // pred_check_branch
          %320 = sbr.rel (%p318) target = $region44
        $region43: #{tpu_custom_call.1} parent=11 // pred_region
          _
        $region44: #{tpu_custom_call.1} parent=11 // pred_fallthru
          _
        // Predicated region
        $region45: #{tpu_custom_call.1} parent=11 // pred_check
          %p321 = pneg %p235
        $region46: #{tpu_custom_call.1} parent=11 // pred_check_branch
          %323 = sbr.rel (%p321) target = $region48
        $region47: #{tpu_custom_call.1} parent=11 // pred_region
          _
        $region48: #{tpu_custom_call.1} parent=11 // pred_fallthru
          _
        // Predicated region
        $region49: #{tpu_custom_call.1} parent=11 // pred_check
          %p324 = pneg %p256
        $region50: #{tpu_custom_call.1} parent=11 // pred_check_branch
          %326 = sbr.rel (%p324) target = $region52
        $region51: #{tpu_custom_call.1} parent=11 // pred_region
          _
        $region52: #{tpu_custom_call.1} parent=11 // pred_fallthru
          _
      $region12: #{tpu_custom_call.1} parent=5 // pred_fallthru
        _
      %p327 = scmp.lt.s32.totalorder %s20, 2
      // Predicated region
      $region53: #{tpu_custom_call.1} parent=5 // pred_check
        %p328 = pneg %p327
      $region54: #{tpu_custom_call.1} parent=5 // pred_check_branch
        %330 = sbr.rel (%p328) target = $region56
      $region55: #{tpu_custom_call.1} parent=5 // pred_region
        // Predicated region
        $region57: #{tpu_custom_call.1} parent=55 // pred_check
          %p331 = pneg %p40
        $region58: #{tpu_custom_call.1} parent=55 // pred_check_branch
          %333 = sbr.rel (%p331) target = $region60
        $region59: #{tpu_custom_call.1} parent=55 // pred_region
          %s334 = smul.u32 64, %s20
          %p335 = scmp.lt.s32.totalorder %s334, 127
          %s336 = scalar_select %p335, %s334, 127
          %s337 = smul.addr %s336, 8
          %s338 = scalar_lea.vmem %s0, %s337
          %s339 = smul.u32 64, %s20
        $region60: #{tpu_custom_call.1} parent=55 // pred_fallthru
          _
      $region56: #{tpu_custom_call.1} parent=5 // pred_fallthru
        _
      %p340 = scmp.le.s32.totalorder 1, %s20
      %p341 = scmp.lt.s32.totalorder %s20, 3
      %p342 = pnand %p340, %p341
      %p343 = pneg %p342
      // Predicated region
      $region61: #{tpu_custom_call.1} parent=5 // pred_check
        _
      $region62: #{tpu_custom_call.1} parent=5 // pred_check_branch
        %345 = sbr.rel (%p342) target = $region64
      $region63: #{tpu_custom_call.1} parent=5 // pred_region
        %s346 = ssub.s32 %s20, 1
        %s347 = smul.u32 64, %s25
        %p348 = scmp.lt.s32.totalorder %s347, 127
        %s349 = scalar_select %p348, %s347, 127
        %s350 = smul.addr %s349, 8
        %s351 = scalar_lea.vmem %s0, %s350
        %p352 = pneg %p46
        %p353 = pneg %p43
        %p354 = pneg %p67
        %p355 = pneg %p64
        %p356 = pneg %p88
        %p357 = pneg %p85
        %p358 = pneg %p109
        %p359 = pneg %p106
        %p360 = pneg %p130
        %p361 = pneg %p127
        %p362 = pneg %p151
        %p363 = pneg %p148
        %p364 = pneg %p172
        %p365 = pneg %p169
        %p366 = pneg %p193
        %p367 = pneg %p190
        %p368 = pneg %p214
        %p369 = pneg %p211
        %p370 = pneg %p235
        %p371 = pneg %p232
        %p372 = pneg %p256
        %p373 = pneg %p253
        %p374 = pneg %p282
        %p375 = pneg %p279
        %s376 = sand.u32 %s269, 1
        %s377 = scalar_lea.sflag [#allocation3], %s376
        %s378 = sand.u32 %s269, 1
        %s379 = smul.addr %s378, 32
        %s380 = scalar_lea.vmem [#allocation2], %s379
        %s381 = smul.u32 64, %s25
        %p382 = scmp.lt.s32.totalorder %s381, 127
        %s383 = scalar_select %p382, %s381, 127
        %s384 = smul.addr %s383, 8
        %s385 = scalar_lea.vmem %s0, %s384
        %s386 = smul.u32 64, %s25
        %s387 = smul.u32 4, %s25
        %v388 = vld [vmem:[%s385] sm:$0xff]
        %v389 = vld [vmem:[%s385 + $0x8] sm:$0xff]
        %v390 = vld [vmem:[%s385 + $0x10] sm:$0xff]
        %v391 = vld [vmem:[%s385 + $0x18] sm:$0xff]
        %v392 = vld [vmem:[%s385 + $0x20] sm:$0xff]
        %v393 = vld [vmem:[%s385 + $0x28] sm:$0xff]
        %v394 = vld [vmem:[%s385 + $0x30] sm:$0xff]
        %v395 = vld [vmem:[%s385 + $0x38] sm:$0xff]
        %v396 = vld [vmem:[%s385 + $0x40] sm:$0xff]
        %v397 = vld [vmem:[%s385 + $0x48] sm:$0xff]
        %v398 = vld [vmem:[%s385 + $0x50] sm:$0xff]
        %v399 = vld [vmem:[%s385 + $0x58] sm:$0xff]
        %v400 = vld [vmem:[%s385 + $0x60] sm:$0xff]
        %v401 = vld [vmem:[%s385 + $0x68] sm:$0xff]
        %v402 = vld [vmem:[%s385 + $0x70] sm:$0xff]
        %v403 = vld [vmem:[%s385 + $0x78] sm:$0xff]
        %v404 = vld [vmem:[%s385 + $0x80] sm:$0xff]
        %v405 = vld [vmem:[%s385 + $0x88] sm:$0xff]
        %v406 = vld [vmem:[%s385 + $0x90] sm:$0xff]
        %v407 = vld [vmem:[%s385 + $0x98] sm:$0xff]
        %v408 = vld [vmem:[%s385 + $0xa0] sm:$0xff]
        %v409 = vld [vmem:[%s385 + $0xa8] sm:$0xff]
        %v410 = vld [vmem:[%s385 + $0xb0] sm:$0xff]
        %v411 = vld [vmem:[%s385 + $0xb8] sm:$0xff]
        %v412 = vld [vmem:[%s385 + $0xc0] sm:$0xff]
        %v413 = vld [vmem:[%s385 + $0xc8] sm:$0xff]
        %v414 = vld [vmem:[%s385 + $0xd0] sm:$0xff]
        %v415 = vld [vmem:[%s385 + $0xd8] sm:$0xff]
        %v416 = vld [vmem:[%s385 + $0xe0] sm:$0xff]
        %v417 = vld [vmem:[%s385 + $0xe8] sm:$0xff]
        %v418 = vld [vmem:[%s385 + $0xf0] sm:$0xff]
        %v419 = vld [vmem:[%s385 + $0xf8] sm:$0xff]
        %v420 = vld [vmem:[%s385 + $0x100] sm:$0xff]
        %v421 = vld [vmem:[%s385 + $0x108] sm:$0xff]
        %v422 = vld [vmem:[%s385 + $0x110] sm:$0xff]
        %v423 = vld [vmem:[%s385 + $0x118] sm:$0xff]
        %v424 = vld [vmem:[%s385 + $0x120] sm:$0xff]
        %v425 = vld [vmem:[%s385 + $0x128] sm:$0xff]
        %v426 = vld [vmem:[%s385 + $0x130] sm:$0xff]
        %v427 = vld [vmem:[%s385 + $0x138] sm:$0xff]
        %v428 = vld [vmem:[%s385 + $0x140] sm:$0xff]
        %v429 = vld [vmem:[%s385 + $0x148] sm:$0xff]
        %v430 = vld [vmem:[%s385 + $0x150] sm:$0xff]
        %v431 = vld [vmem:[%s385 + $0x158] sm:$0xff]
        %v432 = vld [vmem:[%s385 + $0x160] sm:$0xff]
        %v433 = vld [vmem:[%s385 + $0x168] sm:$0xff]
        %v434 = vld [vmem:[%s385 + $0x170] sm:$0xff]
        %v435 = vld [vmem:[%s385 + $0x178] sm:$0xff]
        %v436 = vld [vmem:[%s385 + $0x180] sm:$0xff]
        %v437 = vld [vmem:[%s385 + $0x188] sm:$0xff]
        %v438 = vld [vmem:[%s385 + $0x190] sm:$0xff]
        %v439 = vld [vmem:[%s385 + $0x198] sm:$0xff]
        %v440 = vld [vmem:[%s385 + $0x1a0] sm:$0xff]
        %v441 = vld [vmem:[%s385 + $0x1a8] sm:$0xff]
        %v442 = vld [vmem:[%s385 + $0x1b0] sm:$0xff]
        %v443 = vld [vmem:[%s385 + $0x1b8] sm:$0xff]
        %v444 = vld [vmem:[%s385 + $0x1c0] sm:$0xff]
        %v445 = vld [vmem:[%s385 + $0x1c8] sm:$0xff]
        %v446 = vld [vmem:[%s385 + $0x1d0] sm:$0xff]
        %v447 = vld [vmem:[%s385 + $0x1d8] sm:$0xff]
        %v448 = vld [vmem:[%s385 + $0x1e0] sm:$0xff]
        %v449 = vld [vmem:[%s385 + $0x1e8] sm:$0xff]
        %v450 = vld [vmem:[%s385 + $0x1f0] sm:$0xff]
        %v451 = vld [vmem:[%s385 + $0x1f8] sm:$0xff]
        %v452 = vld [vmem:[%s1] sm:$0x1]
        %454 = vset.pattern.permute.xlu0 0
        %455 = vperm.xlu0 %454, %v388
        %v456 = vpop.permute.xlu0 %455
        %459 = vset.pattern.permute.xlu0 0
        %460 = vperm.xlu0 %459, %v389
        %v461 = vpop.permute.xlu0 %460
        %464 = vset.pattern.permute.xlu0 0
        %465 = vperm.xlu0 %464, %v390
        %v466 = vpop.permute.xlu0 %465
        %469 = vset.pattern.permute.xlu0 0
        %470 = vperm.xlu0 %469, %v391
        %v471 = vpop.permute.xlu0 %470
        %474 = vset.pattern.permute.xlu0 0
        %475 = vperm.xlu0 %474, %v392
        %v476 = vpop.permute.xlu0 %475
        %479 = vset.pattern.permute.xlu0 0
        %480 = vperm.xlu0 %479, %v393
        %v481 = vpop.permute.xlu0 %480
        %484 = vset.pattern.permute.xlu0 0
        %485 = vperm.xlu0 %484, %v394
        %v486 = vpop.permute.xlu0 %485
        %489 = vset.pattern.permute.xlu0 0
        %490 = vperm.xlu0 %489, %v395
        %v491 = vpop.permute.xlu0 %490
        %494 = vset.pattern.permute.xlu0 0
        %495 = vperm.xlu0 %494, %v396
        %v496 = vpop.permute.xlu0 %495
        %499 = vset.pattern.permute.xlu0 0
        %500 = vperm.xlu0 %499, %v397
        %v501 = vpop.permute.xlu0 %500
        %504 = vset.pattern.permute.xlu0 0
        %505 = vperm.xlu0 %504, %v398
        %v506 = vpop.permute.xlu0 %505
        %509 = vset.pattern.permute.xlu0 0
        %510 = vperm.xlu0 %509, %v399
        %v511 = vpop.permute.xlu0 %510
        %514 = vset.pattern.permute.xlu0 0
        %515 = vperm.xlu0 %514, %v400
        %v516 = vpop.permute.xlu0 %515
        %519 = vset.pattern.permute.xlu0 0
        %520 = vperm.xlu0 %519, %v401
        %v521 = vpop.permute.xlu0 %520
        %524 = vset.pattern.permute.xlu0 0
        %525 = vperm.xlu0 %524, %v402
        %v526 = vpop.permute.xlu0 %525
        %529 = vset.pattern.permute.xlu0 0
        %530 = vperm.xlu0 %529, %v403
        %v531 = vpop.permute.xlu0 %530
        %534 = vset.pattern.permute.xlu0 0
        %535 = vperm.xlu0 %534, %v404
        %v536 = vpop.permute.xlu0 %535
        %539 = vset.pattern.permute.xlu0 0
        %540 = vperm.xlu0 %539, %v405
        %v541 = vpop.permute.xlu0 %540
        %544 = vset.pattern.permute.xlu0 0
        %545 = vperm.xlu0 %544, %v406
        %v546 = vpop.permute.xlu0 %545
        %549 = vset.pattern.permute.xlu0 0
        %550 = vperm.xlu0 %549, %v407
        %v551 = vpop.permute.xlu0 %550
        %554 = vset.pattern.permute.xlu0 0
        %555 = vperm.xlu0 %554, %v408
        %v556 = vpop.permute.xlu0 %555
        %559 = vset.pattern.permute.xlu0 0
        %560 = vperm.xlu0 %559, %v409
        %v561 = vpop.permute.xlu0 %560
        %564 = vset.pattern.permute.xlu0 0
        %565 = vperm.xlu0 %564, %v410
        %v566 = vpop.permute.xlu0 %565
        %569 = vset.pattern.permute.xlu0 0
        %570 = vperm.xlu0 %569, %v411
        %v571 = vpop.permute.xlu0 %570
        %574 = vset.pattern.permute.xlu0 0
        %575 = vperm.xlu0 %574, %v412
        %v576 = vpop.permute.xlu0 %575
        %579 = vset.pattern.permute.xlu0 0
        %580 = vperm.xlu0 %579, %v413
        %v581 = vpop.permute.xlu0 %580
        %584 = vset.pattern.permute.xlu0 0
        %585 = vperm.xlu0 %584, %v414
        %v586 = vpop.permute.xlu0 %585
        %589 = vset.pattern.permute.xlu0 0
        %590 = vperm.xlu0 %589, %v415
        %v591 = vpop.permute.xlu0 %590
        %594 = vset.pattern.permute.xlu0 0
        %595 = vperm.xlu0 %594, %v416
        %v596 = vpop.permute.xlu0 %595
        %599 = vset.pattern.permute.xlu0 0
        %600 = vperm.xlu0 %599, %v417
        %v601 = vpop.permute.xlu0 %600
        %604 = vset.pattern.permute.xlu0 0
        %605 = vperm.xlu0 %604, %v418
        %v606 = vpop.permute.xlu0 %605
        %609 = vset.pattern.permute.xlu0 0
        %610 = vperm.xlu0 %609, %v419
        %v611 = vpop.permute.xlu0 %610
        %614 = vset.pattern.permute.xlu0 0
        %615 = vperm.xlu0 %614, %v420
        %v616 = vpop.permute.xlu0 %615
        %619 = vset.pattern.permute.xlu0 0
        %620 = vperm.xlu0 %619, %v421
        %v621 = vpop.permute.xlu0 %620
        %624 = vset.pattern.permute.xlu0 0
        %625 = vperm.xlu0 %624, %v422
        %v626 = vpop.permute.xlu0 %625
        %629 = vset.pattern.permute.xlu0 0
        %630 = vperm.xlu0 %629, %v423
        %v631 = vpop.permute.xlu0 %630
        %634 = vset.pattern.permute.xlu0 0
        %635 = vperm.xlu0 %634, %v424
        %v636 = vpop.permute.xlu0 %635
        %639 = vset.pattern.permute.xlu0 0
        %640 = vperm.xlu0 %639, %v425
        %v641 = vpop.permute.xlu0 %640
        %644 = vset.pattern.permute.xlu0 0
        %645 = vperm.xlu0 %644, %v426
        %v646 = vpop.permute.xlu0 %645
        %649 = vset.pattern.permute.xlu0 0
        %650 = vperm.xlu0 %649, %v427
        %v651 = vpop.permute.xlu0 %650
        %654 = vset.pattern.permute.xlu0 0
        %655 = vperm.xlu0 %654, %v428
        %v656 = vpop.permute.xlu0 %655
        %659 = vset.pattern.permute.xlu0 0
        %660 = vperm.xlu0 %659, %v429
        %v661 = vpop.permute.xlu0 %660
        %664 = vset.pattern.permute.xlu0 0
        %665 = vperm.xlu0 %664, %v430
        %v666 = vpop.permute.xlu0 %665
        %669 = vset.pattern.permute.xlu0 0
        %670 = vperm.xlu0 %669, %v431
        %v671 = vpop.permute.xlu0 %670
        %674 = vset.pattern.permute.xlu0 0
        %675 = vperm.xlu0 %674, %v432
        %v676 = vpop.permute.xlu0 %675
        %679 = vset.pattern.permute.xlu0 0
        %680 = vperm.xlu0 %679, %v433
        %v681 = vpop.permute.xlu0 %680
        %684 = vset.pattern.permute.xlu0 0
        %685 = vperm.xlu0 %684, %v434
        %v686 = vpop.permute.xlu0 %685
        %689 = vset.pattern.permute.xlu0 0
        %690 = vperm.xlu0 %689, %v435
        %v691 = vpop.permute.xlu0 %690
        %694 = vset.pattern.permute.xlu0 0
        %695 = vperm.xlu0 %694, %v436
        %v696 = vpop.permute.xlu0 %695
        %699 = vset.pattern.permute.xlu0 0
        %700 = vperm.xlu0 %699, %v437
        %v701 = vpop.permute.xlu0 %700
        %704 = vset.pattern.permute.xlu0 0
        %705 = vperm.xlu0 %704, %v438
        %v706 = vpop.permute.xlu0 %705
        %709 = vset.pattern.permute.xlu0 0
        %710 = vperm.xlu0 %709, %v439
        %v711 = vpop.permute.xlu0 %710
        %714 = vset.pattern.permute.xlu0 0
        %715 = vperm.xlu0 %714, %v440
        %v716 = vpop.permute.xlu0 %715
        %719 = vset.pattern.permute.xlu0 0
        %720 = vperm.xlu0 %719, %v441
        %v721 = vpop.permute.xlu0 %720
        %724 = vset.pattern.permute.xlu0 0
        %725 = vperm.xlu0 %724, %v442
        %v726 = vpop.permute.xlu0 %725
        %729 = vset.pattern.permute.xlu0 0
        %730 = vperm.xlu0 %729, %v443
        %v731 = vpop.permute.xlu0 %730
        %734 = vset.pattern.permute.xlu0 0
        %735 = vperm.xlu0 %734, %v444
        %v736 = vpop.permute.xlu0 %735
        %739 = vset.pattern.permute.xlu0 0
        %740 = vperm.xlu0 %739, %v445
        %v741 = vpop.permute.xlu0 %740
        %744 = vset.pattern.permute.xlu0 0
        %745 = vperm.xlu0 %744, %v446
        %v746 = vpop.permute.xlu0 %745
        %749 = vset.pattern.permute.xlu0 0
        %750 = vperm.xlu0 %749, %v447
        %v751 = vpop.permute.xlu0 %750
        %754 = vset.pattern.permute.xlu0 0
        %755 = vperm.xlu0 %754, %v448
        %v756 = vpop.permute.xlu0 %755
        %759 = vset.pattern.permute.xlu0 0
        %760 = vperm.xlu0 %759, %v449
        %v761 = vpop.permute.xlu0 %760
        %764 = vset.pattern.permute.xlu0 0
        %765 = vperm.xlu0 %764, %v450
        %v766 = vpop.permute.xlu0 %765
        %769 = vset.pattern.permute.xlu0 0
        %770 = vperm.xlu0 %769, %v451
        %v771 = vpop.permute.xlu0 %770
        %v774 = vlaneseq
        %v775 = vshrl.u32 %v774, 7
        %v776 = vsub.s32 0, %v775
        %v777 = vrot.slane %v452, %v776
        %v779 = vmul.f32 %v456, %v777
        %v780 = vmul.f32 %v461, %v777
        %v781 = vmul.f32 %v466, %v777
        %v782 = vmul.f32 %v471, %v777
        %v783 = vmul.f32 %v476, %v777
        %v784 = vmul.f32 %v481, %v777
        %v785 = vmul.f32 %v486, %v777
        %v786 = vmul.f32 %v491, %v777
        %v787 = vmul.f32 %v496, %v777
        %v788 = vmul.f32 %v501, %v777
        %v789 = vmul.f32 %v506, %v777
        %v790 = vmul.f32 %v511, %v777
        %v791 = vmul.f32 %v516, %v777
        %v792 = vmul.f32 %v521, %v777
        %v793 = vmul.f32 %v526, %v777
        %v794 = vmul.f32 %v531, %v777
        %v795 = vmul.f32 %v536, %v777
        %v796 = vmul.f32 %v541, %v777
        %v797 = vmul.f32 %v546, %v777
        %v798 = vmul.f32 %v551, %v777
        %v799 = vmul.f32 %v556, %v777
        %v800 = vmul.f32 %v561, %v777
        %v801 = vmul.f32 %v566, %v777
        %v802 = vmul.f32 %v571, %v777
        %v803 = vmul.f32 %v576, %v777
        %v804 = vmul.f32 %v581, %v777
        %v805 = vmul.f32 %v586, %v777
        %v806 = vmul.f32 %v591, %v777
        %v807 = vmul.f32 %v596, %v777
        %v808 = vmul.f32 %v601, %v777
        %v809 = vmul.f32 %v606, %v777
        %v810 = vmul.f32 %v611, %v777
        %v811 = vmul.f32 %v616, %v777
        %v812 = vmul.f32 %v621, %v777
        %v813 = vmul.f32 %v626, %v777
        %v814 = vmul.f32 %v631, %v777
        %v815 = vmul.f32 %v636, %v777
        %v816 = vmul.f32 %v641, %v777
        %v817 = vmul.f32 %v646, %v777
        %v818 = vmul.f32 %v651, %v777
        %v819 = vmul.f32 %v656, %v777
        %v820 = vmul.f32 %v661, %v777
        %v821 = vmul.f32 %v666, %v777
        %v822 = vmul.f32 %v671, %v777
        %v823 = vmul.f32 %v676, %v777
        %v824 = vmul.f32 %v681, %v777
        %v825 = vmul.f32 %v686, %v777
        %v826 = vmul.f32 %v691, %v777
        %v827 = vmul.f32 %v696, %v777
        %v828 = vmul.f32 %v701, %v777
        %v829 = vmul.f32 %v706, %v777
        %v830 = vmul.f32 %v711, %v777
        %v831 = vmul.f32 %v716, %v777
        %v832 = vmul.f32 %v721, %v777
        %v833 = vmul.f32 %v726, %v777
        %v834 = vmul.f32 %v731, %v777
        %v835 = vmul.f32 %v736, %v777
        %v836 = vmul.f32 %v741, %v777
        %v837 = vmul.f32 %v746, %v777
        %v838 = vmul.f32 %v751, %v777
        %v839 = vmul.f32 %v756, %v777
        %v840 = vmul.f32 %v761, %v777
        %v841 = vmul.f32 %v766, %v777
        %v842 = vmul.f32 %v771, %v777
        %v843 = vld [vmem:[%s2] sm:$0x1]
        %v845 = vlaneseq
        %v846 = vshrl.u32 %v845, 7
        %v847 = vsub.s32 0, %v846
        %v848 = vrot.slane %v843, %v847
        %v850 = vadd.f32 %v779, %v848
        %v851 = vadd.f32 %v780, %v848
        %v852 = vadd.f32 %v781, %v848
        %v853 = vadd.f32 %v782, %v848
        %v854 = vadd.f32 %v783, %v848
        %v855 = vadd.f32 %v784, %v848
        %v856 = vadd.f32 %v785, %v848
        %v857 = vadd.f32 %v786, %v848
        %v858 = vadd.f32 %v787, %v848
        %v859 = vadd.f32 %v788, %v848
        %v860 = vadd.f32 %v789, %v848
        %v861 = vadd.f32 %v790, %v848
        %v862 = vadd.f32 %v791, %v848
        %v863 = vadd.f32 %v792, %v848
        %v864 = vadd.f32 %v793, %v848
        %v865 = vadd.f32 %v794, %v848
        %v866 = vadd.f32 %v795, %v848
        %v867 = vadd.f32 %v796, %v848
        %v868 = vadd.f32 %v797, %v848
        %v869 = vadd.f32 %v798, %v848
        %v870 = vadd.f32 %v799, %v848
        %v871 = vadd.f32 %v800, %v848
        %v872 = vadd.f32 %v801, %v848
        %v873 = vadd.f32 %v802, %v848
        %v874 = vadd.f32 %v803, %v848
        %v875 = vadd.f32 %v804, %v848
        %v876 = vadd.f32 %v805, %v848
        %v877 = vadd.f32 %v806, %v848
        %v878 = vadd.f32 %v807, %v848
        %v879 = vadd.f32 %v808, %v848
        %v880 = vadd.f32 %v809, %v848
        %v881 = vadd.f32 %v810, %v848
        %v882 = vadd.f32 %v811, %v848
        %v883 = vadd.f32 %v812, %v848
        %v884 = vadd.f32 %v813, %v848
        %v885 = vadd.f32 %v814, %v848
        %v886 = vadd.f32 %v815, %v848
        %v887 = vadd.f32 %v816, %v848
        %v888 = vadd.f32 %v817, %v848
        %v889 = vadd.f32 %v818, %v848
        %v890 = vadd.f32 %v819, %v848
        %v891 = vadd.f32 %v820, %v848
        %v892 = vadd.f32 %v821, %v848
        %v893 = vadd.f32 %v822, %v848
        %v894 = vadd.f32 %v823, %v848
        %v895 = vadd.f32 %v824, %v848
        %v896 = vadd.f32 %v825, %v848
        %v897 = vadd.f32 %v826, %v848
        %v898 = vadd.f32 %v827, %v848
        %v899 = vadd.f32 %v828, %v848
        %v900 = vadd.f32 %v829, %v848
        %v901 = vadd.f32 %v830, %v848
        %v902 = vadd.f32 %v831, %v848
        %v903 = vadd.f32 %v832, %v848
        %v904 = vadd.f32 %v833, %v848
        %v905 = vadd.f32 %v834, %v848
        %v906 = vadd.f32 %v835, %v848
        %v907 = vadd.f32 %v836, %v848
        %v908 = vadd.f32 %v837, %v848
        %v909 = vadd.f32 %v838, %v848
        %v910 = vadd.f32 %v839, %v848
        %v911 = vadd.f32 %v840, %v848
        %v912 = vadd.f32 %v841, %v848
        %v913 = vadd.f32 %v842, %v848
        %v914 = vmul.f32 %v850, 0.5
        %v915 = vmul.f32 %v851, 0.5
        %v916 = vmul.f32 %v852, 0.5
        %v917 = vmul.f32 %v853, 0.5
        %v918 = vmul.f32 %v854, 0.5
        %v919 = vmul.f32 %v855, 0.5
        %v920 = vmul.f32 %v856, 0.5
        %v921 = vmul.f32 %v857, 0.5
        %v922 = vmul.f32 %v858, 0.5
        %v923 = vmul.f32 %v859, 0.5
        %v924 = vmul.f32 %v860, 0.5
        %v925 = vmul.f32 %v861, 0.5
        %v926 = vmul.f32 %v862, 0.5
        %v927 = vmul.f32 %v863, 0.5
        %v928 = vmul.f32 %v864, 0.5
        %v929 = vmul.f32 %v865, 0.5
        %v930 = vmul.f32 %v866, 0.5
        %v931 = vmul.f32 %v867, 0.5
        %v932 = vmul.f32 %v868, 0.5
        %v933 = vmul.f32 %v869, 0.5
        %v934 = vmul.f32 %v870, 0.5
        %v935 = vmul.f32 %v871, 0.5
        %v936 = vmul.f32 %v872, 0.5
        %v937 = vmul.f32 %v873, 0.5
        %v938 = vmul.f32 %v874, 0.5
        %v939 = vmul.f32 %v875, 0.5
        %v940 = vmul.f32 %v876, 0.5
        %v941 = vmul.f32 %v877, 0.5
        %v942 = vmul.f32 %v878, 0.5
        %v943 = vmul.f32 %v879, 0.5
        %v944 = vmul.f32 %v880, 0.5
        %v945 = vmul.f32 %v881, 0.5
        %v946 = vmul.f32 %v882, 0.5
        %v947 = vmul.f32 %v883, 0.5
        %v948 = vmul.f32 %v884, 0.5
        %v949 = vmul.f32 %v885, 0.5
        %v950 = vmul.f32 %v886, 0.5
        %v951 = vmul.f32 %v887, 0.5
        %v952 = vmul.f32 %v888, 0.5
        %v953 = vmul.f32 %v889, 0.5
        %v954 = vmul.f32 %v890, 0.5
        %v955 = vmul.f32 %v891, 0.5
        %v956 = vmul.f32 %v892, 0.5
        %v957 = vmul.f32 %v893, 0.5
        %v958 = vmul.f32 %v894, 0.5
        %v959 = vmul.f32 %v895, 0.5
        %v960 = vmul.f32 %v896, 0.5
        %v961 = vmul.f32 %v897, 0.5
        %v962 = vmul.f32 %v898, 0.5
        %v963 = vmul.f32 %v899, 0.5
        %v964 = vmul.f32 %v900, 0.5
        %v965 = vmul.f32 %v901, 0.5
        %v966 = vmul.f32 %v902, 0.5
        %v967 = vmul.f32 %v903, 0.5
        %v968 = vmul.f32 %v904, 0.5
        %v969 = vmul.f32 %v905, 0.5
        %v970 = vmul.f32 %v906, 0.5
        %v971 = vmul.f32 %v907, 0.5
        %v972 = vmul.f32 %v908, 0.5
        %v973 = vmul.f32 %v909, 0.5
        %v974 = vmul.f32 %v910, 0.5
        %v975 = vmul.f32 %v911, 0.5
        %v976 = vmul.f32 %v912, 0.5
        %v977 = vmul.f32 %v913, 0.5
        %v978 = vtanh.pop %v914
        %v979 = vtanh.pop %v915
        %v980 = vtanh.pop %v916
        %v981 = vtanh.pop %v917
        %v982 = vtanh.pop %v918
        %v983 = vtanh.pop %v919
        %v984 = vtanh.pop %v920
        %v985 = vtanh.pop %v921
        %v986 = vtanh.pop %v922
        %v987 = vtanh.pop %v923
        %v988 = vtanh.pop %v924
        %v989 = vtanh.pop %v925
        %v990 = vtanh.pop %v926
        %v991 = vtanh.pop %v927
        %v992 = vtanh.pop %v928
        %v993 = vtanh.pop %v929
        %v994 = vtanh.pop %v930
        %v995 = vtanh.pop %v931
        %v996 = vtanh.pop %v932
        %v997 = vtanh.pop %v933
        %v998 = vtanh.pop %v934
        %v999 = vtanh.pop %v935
        %v1000 = vtanh.pop %v936
        %v1001 = vtanh.pop %v937
        %v1002 = vtanh.pop %v938
        %v1003 = vtanh.pop %v939
        %v1004 = vtanh.pop %v940
        %v1005 = vtanh.pop %v941
        %v1006 = vtanh.pop %v942
        %v1007 = vtanh.pop %v943
        %v1008 = vtanh.pop %v944
        %v1009 = vtanh.pop %v945
        %v1010 = vtanh.pop %v946
        %v1011 = vtanh.pop %v947
        %v1012 = vtanh.pop %v948
        %v1013 = vtanh.pop %v949
        %v1014 = vtanh.pop %v950
        %v1015 = vtanh.pop %v951
        %v1016 = vtanh.pop %v952
        %v1017 = vtanh.pop %v953
        %v1018 = vtanh.pop %v954
        %v1019 = vtanh.pop %v955
        %v1020 = vtanh.pop %v956
        %v1021 = vtanh.pop %v957
        %v1022 = vtanh.pop %v958
        %v1023 = vtanh.pop %v959
        %v1024 = vtanh.pop %v960
        %v1025 = vtanh.pop %v961
        %v1026 = vtanh.pop %v962
        %v1027 = vtanh.pop %v963
        %v1028 = vtanh.pop %v964
        %v1029 = vtanh.pop %v965
        %v1030 = vtanh.pop %v966
        %v1031 = vtanh.pop %v967
        %v1032 = vtanh.pop %v968
        %v1033 = vtanh.pop %v969
        %v1034 = vtanh.pop %v970
        %v1035 = vtanh.pop %v971
        %v1036 = vtanh.pop %v972
        %v1037 = vtanh.pop %v973
        %v1038 = vtanh.pop %v974
        %v1039 = vtanh.pop %v975
        %v1040 = vtanh.pop %v976
        %v1041 = vtanh.pop %v977
        %v1042 = vmul.f32 %v978, 0.5
        %v1043 = vmul.f32 %v979, 0.5
        %v1044 = vmul.f32 %v980, 0.5
        %v1045 = vmul.f32 %v981, 0.5
        %v1046 = vmul.f32 %v982, 0.5
        %v1047 = vmul.f32 %v983, 0.5
        %v1048 = vmul.f32 %v984, 0.5
        %v1049 = vmul.f32 %v985, 0.5
        %v1050 = vmul.f32 %v986, 0.5
        %v1051 = vmul.f32 %v987, 0.5
        %v1052 = vmul.f32 %v988, 0.5
        %v1053 = vmul.f32 %v989, 0.5
        %v1054 = vmul.f32 %v990, 0.5
        %v1055 = vmul.f32 %v991, 0.5
        %v1056 = vmul.f32 %v992, 0.5
        %v1057 = vmul.f32 %v993, 0.5
        %v1058 = vmul.f32 %v994, 0.5
        %v1059 = vmul.f32 %v995, 0.5
        %v1060 = vmul.f32 %v996, 0.5
        %v1061 = vmul.f32 %v997, 0.5
        %v1062 = vmul.f32 %v998, 0.5
        %v1063 = vmul.f32 %v999, 0.5
        %v1064 = vmul.f32 %v1000, 0.5
        %v1065 = vmul.f32 %v1001, 0.5
        %v1066 = vmul.f32 %v1002, 0.5
        %v1067 = vmul.f32 %v1003, 0.5
        %v1068 = vmul.f32 %v1004, 0.5
        %v1069 = vmul.f32 %v1005, 0.5
        %v1070 = vmul.f32 %v1006, 0.5
        %v1071 = vmul.f32 %v1007, 0.5
        %v1072 = vmul.f32 %v1008, 0.5
        %v1073 = vmul.f32 %v1009, 0.5
        %v1074 = vmul.f32 %v1010, 0.5
        %v1075 = vmul.f32 %v1011, 0.5
        %v1076 = vmul.f32 %v1012, 0.5
        %v1077 = vmul.f32 %v1013, 0.5
        %v1078 = vmul.f32 %v1014, 0.5
        %v1079 = vmul.f32 %v1015, 0.5
        %v1080 = vmul.f32 %v1016, 0.5
        %v1081 = vmul.f32 %v1017, 0.5
        %v1082 = vmul.f32 %v1018, 0.5
        %v1083 = vmul.f32 %v1019, 0.5
        %v1084 = vmul.f32 %v1020, 0.5
        %v1085 = vmul.f32 %v1021, 0.5
        %v1086 = vmul.f32 %v1022, 0.5
        %v1087 = vmul.f32 %v1023, 0.5
        %v1088 = vmul.f32 %v1024, 0.5
        %v1089 = vmul.f32 %v1025, 0.5
        %v1090 = vmul.f32 %v1026, 0.5
        %v1091 = vmul.f32 %v1027, 0.5
        %v1092 = vmul.f32 %v1028, 0.5
        %v1093 = vmul.f32 %v1029, 0.5
        %v1094 = vmul.f32 %v1030, 0.5
        %v1095 = vmul.f32 %v1031, 0.5
        %v1096 = vmul.f32 %v1032, 0.5
        %v1097 = vmul.f32 %v1033, 0.5
        %v1098 = vmul.f32 %v1034, 0.5
        %v1099 = vmul.f32 %v1035, 0.5
        %v1100 = vmul.f32 %v1036, 0.5
        %v1101 = vmul.f32 %v1037, 0.5
        %v1102 = vmul.f32 %v1038, 0.5
        %v1103 = vmul.f32 %v1039, 0.5
        %v1104 = vmul.f32 %v1040, 0.5
        %v1105 = vmul.f32 %v1041, 0.5
        %v1106 = vadd.f32 %v1042, 0.5
        %v1107 = vadd.f32 %v1043, 0.5
        %v1108 = vadd.f32 %v1044, 0.5
        %v1109 = vadd.f32 %v1045, 0.5
        %v1110 = vadd.f32 %v1046, 0.5
        %v1111 = vadd.f32 %v1047, 0.5
        %v1112 = vadd.f32 %v1048, 0.5
        %v1113 = vadd.f32 %v1049, 0.5
        %v1114 = vadd.f32 %v1050, 0.5
        %v1115 = vadd.f32 %v1051, 0.5
        %v1116 = vadd.f32 %v1052, 0.5
        %v1117 = vadd.f32 %v1053, 0.5
        %v1118 = vadd.f32 %v1054, 0.5
        %v1119 = vadd.f32 %v1055, 0.5
        %v1120 = vadd.f32 %v1056, 0.5
        %v1121 = vadd.f32 %v1057, 0.5
        %v1122 = vadd.f32 %v1058, 0.5
        %v1123 = vadd.f32 %v1059, 0.5
        %v1124 = vadd.f32 %v1060, 0.5
        %v1125 = vadd.f32 %v1061, 0.5
        %v1126 = vadd.f32 %v1062, 0.5
        %v1127 = vadd.f32 %v1063, 0.5
        %v1128 = vadd.f32 %v1064, 0.5
        %v1129 = vadd.f32 %v1065, 0.5
        %v1130 = vadd.f32 %v1066, 0.5
        %v1131 = vadd.f32 %v1067, 0.5
        %v1132 = vadd.f32 %v1068, 0.5
        %v1133 = vadd.f32 %v1069, 0.5
        %v1134 = vadd.f32 %v1070, 0.5
        %v1135 = vadd.f32 %v1071, 0.5
        %v1136 = vadd.f32 %v1072, 0.5
        %v1137 = vadd.f32 %v1073, 0.5
        %v1138 = vadd.f32 %v1074, 0.5
        %v1139 = vadd.f32 %v1075, 0.5
        %v1140 = vadd.f32 %v1076, 0.5
        %v1141 = vadd.f32 %v1077, 0.5
        %v1142 = vadd.f32 %v1078, 0.5
        %v1143 = vadd.f32 %v1079, 0.5
        %v1144 = vadd.f32 %v1080, 0.5
        %v1145 = vadd.f32 %v1081, 0.5
        %v1146 = vadd.f32 %v1082, 0.5
        %v1147 = vadd.f32 %v1083, 0.5
        %v1148 = vadd.f32 %v1084, 0.5
        %v1149 = vadd.f32 %v1085, 0.5
        %v1150 = vadd.f32 %v1086, 0.5
        %v1151 = vadd.f32 %v1087, 0.5
        %v1152 = vadd.f32 %v1088, 0.5
        %v1153 = vadd.f32 %v1089, 0.5
        %v1154 = vadd.f32 %v1090, 0.5
        %v1155 = vadd.f32 %v1091, 0.5
        %v1156 = vadd.f32 %v1092, 0.5
        %v1157 = vadd.f32 %v1093, 0.5
        %v1158 = vadd.f32 %v1094, 0.5
        %v1159 = vadd.f32 %v1095, 0.5
        %v1160 = vadd.f32 %v1096, 0.5
        %v1161 = vadd.f32 %v1097, 0.5
        %v1162 = vadd.f32 %v1098, 0.5
        %v1163 = vadd.f32 %v1099, 0.5
        %v1164 = vadd.f32 %v1100, 0.5
        %v1165 = vadd.f32 %v1101, 0.5
        %v1166 = vadd.f32 %v1102, 0.5
        %v1167 = vadd.f32 %v1103, 0.5
        %v1168 = vadd.f32 %v1104, 0.5
        %v1169 = vadd.f32 %v1105, 0.5
        %v1170 = vld [vmem:[%s3] sm:$0xff]
        %v1171 = vld [vmem:[%s3 + $0x8] sm:$0xff]
        %v1172 = vld [vmem:[%s3 + $0x10] sm:$0xff]
        %v1173 = vld [vmem:[%s3 + $0x18] sm:$0xff]
        %v1174 = vld [vmem:[%s3 + $0x20] sm:$0xff]
        %v1175 = vld [vmem:[%s3 + $0x28] sm:$0xff]
        %v1176 = vld [vmem:[%s3 + $0x30] sm:$0xff]
        %v1177 = vld [vmem:[%s3 + $0x38] sm:$0xff]
        %v1178 = vld [vmem:[%s3 + $0x40] sm:$0xff]
        %v1179 = vld [vmem:[%s3 + $0x48] sm:$0xff]
        %v1180 = vld [vmem:[%s3 + $0x50] sm:$0xff]
        %v1181 = vld [vmem:[%s3 + $0x58] sm:$0xff]
        %v1182 = vld [vmem:[%s3 + $0x60] sm:$0xff]
        %v1183 = vld [vmem:[%s3 + $0x68] sm:$0xff]
        %v1184 = vld [vmem:[%s3 + $0x70] sm:$0xff]
        %v1185 = vld [vmem:[%s3 + $0x78] sm:$0xff]
        %v1186 = vld [vmem:[%s4] sm:$0x1]
        %v1188 = vlaneseq
        %v1189 = vshrl.u32 %v1188, 7
        %v1190 = vsub.s32 0, %v1189
        %v1191 = vrot.slane %v1186, %v1190
        %1193 = vmatprep.subr.mxu0 0.0
        %1194 = vmatpush1.msra.mxu0 %v1185
        %1195 = vmatprep.subr.mxu0 0.0
        %1196 = vmatpush1.msra.mxu0 %v1184
        %1197 = vmatprep.subr.mxu0 0.0
        %1198 = vmatpush1.msra.mxu0 %v1183
        %1199 = vmatprep.subr.mxu0 0.0
        %1200 = vmatpush1.msra.mxu0 %v1182
        %1201 = vmatprep.subr.mxu0 0.0
        %1202 = vmatpush1.msra.mxu0 %v1181
        %1203 = vmatprep.subr.mxu0 0.0
        %1204 = vmatpush1.msra.mxu0 %v1180
        %1205 = vmatprep.subr.mxu0 0.0
        %1206 = vmatpush1.msra.mxu0 %v1179
        %1207 = vmatprep.subr.mxu0 0.0
        %1208 = vmatpush1.msra.mxu0 %v1178
        %1209 = vmatprep.subr.mxu0 0.0
        %1210 = vmatpush1.msra.mxu0 %v1177
        %1211 = vmatprep.subr.mxu0 0.0
        %1212 = vmatpush1.msra.mxu0 %v1176
        %1213 = vmatprep.subr.mxu0 0.0
        %1214 = vmatpush1.msra.mxu0 %v1175
        %1215 = vmatprep.subr.mxu0 0.0
        %1216 = vmatpush1.msra.mxu0 %v1174
        %1217 = vmatprep.subr.mxu0 0.0
        %1218 = vmatpush1.msra.mxu0 %v1173
        %1219 = vmatprep.subr.mxu0 0.0
        %1220 = vmatpush1.msra.mxu0 %v1172
        %1221 = vmatprep.subr.mxu0 0.0
        %1222 = vmatpush1.msra.mxu0 %v1171
        %1223 = vmatprep.subr.mxu0 0.0
        %1224 = vmatpush1.msra.mxu0 %v1170
        %1225 = vmatprep.subr.mxu0 0.0
        %1226 = vmatpush2.msra.mxu0 0.0
        %1227 = vmatprep.subr.mxu0 0.0
        %1228 = vmatpush2.msra.mxu0 0.0
        %1229 = vmatprep.subr.mxu0 0.0
        %1230 = vmatpush2.msra.mxu0 0.0
        %1231 = vmatprep.subr.mxu0 0.0
        %1232 = vmatpush2.msra.mxu0 0.0
        %1233 = vmatprep.subr.mxu0 0.0
        %1234 = vmatpush2.msra.mxu0 0.0
        %1235 = vmatprep.subr.mxu0 0.0
        %1236 = vmatpush2.msra.mxu0 0.0
        %1237 = vmatprep.subr.mxu0 0.0
        %1238 = vmatpush2.msra.mxu0 0.0
        %1239 = vmatprep.subr.mxu0 0.0
        %1240 = vmatpush2.msra.mxu0 0.0
        %1241 = vmatprep.subr.mxu0 0.0
        %1242 = vmatpush2.msra.mxu0 0.0
        %1243 = vmatprep.subr.mxu0 0.0
        %1244 = vmatpush2.msra.mxu0 0.0
        %1245 = vmatprep.subr.mxu0 0.0
        %1246 = vmatpush2.msra.mxu0 0.0
        %1247 = vmatprep.subr.mxu0 0.0
        %1248 = vmatpush2.msra.mxu0 0.0
        %1249 = vmatprep.subr.mxu0 0.0
        %1250 = vmatpush2.msra.mxu0 0.0
        %1251 = vmatprep.subr.mxu0 0.0
        %1252 = vmatpush2.msra.mxu0 0.0
        %1253 = vmatprep.subr.mxu0 0.0
        %1254 = vmatpush2.msra.mxu0 0.0
        %1255 = vmatprep.subr.mxu0 0.0
        %1256 = vmatpush2.msra.mxu0 0.0
        %1257 = vmatprep.mubr.f32.mxu0 0.0
        %1258 = vmatmul.mubr.f32.gmra.mxu0 %v1106
        %v1259 = vpop.f32.mrf.mxu0
        %v1260 = vadd.f32 %v1191, %v1259
        %v1261 = vpop.f32.mrf.mxu0
        %1262 = vmatprep.mubr.f32.mxu0 0.0
        %1263 = vmatmul.mubr.f32.gmra.mxu0 %v1107
        %v1264 = vpop.f32.mrf.mxu0
        %v1265 = vadd.f32 %v1191, %v1264
        %v1266 = vpop.f32.mrf.mxu0
        %1267 = vmatprep.mubr.f32.mxu0 0.0
        %1268 = vmatmul.mubr.f32.gmra.mxu0 %v1108
        %v1269 = vpop.f32.mrf.mxu0
        %v1270 = vadd.f32 %v1191, %v1269
        %v1271 = vpop.f32.mrf.mxu0
        %1272 = vmatprep.mubr.f32.mxu0 0.0
        %1273 = vmatmul.mubr.f32.gmra.mxu0 %v1109
        %v1274 = vpop.f32.mrf.mxu0
        %v1275 = vadd.f32 %v1191, %v1274
        %v1276 = vpop.f32.mrf.mxu0
        %1277 = vmatprep.mubr.f32.mxu0 0.0
        %1278 = vmatmul.mubr.f32.gmra.mxu0 %v1110
        %v1279 = vpop.f32.mrf.mxu0
        %v1280 = vadd.f32 %v1191, %v1279
        %v1281 = vpop.f32.mrf.mxu0
        %1282 = vmatprep.mubr.f32.mxu0 0.0
        %1283 = vmatmul.mubr.f32.gmra.mxu0 %v1111
        %v1284 = vpop.f32.mrf.mxu0
        %v1285 = vadd.f32 %v1191, %v1284
        %v1286 = vpop.f32.mrf.mxu0
        %1287 = vmatprep.mubr.f32.mxu0 0.0
        %1288 = vmatmul.mubr.f32.gmra.mxu0 %v1112
        %v1289 = vpop.f32.mrf.mxu0
        %v1290 = vadd.f32 %v1191, %v1289
        %v1291 = vpop.f32.mrf.mxu0
        %1292 = vmatprep.mubr.f32.mxu0 0.0
        %1293 = vmatmul.mubr.f32.gmra.mxu0 %v1113
        %v1294 = vpop.f32.mrf.mxu0
        %v1295 = vadd.f32 %v1191, %v1294
        %v1296 = vpop.f32.mrf.mxu0
        %1297 = vmatprep.mubr.f32.mxu0 0.0
        %1298 = vmatmul.mubr.f32.gmra.mxu0 %v1114
        %v1299 = vpop.f32.mrf.mxu0
        %v1300 = vadd.f32 %v1191, %v1299
        %v1301 = vpop.f32.mrf.mxu0
        %1302 = vmatprep.mubr.f32.mxu0 0.0
        %1303 = vmatmul.mubr.f32.gmra.mxu0 %v1115
        %v1304 = vpop.f32.mrf.mxu0
        %v1305 = vadd.f32 %v1191, %v1304
        %v1306 = vpop.f32.mrf.mxu0
        %1307 = vmatprep.mubr.f32.mxu0 0.0
        %1308 = vmatmul.mubr.f32.gmra.mxu0 %v1116
        %v1309 = vpop.f32.mrf.mxu0
        %v1310 = vadd.f32 %v1191, %v1309
        %v1311 = vpop.f32.mrf.mxu0
        %1312 = vmatprep.mubr.f32.mxu0 0.0
        %1313 = vmatmul.mubr.f32.gmra.mxu0 %v1117
        %v1314 = vpop.f32.mrf.mxu0
        %v1315 = vadd.f32 %v1191, %v1314
        %v1316 = vpop.f32.mrf.mxu0
        %1317 = vmatprep.mubr.f32.mxu0 0.0
        %1318 = vmatmul.mubr.f32.gmra.mxu0 %v1118
        %v1319 = vpop.f32.mrf.mxu0
        %v1320 = vadd.f32 %v1191, %v1319
        %v1321 = vpop.f32.mrf.mxu0
        %1322 = vmatprep.mubr.f32.mxu0 0.0
        %1323 = vmatmul.mubr.f32.gmra.mxu0 %v1119
        %v1324 = vpop.f32.mrf.mxu0
        %v1325 = vadd.f32 %v1191, %v1324
        %v1326 = vpop.f32.mrf.mxu0
        %1327 = vmatprep.mubr.f32.mxu0 0.0
        %1328 = vmatmul.mubr.f32.gmra.mxu0 %v1120
        %v1329 = vpop.f32.mrf.mxu0
        %v1330 = vadd.f32 %v1191, %v1329
        %v1331 = vpop.f32.mrf.mxu0
        %1332 = vmatprep.mubr.f32.mxu0 0.0
        %1333 = vmatmul.mubr.f32.gmra.mxu0 %v1121
        %v1334 = vpop.f32.mrf.mxu0
        %v1335 = vadd.f32 %v1191, %v1334
        %v1336 = vpop.f32.mrf.mxu0
        %1337 = vmatprep.mubr.f32.mxu0 0.0
        %1338 = vmatmul.mubr.f32.gmra.mxu0 %v1122
        %v1339 = vpop.f32.mrf.mxu0
        %v1340 = vadd.f32 %v1191, %v1339
        %v1341 = vpop.f32.mrf.mxu0
        %1342 = vmatprep.mubr.f32.mxu0 0.0
        %1343 = vmatmul.mubr.f32.gmra.mxu0 %v1123
        %v1344 = vpop.f32.mrf.mxu0
        %v1345 = vadd.f32 %v1191, %v1344
        %v1346 = vpop.f32.mrf.mxu0
        %1347 = vmatprep.mubr.f32.mxu0 0.0
        %1348 = vmatmul.mubr.f32.gmra.mxu0 %v1124
        %v1349 = vpop.f32.mrf.mxu0
        %v1350 = vadd.f32 %v1191, %v1349
        %v1351 = vpop.f32.mrf.mxu0
        %1352 = vmatprep.mubr.f32.mxu0 0.0
        %1353 = vmatmul.mubr.f32.gmra.mxu0 %v1125
        %v1354 = vpop.f32.mrf.mxu0
        %v1355 = vadd.f32 %v1191, %v1354
        %v1356 = vpop.f32.mrf.mxu0
        %1357 = vmatprep.mubr.f32.mxu0 0.0
        %1358 = vmatmul.mubr.f32.gmra.mxu0 %v1126
        %v1359 = vpop.f32.mrf.mxu0
        %v1360 = vadd.f32 %v1191, %v1359
        %v1361 = vpop.f32.mrf.mxu0
        %1362 = vmatprep.mubr.f32.mxu0 0.0
        %1363 = vmatmul.mubr.f32.gmra.mxu0 %v1127
        %v1364 = vpop.f32.mrf.mxu0
        %v1365 = vadd.f32 %v1191, %v1364
        %v1366 = vpop.f32.mrf.mxu0
        %1367 = vmatprep.mubr.f32.mxu0 0.0
        %1368 = vmatmul.mubr.f32.gmra.mxu0 %v1128
        %v1369 = vpop.f32.mrf.mxu0
        %v1370 = vadd.f32 %v1191, %v1369
        %v1371 = vpop.f32.mrf.mxu0
        %1372 = vmatprep.mubr.f32.mxu0 0.0
        %1373 = vmatmul.mubr.f32.gmra.mxu0 %v1129
        %v1374 = vpop.f32.mrf.mxu0
        %v1375 = vadd.f32 %v1191, %v1374
        %v1376 = vpop.f32.mrf.mxu0
        %1377 = vmatprep.mubr.f32.mxu0 0.0
        %1378 = vmatmul.mubr.f32.gmra.mxu0 %v1130
        %v1379 = vpop.f32.mrf.mxu0
        %v1380 = vadd.f32 %v1191, %v1379
        %v1381 = vpop.f32.mrf.mxu0
        %1382 = vmatprep.mubr.f32.mxu0 0.0
        %1383 = vmatmul.mubr.f32.gmra.mxu0 %v1131
        %v1384 = vpop.f32.mrf.mxu0
        %v1385 = vadd.f32 %v1191, %v1384
        %v1386 = vpop.f32.mrf.mxu0
        %1387 = vmatprep.mubr.f32.mxu0 0.0
        %1388 = vmatmul.mubr.f32.gmra.mxu0 %v1132
        %v1389 = vpop.f32.mrf.mxu0
        %v1390 = vadd.f32 %v1191, %v1389
        %v1391 = vpop.f32.mrf.mxu0
        %1392 = vmatprep.mubr.f32.mxu0 0.0
        %1393 = vmatmul.mubr.f32.gmra.mxu0 %v1133
        %v1394 = vpop.f32.mrf.mxu0
        %v1395 = vadd.f32 %v1191, %v1394
        %v1396 = vpop.f32.mrf.mxu0
        %1397 = vmatprep.mubr.f32.mxu0 0.0
        %1398 = vmatmul.mubr.f32.gmra.mxu0 %v1134
        %v1399 = vpop.f32.mrf.mxu0
        %v1400 = vadd.f32 %v1191, %v1399
        %v1401 = vpop.f32.mrf.mxu0
        %1402 = vmatprep.mubr.f32.mxu0 0.0
        %1403 = vmatmul.mubr.f32.gmra.mxu0 %v1135
        %v1404 = vpop.f32.mrf.mxu0
        %v1405 = vadd.f32 %v1191, %v1404
        %v1406 = vpop.f32.mrf.mxu0
        %1407 = vmatprep.mubr.f32.mxu0 0.0
        %1408 = vmatmul.mubr.f32.gmra.mxu0 %v1136
        %v1409 = vpop.f32.mrf.mxu0
        %v1410 = vadd.f32 %v1191, %v1409
        %v1411 = vpop.f32.mrf.mxu0
        %1412 = vmatprep.mubr.f32.mxu0 0.0
        %1413 = vmatmul.mubr.f32.gmra.mxu0 %v1137
        %v1414 = vpop.f32.mrf.mxu0
        %v1415 = vadd.f32 %v1191, %v1414
        %v1416 = vpop.f32.mrf.mxu0
        %1417 = vmatprep.mubr.f32.mxu0 0.0
        %1418 = vmatmul.mubr.f32.gmra.mxu0 %v1138
        %v1419 = vpop.f32.mrf.mxu0
        %v1420 = vadd.f32 %v1191, %v1419
        %v1421 = vpop.f32.mrf.mxu0
        %1422 = vmatprep.mubr.f32.mxu0 0.0
        %1423 = vmatmul.mubr.f32.gmra.mxu0 %v1139
        %v1424 = vpop.f32.mrf.mxu0
        %v1425 = vadd.f32 %v1191, %v1424
        %v1426 = vpop.f32.mrf.mxu0
        %1427 = vmatprep.mubr.f32.mxu0 0.0
        %1428 = vmatmul.mubr.f32.gmra.mxu0 %v1140
        %v1429 = vpop.f32.mrf.mxu0
        %v1430 = vadd.f32 %v1191, %v1429
        %v1431 = vpop.f32.mrf.mxu0
        %1432 = vmatprep.mubr.f32.mxu0 0.0
        %1433 = vmatmul.mubr.f32.gmra.mxu0 %v1141
        %v1434 = vpop.f32.mrf.mxu0
        %v1435 = vadd.f32 %v1191, %v1434
        %v1436 = vpop.f32.mrf.mxu0
        %1437 = vmatprep.mubr.f32.mxu0 0.0
        %1438 = vmatmul.mubr.f32.gmra.mxu0 %v1142
        %v1439 = vpop.f32.mrf.mxu0
        %v1440 = vadd.f32 %v1191, %v1439
        %v1441 = vpop.f32.mrf.mxu0
        %1442 = vmatprep.mubr.f32.mxu0 0.0
        %1443 = vmatmul.mubr.f32.gmra.mxu0 %v1143
        %v1444 = vpop.f32.mrf.mxu0
        %v1445 = vadd.f32 %v1191, %v1444
        %v1446 = vpop.f32.mrf.mxu0
        %1447 = vmatprep.mubr.f32.mxu0 0.0
        %1448 = vmatmul.mubr.f32.gmra.mxu0 %v1144
        %v1449 = vpop.f32.mrf.mxu0
        %v1450 = vadd.f32 %v1191, %v1449
        %v1451 = vpop.f32.mrf.mxu0
        %1452 = vmatprep.mubr.f32.mxu0 0.0
        %1453 = vmatmul.mubr.f32.gmra.mxu0 %v1145
        %v1454 = vpop.f32.mrf.mxu0
        %v1455 = vadd.f32 %v1191, %v1454
        %v1456 = vpop.f32.mrf.mxu0
        %1457 = vmatprep.mubr.f32.mxu0 0.0
        %1458 = vmatmul.mubr.f32.gmra.mxu0 %v1146
        %v1459 = vpop.f32.mrf.mxu0
        %v1460 = vadd.f32 %v1191, %v1459
        %v1461 = vpop.f32.mrf.mxu0
        %1462 = vmatprep.mubr.f32.mxu0 0.0
        %1463 = vmatmul.mubr.f32.gmra.mxu0 %v1147
        %v1464 = vpop.f32.mrf.mxu0
        %v1465 = vadd.f32 %v1191, %v1464
        %v1466 = vpop.f32.mrf.mxu0
        %1467 = vmatprep.mubr.f32.mxu0 0.0
        %1468 = vmatmul.mubr.f32.gmra.mxu0 %v1148
        %v1469 = vpop.f32.mrf.mxu0
        %v1470 = vadd.f32 %v1191, %v1469
        %v1471 = vpop.f32.mrf.mxu0
        %1472 = vmatprep.mubr.f32.mxu0 0.0
        %1473 = vmatmul.mubr.f32.gmra.mxu0 %v1149
        %v1474 = vpop.f32.mrf.mxu0
        %v1475 = vadd.f32 %v1191, %v1474
        %v1476 = vpop.f32.mrf.mxu0
        %1477 = vmatprep.mubr.f32.mxu0 0.0
        %1478 = vmatmul.mubr.f32.gmra.mxu0 %v1150
        %v1479 = vpop.f32.mrf.mxu0
        %v1480 = vadd.f32 %v1191, %v1479
        %v1481 = vpop.f32.mrf.mxu0
        %1482 = vmatprep.mubr.f32.mxu0 0.0
        %1483 = vmatmul.mubr.f32.gmra.mxu0 %v1151
        %v1484 = vpop.f32.mrf.mxu0
        %v1485 = vadd.f32 %v1191, %v1484
        %v1486 = vpop.f32.mrf.mxu0
        %1487 = vmatprep.mubr.f32.mxu0 0.0
        %1488 = vmatmul.mubr.f32.gmra.mxu0 %v1152
        %v1489 = vpop.f32.mrf.mxu0
        %v1490 = vadd.f32 %v1191, %v1489
        %v1491 = vpop.f32.mrf.mxu0
        %1492 = vmatprep.mubr.f32.mxu0 0.0
        %1493 = vmatmul.mubr.f32.gmra.mxu0 %v1153
        %v1494 = vpop.f32.mrf.mxu0
        %v1495 = vadd.f32 %v1191, %v1494
        %v1496 = vpop.f32.mrf.mxu0
        %1497 = vmatprep.mubr.f32.mxu0 0.0
        %1498 = vmatmul.mubr.f32.gmra.mxu0 %v1154
        %v1499 = vpop.f32.mrf.mxu0
        %v1500 = vadd.f32 %v1191, %v1499
        %v1501 = vpop.f32.mrf.mxu0
        %1502 = vmatprep.mubr.f32.mxu0 0.0
        %1503 = vmatmul.mubr.f32.gmra.mxu0 %v1155
        %v1504 = vpop.f32.mrf.mxu0
        %v1505 = vadd.f32 %v1191, %v1504
        %v1506 = vpop.f32.mrf.mxu0
        %1507 = vmatprep.mubr.f32.mxu0 0.0
        %1508 = vmatmul.mubr.f32.gmra.mxu0 %v1156
        %v1509 = vpop.f32.mrf.mxu0
        %v1510 = vadd.f32 %v1191, %v1509
        %v1511 = vpop.f32.mrf.mxu0
        %1512 = vmatprep.mubr.f32.mxu0 0.0
        %1513 = vmatmul.mubr.f32.gmra.mxu0 %v1157
        %v1514 = vpop.f32.mrf.mxu0
        %v1515 = vadd.f32 %v1191, %v1514
        %v1516 = vpop.f32.mrf.mxu0
        %1517 = vmatprep.mubr.f32.mxu0 0.0
        %1518 = vmatmul.mubr.f32.gmra.mxu0 %v1158
        %v1519 = vpop.f32.mrf.mxu0
        %v1520 = vadd.f32 %v1191, %v1519
        %v1521 = vpop.f32.mrf.mxu0
        %1522 = vmatprep.mubr.f32.mxu0 0.0
        %1523 = vmatmul.mubr.f32.gmra.mxu0 %v1159
        %v1524 = vpop.f32.mrf.mxu0
        %v1525 = vadd.f32 %v1191, %v1524
        %v1526 = vpop.f32.mrf.mxu0
        %1527 = vmatprep.mubr.f32.mxu0 0.0
        %1528 = vmatmul.mubr.f32.gmra.mxu0 %v1160
        %v1529 = vpop.f32.mrf.mxu0
        %v1530 = vadd.f32 %v1191, %v1529
        %v1531 = vpop.f32.mrf.mxu0
        %1532 = vmatprep.mubr.f32.mxu0 0.0
        %1533 = vmatmul.mubr.f32.gmra.mxu0 %v1161
        %v1534 = vpop.f32.mrf.mxu0
        %v1535 = vadd.f32 %v1191, %v1534
        %v1536 = vpop.f32.mrf.mxu0
        %1537 = vmatprep.mubr.f32.mxu0 0.0
        %1538 = vmatmul.mubr.f32.gmra.mxu0 %v1162
        %v1539 = vpop.f32.mrf.mxu0
        %v1540 = vadd.f32 %v1191, %v1539
        %v1541 = vpop.f32.mrf.mxu0
        %1542 = vmatprep.mubr.f32.mxu0 0.0
        %1543 = vmatmul.mubr.f32.gmra.mxu0 %v1163
        %v1544 = vpop.f32.mrf.mxu0
        %v1545 = vadd.f32 %v1191, %v1544
        %v1546 = vpop.f32.mrf.mxu0
        %1547 = vmatprep.mubr.f32.mxu0 0.0
        %1548 = vmatmul.mubr.f32.gmra.mxu0 %v1164
        %v1549 = vpop.f32.mrf.mxu0
        %v1550 = vadd.f32 %v1191, %v1549
        %v1551 = vpop.f32.mrf.mxu0
        %1552 = vmatprep.mubr.f32.mxu0 0.0
        %1553 = vmatmul.mubr.f32.gmra.mxu0 %v1165
        %v1554 = vpop.f32.mrf.mxu0
        %v1555 = vadd.f32 %v1191, %v1554
        %v1556 = vpop.f32.mrf.mxu0
        %1557 = vmatprep.mubr.f32.mxu0 0.0
        %1558 = vmatmul.mubr.f32.gmra.mxu0 %v1166
        %v1559 = vpop.f32.mrf.mxu0
        %v1560 = vadd.f32 %v1191, %v1559
        %v1561 = vpop.f32.mrf.mxu0
        %1562 = vmatprep.mubr.f32.mxu0 0.0
        %1563 = vmatmul.mubr.f32.gmra.mxu0 %v1167
        %v1564 = vpop.f32.mrf.mxu0
        %v1565 = vadd.f32 %v1191, %v1564
        %v1566 = vpop.f32.mrf.mxu0
        %1567 = vmatprep.mubr.f32.mxu0 0.0
        %1568 = vmatmul.mubr.f32.gmra.mxu0 %v1168
        %v1569 = vpop.f32.mrf.mxu0
        %v1570 = vadd.f32 %v1191, %v1569
        %v1571 = vpop.f32.mrf.mxu0
        %1572 = vmatprep.mubr.f32.mxu0 0.0
        %1573 = vmatmul.mubr.f32.gmra.mxu0 %v1169
        %v1574 = vpop.f32.mrf.mxu0
        %v1575 = vadd.f32 %v1191, %v1574
        %v1576 = vpop.f32.mrf.mxu0
        %1577 = vdwg.mxu0
        %v1578 = vmul.f32 %v1260, 0.5
        %v1579 = vmul.f32 %v1265, 0.5
        %v1580 = vmul.f32 %v1270, 0.5
        %v1581 = vmul.f32 %v1275, 0.5
        %v1582 = vmul.f32 %v1280, 0.5
        %v1583 = vmul.f32 %v1285, 0.5
        %v1584 = vmul.f32 %v1290, 0.5
        %v1585 = vmul.f32 %v1295, 0.5
        %v1586 = vmul.f32 %v1300, 0.5
        %v1587 = vmul.f32 %v1305, 0.5
        %v1588 = vmul.f32 %v1310, 0.5
        %v1589 = vmul.f32 %v1315, 0.5
        %v1590 = vmul.f32 %v1320, 0.5
        %v1591 = vmul.f32 %v1325, 0.5
        %v1592 = vmul.f32 %v1330, 0.5
        %v1593 = vmul.f32 %v1335, 0.5
        %v1594 = vmul.f32 %v1340, 0.5
        %v1595 = vmul.f32 %v1345, 0.5
        %v1596 = vmul.f32 %v1350, 0.5
        %v1597 = vmul.f32 %v1355, 0.5
        %v1598 = vmul.f32 %v1360, 0.5
        %v1599 = vmul.f32 %v1365, 0.5
        %v1600 = vmul.f32 %v1370, 0.5
        %v1601 = vmul.f32 %v1375, 0.5
        %v1602 = vmul.f32 %v1380, 0.5
        %v1603 = vmul.f32 %v1385, 0.5
        %v1604 = vmul.f32 %v1390, 0.5
        %v1605 = vmul.f32 %v1395, 0.5
        %v1606 = vmul.f32 %v1400, 0.5
        %v1607 = vmul.f32 %v1405, 0.5
        %v1608 = vmul.f32 %v1410, 0.5
        %v1609 = vmul.f32 %v1415, 0.5
        %v1610 = vmul.f32 %v1420, 0.5
        %v1611 = vmul.f32 %v1425, 0.5
        %v1612 = vmul.f32 %v1430, 0.5
        %v1613 = vmul.f32 %v1435, 0.5
        %v1614 = vmul.f32 %v1440, 0.5
        %v1615 = vmul.f32 %v1445, 0.5
        %v1616 = vmul.f32 %v1450, 0.5
        %v1617 = vmul.f32 %v1455, 0.5
        %v1618 = vmul.f32 %v1460, 0.5
        %v1619 = vmul.f32 %v1465, 0.5
        %v1620 = vmul.f32 %v1470, 0.5
        %v1621 = vmul.f32 %v1475, 0.5
        %v1622 = vmul.f32 %v1480, 0.5
        %v1623 = vmul.f32 %v1485, 0.5
        %v1624 = vmul.f32 %v1490, 0.5
        %v1625 = vmul.f32 %v1495, 0.5
        %v1626 = vmul.f32 %v1500, 0.5
        %v1627 = vmul.f32 %v1505, 0.5
        %v1628 = vmul.f32 %v1510, 0.5
        %v1629 = vmul.f32 %v1515, 0.5
        %v1630 = vmul.f32 %v1520, 0.5
        %v1631 = vmul.f32 %v1525, 0.5
        %v1632 = vmul.f32 %v1530, 0.5
        %v1633 = vmul.f32 %v1535, 0.5
        %v1634 = vmul.f32 %v1540, 0.5
        %v1635 = vmul.f32 %v1545, 0.5
        %v1636 = vmul.f32 %v1550, 0.5
        %v1637 = vmul.f32 %v1555, 0.5
        %v1638 = vmul.f32 %v1560, 0.5
        %v1639 = vmul.f32 %v1565, 0.5
        %v1640 = vmul.f32 %v1570, 0.5
        %v1641 = vmul.f32 %v1575, 0.5
        %v1642 = vtanh.pop %v1578
        %v1643 = vtanh.pop %v1579
        %v1644 = vtanh.pop %v1580
        %v1645 = vtanh.pop %v1581
        %v1646 = vtanh.pop %v1582
        %v1647 = vtanh.pop %v1583
        %v1648 = vtanh.pop %v1584
        %v1649 = vtanh.pop %v1585
        %v1650 = vtanh.pop %v1586
        %v1651 = vtanh.pop %v1587
        %v1652 = vtanh.pop %v1588
        %v1653 = vtanh.pop %v1589
        %v1654 = vtanh.pop %v1590
        %v1655 = vtanh.pop %v1591
        %v1656 = vtanh.pop %v1592
        %v1657 = vtanh.pop %v1593
        %v1658 = vtanh.pop %v1594
        %v1659 = vtanh.pop %v1595
        %v1660 = vtanh.pop %v1596
        %v1661 = vtanh.pop %v1597
        %v1662 = vtanh.pop %v1598
        %v1663 = vtanh.pop %v1599
        %v1664 = vtanh.pop %v1600
        %v1665 = vtanh.pop %v1601
        %v1666 = vtanh.pop %v1602
        %v1667 = vtanh.pop %v1603
        %v1668 = vtanh.pop %v1604
        %v1669 = vtanh.pop %v1605
        %v1670 = vtanh.pop %v1606
        %v1671 = vtanh.pop %v1607
        %v1672 = vtanh.pop %v1608
        %v1673 = vtanh.pop %v1609
        %v1674 = vtanh.pop %v1610
        %v1675 = vtanh.pop %v1611
        %v1676 = vtanh.pop %v1612
        %v1677 = vtanh.pop %v1613
        %v1678 = vtanh.pop %v1614
        %v1679 = vtanh.pop %v1615
        %v1680 = vtanh.pop %v1616
        %v1681 = vtanh.pop %v1617
        %v1682 = vtanh.pop %v1618
        %v1683 = vtanh.pop %v1619
        %v1684 = vtanh.pop %v1620
        %v1685 = vtanh.pop %v1621
        %v1686 = vtanh.pop %v1622
        %v1687 = vtanh.pop %v1623
        %v1688 = vtanh.pop %v1624
        %v1689 = vtanh.pop %v1625
        %v1690 = vtanh.pop %v1626
        %v1691 = vtanh.pop %v1627
        %v1692 = vtanh.pop %v1628
        %v1693 = vtanh.pop %v1629
        %v1694 = vtanh.pop %v1630
        %v1695 = vtanh.pop %v1631
        %v1696 = vtanh.pop %v1632
        %v1697 = vtanh.pop %v1633
        %v1698 = vtanh.pop %v1634
        %v1699 = vtanh.pop %v1635
        %v1700 = vtanh.pop %v1636
        %v1701 = vtanh.pop %v1637
        %v1702 = vtanh.pop %v1638
        %v1703 = vtanh.pop %v1639
        %v1704 = vtanh.pop %v1640
        %v1705 = vtanh.pop %v1641
        %v1706 = vmul.f32 %v1642, 0.5
        %v1707 = vmul.f32 %v1643, 0.5
        %v1708 = vmul.f32 %v1644, 0.5
        %v1709 = vmul.f32 %v1645, 0.5
        %v1710 = vmul.f32 %v1646, 0.5
        %v1711 = vmul.f32 %v1647, 0.5
        %v1712 = vmul.f32 %v1648, 0.5
        %v1713 = vmul.f32 %v1649, 0.5
        %v1714 = vmul.f32 %v1650, 0.5
        %v1715 = vmul.f32 %v1651, 0.5
        %v1716 = vmul.f32 %v1652, 0.5
        %v1717 = vmul.f32 %v1653, 0.5
        %v1718 = vmul.f32 %v1654, 0.5
        %v1719 = vmul.f32 %v1655, 0.5
        %v1720 = vmul.f32 %v1656, 0.5
        %v1721 = vmul.f32 %v1657, 0.5
        %v1722 = vmul.f32 %v1658, 0.5
        %v1723 = vmul.f32 %v1659, 0.5
        %v1724 = vmul.f32 %v1660, 0.5
        %v1725 = vmul.f32 %v1661, 0.5
        %v1726 = vmul.f32 %v1662, 0.5
        %v1727 = vmul.f32 %v1663, 0.5
        %v1728 = vmul.f32 %v1664, 0.5
        %v1729 = vmul.f32 %v1665, 0.5
        %v1730 = vmul.f32 %v1666, 0.5
        %v1731 = vmul.f32 %v1667, 0.5
        %v1732 = vmul.f32 %v1668, 0.5
        %v1733 = vmul.f32 %v1669, 0.5
        %v1734 = vmul.f32 %v1670, 0.5
        %v1735 = vmul.f32 %v1671, 0.5
        %v1736 = vmul.f32 %v1672, 0.5
        %v1737 = vmul.f32 %v1673, 0.5
        %v1738 = vmul.f32 %v1674, 0.5
        %v1739 = vmul.f32 %v1675, 0.5
        %v1740 = vmul.f32 %v1676, 0.5
        %v1741 = vmul.f32 %v1677, 0.5
        %v1742 = vmul.f32 %v1678, 0.5
        %v1743 = vmul.f32 %v1679, 0.5
        %v1744 = vmul.f32 %v1680, 0.5
        %v1745 = vmul.f32 %v1681, 0.5
        %v1746 = vmul.f32 %v1682, 0.5
        %v1747 = vmul.f32 %v1683, 0.5
        %v1748 = vmul.f32 %v1684, 0.5
        %v1749 = vmul.f32 %v1685, 0.5
        %v1750 = vmul.f32 %v1686, 0.5
        %v1751 = vmul.f32 %v1687, 0.5
        %v1752 = vmul.f32 %v1688, 0.5
        %v1753 = vmul.f32 %v1689, 0.5
        %v1754 = vmul.f32 %v1690, 0.5
        %v1755 = vmul.f32 %v1691, 0.5
        %v1756 = vmul.f32 %v1692, 0.5
        %v1757 = vmul.f32 %v1693, 0.5
        %v1758 = vmul.f32 %v1694, 0.5
        %v1759 = vmul.f32 %v1695, 0.5
        %v1760 = vmul.f32 %v1696, 0.5
        %v1761 = vmul.f32 %v1697, 0.5
        %v1762 = vmul.f32 %v1698, 0.5
        %v1763 = vmul.f32 %v1699, 0.5
        %v1764 = vmul.f32 %v1700, 0.5
        %v1765 = vmul.f32 %v1701, 0.5
        %v1766 = vmul.f32 %v1702, 0.5
        %v1767 = vmul.f32 %v1703, 0.5
        %v1768 = vmul.f32 %v1704, 0.5
        %v1769 = vmul.f32 %v1705, 0.5
        %v1770 = vadd.f32 %v1706, 0.5
        %v1771 = vadd.f32 %v1707, 0.5
        %v1772 = vadd.f32 %v1708, 0.5
        %v1773 = vadd.f32 %v1709, 0.5
        %v1774 = vadd.f32 %v1710, 0.5
        %v1775 = vadd.f32 %v1711, 0.5
        %v1776 = vadd.f32 %v1712, 0.5
        %v1777 = vadd.f32 %v1713, 0.5
        %v1778 = vadd.f32 %v1714, 0.5
        %v1779 = vadd.f32 %v1715, 0.5
        %v1780 = vadd.f32 %v1716, 0.5
        %v1781 = vadd.f32 %v1717, 0.5
        %v1782 = vadd.f32 %v1718, 0.5
        %v1783 = vadd.f32 %v1719, 0.5
        %v1784 = vadd.f32 %v1720, 0.5
        %v1785 = vadd.f32 %v1721, 0.5
        %v1786 = vadd.f32 %v1722, 0.5
        %v1787 = vadd.f32 %v1723, 0.5
        %v1788 = vadd.f32 %v1724, 0.5
        %v1789 = vadd.f32 %v1725, 0.5
        %v1790 = vadd.f32 %v1726, 0.5
        %v1791 = vadd.f32 %v1727, 0.5
        %v1792 = vadd.f32 %v1728, 0.5
        %v1793 = vadd.f32 %v1729, 0.5
        %v1794 = vadd.f32 %v1730, 0.5
        %v1795 = vadd.f32 %v1731, 0.5
        %v1796 = vadd.f32 %v1732, 0.5
        %v1797 = vadd.f32 %v1733, 0.5
        %v1798 = vadd.f32 %v1734, 0.5
        %v1799 = vadd.f32 %v1735, 0.5
        %v1800 = vadd.f32 %v1736, 0.5
        %v1801 = vadd.f32 %v1737, 0.5
        %v1802 = vadd.f32 %v1738, 0.5
        %v1803 = vadd.f32 %v1739, 0.5
        %v1804 = vadd.f32 %v1740, 0.5
        %v1805 = vadd.f32 %v1741, 0.5
        %v1806 = vadd.f32 %v1742, 0.5
        %v1807 = vadd.f32 %v1743, 0.5
        %v1808 = vadd.f32 %v1744, 0.5
        %v1809 = vadd.f32 %v1745, 0.5
        %v1810 = vadd.f32 %v1746, 0.5
        %v1811 = vadd.f32 %v1747, 0.5
        %v1812 = vadd.f32 %v1748, 0.5
        %v1813 = vadd.f32 %v1749, 0.5
        %v1814 = vadd.f32 %v1750, 0.5
        %v1815 = vadd.f32 %v1751, 0.5
        %v1816 = vadd.f32 %v1752, 0.5
        %v1817 = vadd.f32 %v1753, 0.5
        %v1818 = vadd.f32 %v1754, 0.5
        %v1819 = vadd.f32 %v1755, 0.5
        %v1820 = vadd.f32 %v1756, 0.5
        %v1821 = vadd.f32 %v1757, 0.5
        %v1822 = vadd.f32 %v1758, 0.5
        %v1823 = vadd.f32 %v1759, 0.5
        %v1824 = vadd.f32 %v1760, 0.5
        %v1825 = vadd.f32 %v1761, 0.5
        %v1826 = vadd.f32 %v1762, 0.5
        %v1827 = vadd.f32 %v1763, 0.5
        %v1828 = vadd.f32 %v1764, 0.5
        %v1829 = vadd.f32 %v1765, 0.5
        %v1830 = vadd.f32 %v1766, 0.5
        %v1831 = vadd.f32 %v1767, 0.5
        %v1832 = vadd.f32 %v1768, 0.5
        %v1833 = vadd.f32 %v1769, 0.5
        %v1834 = vld [vmem:[%s5] sm:$0xff]
        %v1835 = vld [vmem:[%s5 + $0x8] sm:$0xff]
        %v1836 = vld [vmem:[%s5 + $0x10] sm:$0xff]
        %v1837 = vld [vmem:[%s5 + $0x18] sm:$0xff]
        %v1838 = vld [vmem:[%s5 + $0x20] sm:$0xff]
        %v1839 = vld [vmem:[%s5 + $0x28] sm:$0xff]
        %v1840 = vld [vmem:[%s5 + $0x30] sm:$0xff]
        %v1841 = vld [vmem:[%s5 + $0x38] sm:$0xff]
        %v1842 = vld [vmem:[%s5 + $0x40] sm:$0xff]
        %v1843 = vld [vmem:[%s5 + $0x48] sm:$0xff]
        %v1844 = vld [vmem:[%s5 + $0x50] sm:$0xff]
        %v1845 = vld [vmem:[%s5 + $0x58] sm:$0xff]
        %v1846 = vld [vmem:[%s5 + $0x60] sm:$0xff]
        %v1847 = vld [vmem:[%s5 + $0x68] sm:$0xff]
        %v1848 = vld [vmem:[%s5 + $0x70] sm:$0xff]
        %v1849 = vld [vmem:[%s5 + $0x78] sm:$0xff]
        %v1850 = vld [vmem:[%s6] sm:$0x1]
        %v1852 = vlaneseq
        %v1853 = vshrl.u32 %v1852, 7
        %v1854 = vsub.s32 0, %v1853
        %v1855 = vrot.slane %v1850, %v1854
        %1857 = vmatprep.subr.mxu0 0.0
        %1858 = vmatpush1.msra.mxu0 %v1849
        %1859 = vmatprep.subr.mxu0 0.0
        %1860 = vmatpush1.msra.mxu0 %v1848
        %1861 = vmatprep.subr.mxu0 0.0
        %1862 = vmatpush1.msra.mxu0 %v1847
        %1863 = vmatprep.subr.mxu0 0.0
        %1864 = vmatpush1.msra.mxu0 %v1846
        %1865 = vmatprep.subr.mxu0 0.0
        %1866 = vmatpush1.msra.mxu0 %v1845
        %1867 = vmatprep.subr.mxu0 0.0
        %1868 = vmatpush1.msra.mxu0 %v1844
        %1869 = vmatprep.subr.mxu0 0.0
        %1870 = vmatpush1.msra.mxu0 %v1843
        %1871 = vmatprep.subr.mxu0 0.0
        %1872 = vmatpush1.msra.mxu0 %v1842
        %1873 = vmatprep.subr.mxu0 0.0
        %1874 = vmatpush1.msra.mxu0 %v1841
        %1875 = vmatprep.subr.mxu0 0.0
        %1876 = vmatpush1.msra.mxu0 %v1840
        %1877 = vmatprep.subr.mxu0 0.0
        %1878 = vmatpush1.msra.mxu0 %v1839
        %1879 = vmatprep.subr.mxu0 0.0
        %1880 = vmatpush1.msra.mxu0 %v1838
        %1881 = vmatprep.subr.mxu0 0.0
        %1882 = vmatpush1.msra.mxu0 %v1837
        %1883 = vmatprep.subr.mxu0 0.0
        %1884 = vmatpush1.msra.mxu0 %v1836
        %1885 = vmatprep.subr.mxu0 0.0
        %1886 = vmatpush1.msra.mxu0 %v1835
        %1887 = vmatprep.subr.mxu0 0.0
        %1888 = vmatpush1.msra.mxu0 %v1834
        %1889 = vmatprep.subr.mxu0 0.0
        %1890 = vmatpush2.msra.mxu0 0.0
        %1891 = vmatprep.subr.mxu0 0.0
        %1892 = vmatpush2.msra.mxu0 0.0
        %1893 = vmatprep.subr.mxu0 0.0
        %1894 = vmatpush2.msra.mxu0 0.0
        %1895 = vmatprep.subr.mxu0 0.0
        %1896 = vmatpush2.msra.mxu0 0.0
        %1897 = vmatprep.subr.mxu0 0.0
        %1898 = vmatpush2.msra.mxu0 0.0
        %1899 = vmatprep.subr.mxu0 0.0
        %1900 = vmatpush2.msra.mxu0 0.0
        %1901 = vmatprep.subr.mxu0 0.0
        %1902 = vmatpush2.msra.mxu0 0.0
        %1903 = vmatprep.subr.mxu0 0.0
        %1904 = vmatpush2.msra.mxu0 0.0
        %1905 = vmatprep.subr.mxu0 0.0
        %1906 = vmatpush2.msra.mxu0 0.0
        %1907 = vmatprep.subr.mxu0 0.0
        %1908 = vmatpush2.msra.mxu0 0.0
        %1909 = vmatprep.subr.mxu0 0.0
        %1910 = vmatpush2.msra.mxu0 0.0
        %1911 = vmatprep.subr.mxu0 0.0
        %1912 = vmatpush2.msra.mxu0 0.0
        %1913 = vmatprep.subr.mxu0 0.0
        %1914 = vmatpush2.msra.mxu0 0.0
        %1915 = vmatprep.subr.mxu0 0.0
        %1916 = vmatpush2.msra.mxu0 0.0
        %1917 = vmatprep.subr.mxu0 0.0
        %1918 = vmatpush2.msra.mxu0 0.0
        %1919 = vmatprep.subr.mxu0 0.0
        %1920 = vmatpush2.msra.mxu0 0.0
        %1921 = vmatprep.mubr.f32.mxu0 0.0
        %1922 = vmatmul.mubr.f32.gmra.mxu0 %v1770
        %v1923 = vpop.f32.mrf.mxu0
        %v1924 = vadd.f32 %v1855, %v1923
        %v1925 = vpop.f32.mrf.mxu0
        %1926 = vmatprep.mubr.f32.mxu0 0.0
        %1927 = vmatmul.mubr.f32.gmra.mxu0 %v1771
        %v1928 = vpop.f32.mrf.mxu0
        %v1929 = vadd.f32 %v1855, %v1928
        %v1930 = vpop.f32.mrf.mxu0
        %1931 = vmatprep.mubr.f32.mxu0 0.0
        %1932 = vmatmul.mubr.f32.gmra.mxu0 %v1772
        %v1933 = vpop.f32.mrf.mxu0
        %v1934 = vadd.f32 %v1855, %v1933
        %v1935 = vpop.f32.mrf.mxu0
        %1936 = vmatprep.mubr.f32.mxu0 0.0
        %1937 = vmatmul.mubr.f32.gmra.mxu0 %v1773
        %v1938 = vpop.f32.mrf.mxu0
        %v1939 = vadd.f32 %v1855, %v1938
        %v1940 = vpop.f32.mrf.mxu0
        %1941 = vmatprep.mubr.f32.mxu0 0.0
        %1942 = vmatmul.mubr.f32.gmra.mxu0 %v1774
        %v1943 = vpop.f32.mrf.mxu0
        %v1944 = vadd.f32 %v1855, %v1943
        %v1945 = vpop.f32.mrf.mxu0
        %1946 = vmatprep.mubr.f32.mxu0 0.0
        %1947 = vmatmul.mubr.f32.gmra.mxu0 %v1775
        %v1948 = vpop.f32.mrf.mxu0
        %v1949 = vadd.f32 %v1855, %v1948
        %v1950 = vpop.f32.mrf.mxu0
        %1951 = vmatprep.mubr.f32.mxu0 0.0
        %1952 = vmatmul.mubr.f32.gmra.mxu0 %v1776
        %v1953 = vpop.f32.mrf.mxu0
        %v1954 = vadd.f32 %v1855, %v1953
        %v1955 = vpop.f32.mrf.mxu0
        %1956 = vmatprep.mubr.f32.mxu0 0.0
        %1957 = vmatmul.mubr.f32.gmra.mxu0 %v1777
        %v1958 = vpop.f32.mrf.mxu0
        %v1959 = vadd.f32 %v1855, %v1958
        %v1960 = vpop.f32.mrf.mxu0
        %1961 = vmatprep.mubr.f32.mxu0 0.0
        %1962 = vmatmul.mubr.f32.gmra.mxu0 %v1778
        %v1963 = vpop.f32.mrf.mxu0
        %v1964 = vadd.f32 %v1855, %v1963
        %v1965 = vpop.f32.mrf.mxu0
        %1966 = vmatprep.mubr.f32.mxu0 0.0
        %1967 = vmatmul.mubr.f32.gmra.mxu0 %v1779
        %v1968 = vpop.f32.mrf.mxu0
        %v1969 = vadd.f32 %v1855, %v1968
        %v1970 = vpop.f32.mrf.mxu0
        %1971 = vmatprep.mubr.f32.mxu0 0.0
        %1972 = vmatmul.mubr.f32.gmra.mxu0 %v1780
        %v1973 = vpop.f32.mrf.mxu0
        %v1974 = vadd.f32 %v1855, %v1973
        %v1975 = vpop.f32.mrf.mxu0
        %1976 = vmatprep.mubr.f32.mxu0 0.0
        %1977 = vmatmul.mubr.f32.gmra.mxu0 %v1781
        %v1978 = vpop.f32.mrf.mxu0
        %v1979 = vadd.f32 %v1855, %v1978
        %v1980 = vpop.f32.mrf.mxu0
        %1981 = vmatprep.mubr.f32.mxu0 0.0
        %1982 = vmatmul.mubr.f32.gmra.mxu0 %v1782
        %v1983 = vpop.f32.mrf.mxu0
        %v1984 = vadd.f32 %v1855, %v1983
        %v1985 = vpop.f32.mrf.mxu0
        %1986 = vmatprep.mubr.f32.mxu0 0.0
        %1987 = vmatmul.mubr.f32.gmra.mxu0 %v1783
        %v1988 = vpop.f32.mrf.mxu0
        %v1989 = vadd.f32 %v1855, %v1988
        %v1990 = vpop.f32.mrf.mxu0
        %1991 = vmatprep.mubr.f32.mxu0 0.0
        %1992 = vmatmul.mubr.f32.gmra.mxu0 %v1784
        %v1993 = vpop.f32.mrf.mxu0
        %v1994 = vadd.f32 %v1855, %v1993
        %v1995 = vpop.f32.mrf.mxu0
        %1996 = vmatprep.mubr.f32.mxu0 0.0
        %1997 = vmatmul.mubr.f32.gmra.mxu0 %v1785
        %v1998 = vpop.f32.mrf.mxu0
        %v1999 = vadd.f32 %v1855, %v1998
        %v2000 = vpop.f32.mrf.mxu0
        %2001 = vmatprep.mubr.f32.mxu0 0.0
        %2002 = vmatmul.mubr.f32.gmra.mxu0 %v1786
        %v2003 = vpop.f32.mrf.mxu0
        %v2004 = vadd.f32 %v1855, %v2003
        %v2005 = vpop.f32.mrf.mxu0
        %2006 = vmatprep.mubr.f32.mxu0 0.0
        %2007 = vmatmul.mubr.f32.gmra.mxu0 %v1787
        %v2008 = vpop.f32.mrf.mxu0
        %v2009 = vadd.f32 %v1855, %v2008
        %v2010 = vpop.f32.mrf.mxu0
        %2011 = vmatprep.mubr.f32.mxu0 0.0
        %2012 = vmatmul.mubr.f32.gmra.mxu0 %v1788
        %v2013 = vpop.f32.mrf.mxu0
        %v2014 = vadd.f32 %v1855, %v2013
        %v2015 = vpop.f32.mrf.mxu0
        %2016 = vmatprep.mubr.f32.mxu0 0.0
        %2017 = vmatmul.mubr.f32.gmra.mxu0 %v1789
        %v2018 = vpop.f32.mrf.mxu0
        %v2019 = vadd.f32 %v1855, %v2018
        %v2020 = vpop.f32.mrf.mxu0
        %2021 = vmatprep.mubr.f32.mxu0 0.0
        %2022 = vmatmul.mubr.f32.gmra.mxu0 %v1790
        %v2023 = vpop.f32.mrf.mxu0
        %v2024 = vadd.f32 %v1855, %v2023
        %v2025 = vpop.f32.mrf.mxu0
        %2026 = vmatprep.mubr.f32.mxu0 0.0
        %2027 = vmatmul.mubr.f32.gmra.mxu0 %v1791
        %v2028 = vpop.f32.mrf.mxu0
        %v2029 = vadd.f32 %v1855, %v2028
        %v2030 = vpop.f32.mrf.mxu0
        %2031 = vmatprep.mubr.f32.mxu0 0.0
        %2032 = vmatmul.mubr.f32.gmra.mxu0 %v1792
        %v2033 = vpop.f32.mrf.mxu0
        %v2034 = vadd.f32 %v1855, %v2033
        %v2035 = vpop.f32.mrf.mxu0
        %2036 = vmatprep.mubr.f32.mxu0 0.0
        %2037 = vmatmul.mubr.f32.gmra.mxu0 %v1793
        %v2038 = vpop.f32.mrf.mxu0
        %v2039 = vadd.f32 %v1855, %v2038
        %v2040 = vpop.f32.mrf.mxu0
        %2041 = vmatprep.mubr.f32.mxu0 0.0
        %2042 = vmatmul.mubr.f32.gmra.mxu0 %v1794
        %v2043 = vpop.f32.mrf.mxu0
        %v2044 = vadd.f32 %v1855, %v2043
        %v2045 = vpop.f32.mrf.mxu0
        %2046 = vmatprep.mubr.f32.mxu0 0.0
        %2047 = vmatmul.mubr.f32.gmra.mxu0 %v1795
        %v2048 = vpop.f32.mrf.mxu0
        %v2049 = vadd.f32 %v1855, %v2048
        %v2050 = vpop.f32.mrf.mxu0
        %2051 = vmatprep.mubr.f32.mxu0 0.0
        %2052 = vmatmul.mubr.f32.gmra.mxu0 %v1796
        %v2053 = vpop.f32.mrf.mxu0
        %v2054 = vadd.f32 %v1855, %v2053
        %v2055 = vpop.f32.mrf.mxu0
        %2056 = vmatprep.mubr.f32.mxu0 0.0
        %2057 = vmatmul.mubr.f32.gmra.mxu0 %v1797
        %v2058 = vpop.f32.mrf.mxu0
        %v2059 = vadd.f32 %v1855, %v2058
        %v2060 = vpop.f32.mrf.mxu0
        %2061 = vmatprep.mubr.f32.mxu0 0.0
        %2062 = vmatmul.mubr.f32.gmra.mxu0 %v1798
        %v2063 = vpop.f32.mrf.mxu0
        %v2064 = vadd.f32 %v1855, %v2063
        %v2065 = vpop.f32.mrf.mxu0
        %2066 = vmatprep.mubr.f32.mxu0 0.0
        %2067 = vmatmul.mubr.f32.gmra.mxu0 %v1799
        %v2068 = vpop.f32.mrf.mxu0
        %v2069 = vadd.f32 %v1855, %v2068
        %v2070 = vpop.f32.mrf.mxu0
        %2071 = vmatprep.mubr.f32.mxu0 0.0
        %2072 = vmatmul.mubr.f32.gmra.mxu0 %v1800
        %v2073 = vpop.f32.mrf.mxu0
        %v2074 = vadd.f32 %v1855, %v2073
        %v2075 = vpop.f32.mrf.mxu0
        %2076 = vmatprep.mubr.f32.mxu0 0.0
        %2077 = vmatmul.mubr.f32.gmra.mxu0 %v1801
        %v2078 = vpop.f32.mrf.mxu0
        %v2079 = vadd.f32 %v1855, %v2078
        %v2080 = vpop.f32.mrf.mxu0
        %2081 = vmatprep.mubr.f32.mxu0 0.0
        %2082 = vmatmul.mubr.f32.gmra.mxu0 %v1802
        %v2083 = vpop.f32.mrf.mxu0
        %v2084 = vadd.f32 %v1855, %v2083
        %v2085 = vpop.f32.mrf.mxu0
        %2086 = vmatprep.mubr.f32.mxu0 0.0
        %2087 = vmatmul.mubr.f32.gmra.mxu0 %v1803
        %v2088 = vpop.f32.mrf.mxu0
        %v2089 = vadd.f32 %v1855, %v2088
        %v2090 = vpop.f32.mrf.mxu0
        %2091 = vmatprep.mubr.f32.mxu0 0.0
        %2092 = vmatmul.mubr.f32.gmra.mxu0 %v1804
        %v2093 = vpop.f32.mrf.mxu0
        %v2094 = vadd.f32 %v1855, %v2093
        %v2095 = vpop.f32.mrf.mxu0
        %2096 = vmatprep.mubr.f32.mxu0 0.0
        %2097 = vmatmul.mubr.f32.gmra.mxu0 %v1805
        %v2098 = vpop.f32.mrf.mxu0
        %v2099 = vadd.f32 %v1855, %v2098
        %v2100 = vpop.f32.mrf.mxu0
        %2101 = vmatprep.mubr.f32.mxu0 0.0
        %2102 = vmatmul.mubr.f32.gmra.mxu0 %v1806
        %v2103 = vpop.f32.mrf.mxu0
        %v2104 = vadd.f32 %v1855, %v2103
        %v2105 = vpop.f32.mrf.mxu0
        %2106 = vmatprep.mubr.f32.mxu0 0.0
        %2107 = vmatmul.mubr.f32.gmra.mxu0 %v1807
        %v2108 = vpop.f32.mrf.mxu0
        %v2109 = vadd.f32 %v1855, %v2108
        %v2110 = vpop.f32.mrf.mxu0
        %2111 = vmatprep.mubr.f32.mxu0 0.0
        %2112 = vmatmul.mubr.f32.gmra.mxu0 %v1808
        %v2113 = vpop.f32.mrf.mxu0
        %v2114 = vadd.f32 %v1855, %v2113
        %v2115 = vpop.f32.mrf.mxu0
        %2116 = vmatprep.mubr.f32.mxu0 0.0
        %2117 = vmatmul.mubr.f32.gmra.mxu0 %v1809
        %v2118 = vpop.f32.mrf.mxu0
        %v2119 = vadd.f32 %v1855, %v2118
        %v2120 = vpop.f32.mrf.mxu0
        %2121 = vmatprep.mubr.f32.mxu0 0.0
        %2122 = vmatmul.mubr.f32.gmra.mxu0 %v1810
        %v2123 = vpop.f32.mrf.mxu0
        %v2124 = vadd.f32 %v1855, %v2123
        %v2125 = vpop.f32.mrf.mxu0
        %2126 = vmatprep.mubr.f32.mxu0 0.0
        %2127 = vmatmul.mubr.f32.gmra.mxu0 %v1811
        %v2128 = vpop.f32.mrf.mxu0
        %v2129 = vadd.f32 %v1855, %v2128
        %v2130 = vpop.f32.mrf.mxu0
        %2131 = vmatprep.mubr.f32.mxu0 0.0
        %2132 = vmatmul.mubr.f32.gmra.mxu0 %v1812
        %v2133 = vpop.f32.mrf.mxu0
        %v2134 = vadd.f32 %v1855, %v2133
        %v2135 = vpop.f32.mrf.mxu0
        %2136 = vmatprep.mubr.f32.mxu0 0.0
        %2137 = vmatmul.mubr.f32.gmra.mxu0 %v1813
        %v2138 = vpop.f32.mrf.mxu0
        %v2139 = vadd.f32 %v1855, %v2138
        %v2140 = vpop.f32.mrf.mxu0
        %2141 = vmatprep.mubr.f32.mxu0 0.0
        %2142 = vmatmul.mubr.f32.gmra.mxu0 %v1814
        %v2143 = vpop.f32.mrf.mxu0
        %v2144 = vadd.f32 %v1855, %v2143
        %v2145 = vpop.f32.mrf.mxu0
        %2146 = vmatprep.mubr.f32.mxu0 0.0
        %2147 = vmatmul.mubr.f32.gmra.mxu0 %v1815
        %v2148 = vpop.f32.mrf.mxu0
        %v2149 = vadd.f32 %v1855, %v2148
        %v2150 = vpop.f32.mrf.mxu0
        %2151 = vmatprep.mubr.f32.mxu0 0.0
        %2152 = vmatmul.mubr.f32.gmra.mxu0 %v1816
        %v2153 = vpop.f32.mrf.mxu0
        %v2154 = vadd.f32 %v1855, %v2153
        %v2155 = vpop.f32.mrf.mxu0
        %2156 = vmatprep.mubr.f32.mxu0 0.0
        %2157 = vmatmul.mubr.f32.gmra.mxu0 %v1817
        %v2158 = vpop.f32.mrf.mxu0
        %v2159 = vadd.f32 %v1855, %v2158
        %v2160 = vpop.f32.mrf.mxu0
        %2161 = vmatprep.mubr.f32.mxu0 0.0
        %2162 = vmatmul.mubr.f32.gmra.mxu0 %v1818
        %v2163 = vpop.f32.mrf.mxu0
        %v2164 = vadd.f32 %v1855, %v2163
        %v2165 = vpop.f32.mrf.mxu0
        %2166 = vmatprep.mubr.f32.mxu0 0.0
        %2167 = vmatmul.mubr.f32.gmra.mxu0 %v1819
        %v2168 = vpop.f32.mrf.mxu0
        %v2169 = vadd.f32 %v1855, %v2168
        %v2170 = vpop.f32.mrf.mxu0
        %2171 = vmatprep.mubr.f32.mxu0 0.0
        %2172 = vmatmul.mubr.f32.gmra.mxu0 %v1820
        %v2173 = vpop.f32.mrf.mxu0
        %v2174 = vadd.f32 %v1855, %v2173
        %v2175 = vpop.f32.mrf.mxu0
        %2176 = vmatprep.mubr.f32.mxu0 0.0
        %2177 = vmatmul.mubr.f32.gmra.mxu0 %v1821
        %v2178 = vpop.f32.mrf.mxu0
        %v2179 = vadd.f32 %v1855, %v2178
        %v2180 = vpop.f32.mrf.mxu0
        %2181 = vmatprep.mubr.f32.mxu0 0.0
        %2182 = vmatmul.mubr.f32.gmra.mxu0 %v1822
        %v2183 = vpop.f32.mrf.mxu0
        %v2184 = vadd.f32 %v1855, %v2183
        %v2185 = vpop.f32.mrf.mxu0
        %2186 = vmatprep.mubr.f32.mxu0 0.0
        %2187 = vmatmul.mubr.f32.gmra.mxu0 %v1823
        %v2188 = vpop.f32.mrf.mxu0
        %v2189 = vadd.f32 %v1855, %v2188
        %v2190 = vpop.f32.mrf.mxu0
        %2191 = vmatprep.mubr.f32.mxu0 0.0
        %2192 = vmatmul.mubr.f32.gmra.mxu0 %v1824
        %v2193 = vpop.f32.mrf.mxu0
        %v2194 = vadd.f32 %v1855, %v2193
        %v2195 = vpop.f32.mrf.mxu0
        %2196 = vmatprep.mubr.f32.mxu0 0.0
        %2197 = vmatmul.mubr.f32.gmra.mxu0 %v1825
        %v2198 = vpop.f32.mrf.mxu0
        %v2199 = vadd.f32 %v1855, %v2198
        %v2200 = vpop.f32.mrf.mxu0
        %2201 = vmatprep.mubr.f32.mxu0 0.0
        %2202 = vmatmul.mubr.f32.gmra.mxu0 %v1826
        %v2203 = vpop.f32.mrf.mxu0
        %v2204 = vadd.f32 %v1855, %v2203
        %v2205 = vpop.f32.mrf.mxu0
        %2206 = vmatprep.mubr.f32.mxu0 0.0
        %2207 = vmatmul.mubr.f32.gmra.mxu0 %v1827
        %v2208 = vpop.f32.mrf.mxu0
        %v2209 = vadd.f32 %v1855, %v2208
        %v2210 = vpop.f32.mrf.mxu0
        %2211 = vmatprep.mubr.f32.mxu0 0.0
        %2212 = vmatmul.mubr.f32.gmra.mxu0 %v1828
        %v2213 = vpop.f32.mrf.mxu0
        %v2214 = vadd.f32 %v1855, %v2213
        %v2215 = vpop.f32.mrf.mxu0
        %2216 = vmatprep.mubr.f32.mxu0 0.0
        %2217 = vmatmul.mubr.f32.gmra.mxu0 %v1829
        %v2218 = vpop.f32.mrf.mxu0
        %v2219 = vadd.f32 %v1855, %v2218
        %v2220 = vpop.f32.mrf.mxu0
        %2221 = vmatprep.mubr.f32.mxu0 0.0
        %2222 = vmatmul.mubr.f32.gmra.mxu0 %v1830
        %v2223 = vpop.f32.mrf.mxu0
        %v2224 = vadd.f32 %v1855, %v2223
        %v2225 = vpop.f32.mrf.mxu0
        %2226 = vmatprep.mubr.f32.mxu0 0.0
        %2227 = vmatmul.mubr.f32.gmra.mxu0 %v1831
        %v2228 = vpop.f32.mrf.mxu0
        %v2229 = vadd.f32 %v1855, %v2228
        %v2230 = vpop.f32.mrf.mxu0
        %2231 = vmatprep.mubr.f32.mxu0 0.0
        %2232 = vmatmul.mubr.f32.gmra.mxu0 %v1832
        %v2233 = vpop.f32.mrf.mxu0
        %v2234 = vadd.f32 %v1855, %v2233
        %v2235 = vpop.f32.mrf.mxu0
        %2236 = vmatprep.mubr.f32.mxu0 0.0
        %2237 = vmatmul.mubr.f32.gmra.mxu0 %v1833
        %v2238 = vpop.f32.mrf.mxu0
        %v2239 = vadd.f32 %v1855, %v2238
        %v2240 = vpop.f32.mrf.mxu0
        %2241 = vdwg.mxu0
        %v2242 = vmul.f32 %v1924, 0.5
        %v2243 = vmul.f32 %v1929, 0.5
        %v2244 = vmul.f32 %v1934, 0.5
        %v2245 = vmul.f32 %v1939, 0.5
        %v2246 = vmul.f32 %v1944, 0.5
        %v2247 = vmul.f32 %v1949, 0.5
        %v2248 = vmul.f32 %v1954, 0.5
        %v2249 = vmul.f32 %v1959, 0.5
        %v2250 = vmul.f32 %v1964, 0.5
        %v2251 = vmul.f32 %v1969, 0.5
        %v2252 = vmul.f32 %v1974, 0.5
        %v2253 = vmul.f32 %v1979, 0.5
        %v2254 = vmul.f32 %v1984, 0.5
        %v2255 = vmul.f32 %v1989, 0.5
        %v2256 = vmul.f32 %v1994, 0.5
        %v2257 = vmul.f32 %v1999, 0.5
        %v2258 = vmul.f32 %v2004, 0.5
        %v2259 = vmul.f32 %v2009, 0.5
        %v2260 = vmul.f32 %v2014, 0.5
        %v2261 = vmul.f32 %v2019, 0.5
        %v2262 = vmul.f32 %v2024, 0.5
        %v2263 = vmul.f32 %v2029, 0.5
        %v2264 = vmul.f32 %v2034, 0.5
        %v2265 = vmul.f32 %v2039, 0.5
        %v2266 = vmul.f32 %v2044, 0.5
        %v2267 = vmul.f32 %v2049, 0.5
        %v2268 = vmul.f32 %v2054, 0.5
        %v2269 = vmul.f32 %v2059, 0.5
        %v2270 = vmul.f32 %v2064, 0.5
        %v2271 = vmul.f32 %v2069, 0.5
        %v2272 = vmul.f32 %v2074, 0.5
        %v2273 = vmul.f32 %v2079, 0.5
        %v2274 = vmul.f32 %v2084, 0.5
        %v2275 = vmul.f32 %v2089, 0.5
        %v2276 = vmul.f32 %v2094, 0.5
        %v2277 = vmul.f32 %v2099, 0.5
        %v2278 = vmul.f32 %v2104, 0.5
        %v2279 = vmul.f32 %v2109, 0.5
        %v2280 = vmul.f32 %v2114, 0.5
        %v2281 = vmul.f32 %v2119, 0.5
        %v2282 = vmul.f32 %v2124, 0.5
        %v2283 = vmul.f32 %v2129, 0.5
        %v2284 = vmul.f32 %v2134, 0.5
        %v2285 = vmul.f32 %v2139, 0.5
        %v2286 = vmul.f32 %v2144, 0.5
        %v2287 = vmul.f32 %v2149, 0.5
        %v2288 = vmul.f32 %v2154, 0.5
        %v2289 = vmul.f32 %v2159, 0.5
        %v2290 = vmul.f32 %v2164, 0.5
        %v2291 = vmul.f32 %v2169, 0.5
        %v2292 = vmul.f32 %v2174, 0.5
        %v2293 = vmul.f32 %v2179, 0.5
        %v2294 = vmul.f32 %v2184, 0.5
        %v2295 = vmul.f32 %v2189, 0.5
        %v2296 = vmul.f32 %v2194, 0.5
        %v2297 = vmul.f32 %v2199, 0.5
        %v2298 = vmul.f32 %v2204, 0.5
        %v2299 = vmul.f32 %v2209, 0.5
        %v2300 = vmul.f32 %v2214, 0.5
        %v2301 = vmul.f32 %v2219, 0.5
        %v2302 = vmul.f32 %v2224, 0.5
        %v2303 = vmul.f32 %v2229, 0.5
        %v2304 = vmul.f32 %v2234, 0.5
        %v2305 = vmul.f32 %v2239, 0.5
        %v2306 = vtanh.pop %v2242
        %v2307 = vtanh.pop %v2243
        %v2308 = vtanh.pop %v2244
        %v2309 = vtanh.pop %v2245
        %v2310 = vtanh.pop %v2246
        %v2311 = vtanh.pop %v2247
        %v2312 = vtanh.pop %v2248
        %v2313 = vtanh.pop %v2249
        %v2314 = vtanh.pop %v2250
        %v2315 = vtanh.pop %v2251
        %v2316 = vtanh.pop %v2252
        %v2317 = vtanh.pop %v2253
        %v2318 = vtanh.pop %v2254
        %v2319 = vtanh.pop %v2255
        %v2320 = vtanh.pop %v2256
        %v2321 = vtanh.pop %v2257
        %v2322 = vtanh.pop %v2258
        %v2323 = vtanh.pop %v2259
        %v2324 = vtanh.pop %v2260
        %v2325 = vtanh.pop %v2261
        %v2326 = vtanh.pop %v2262
        %v2327 = vtanh.pop %v2263
        %v2328 = vtanh.pop %v2264
        %v2329 = vtanh.pop %v2265
        %v2330 = vtanh.pop %v2266
        %v2331 = vtanh.pop %v2267
        %v2332 = vtanh.pop %v2268
        %v2333 = vtanh.pop %v2269
        %v2334 = vtanh.pop %v2270
        %v2335 = vtanh.pop %v2271
        %v2336 = vtanh.pop %v2272
        %v2337 = vtanh.pop %v2273
        %v2338 = vtanh.pop %v2274
        %v2339 = vtanh.pop %v2275
        %v2340 = vtanh.pop %v2276
        %v2341 = vtanh.pop %v2277
        %v2342 = vtanh.pop %v2278
        %v2343 = vtanh.pop %v2279
        %v2344 = vtanh.pop %v2280
        %v2345 = vtanh.pop %v2281
        %v2346 = vtanh.pop %v2282
        %v2347 = vtanh.pop %v2283
        %v2348 = vtanh.pop %v2284
        %v2349 = vtanh.pop %v2285
        %v2350 = vtanh.pop %v2286
        %v2351 = vtanh.pop %v2287
        %v2352 = vtanh.pop %v2288
        %v2353 = vtanh.pop %v2289
        %v2354 = vtanh.pop %v2290
        %v2355 = vtanh.pop %v2291
        %v2356 = vtanh.pop %v2292
        %v2357 = vtanh.pop %v2293
        %v2358 = vtanh.pop %v2294
        %v2359 = vtanh.pop %v2295
        %v2360 = vtanh.pop %v2296
        %v2361 = vtanh.pop %v2297
        %v2362 = vtanh.pop %v2298
        %v2363 = vtanh.pop %v2299
        %v2364 = vtanh.pop %v2300
        %v2365 = vtanh.pop %v2301
        %v2366 = vtanh.pop %v2302
        %v2367 = vtanh.pop %v2303
        %v2368 = vtanh.pop %v2304
        %v2369 = vtanh.pop %v2305
        %v2370 = vmul.f32 %v2306, 0.5
        %v2371 = vmul.f32 %v2307, 0.5
        %v2372 = vmul.f32 %v2308, 0.5
        %v2373 = vmul.f32 %v2309, 0.5
        %v2374 = vmul.f32 %v2310, 0.5
        %v2375 = vmul.f32 %v2311, 0.5
        %v2376 = vmul.f32 %v2312, 0.5
        %v2377 = vmul.f32 %v2313, 0.5
        %v2378 = vmul.f32 %v2314, 0.5
        %v2379 = vmul.f32 %v2315, 0.5
        %v2380 = vmul.f32 %v2316, 0.5
        %v2381 = vmul.f32 %v2317, 0.5
        %v2382 = vmul.f32 %v2318, 0.5
        %v2383 = vmul.f32 %v2319, 0.5
        %v2384 = vmul.f32 %v2320, 0.5
        %v2385 = vmul.f32 %v2321, 0.5
        %v2386 = vmul.f32 %v2322, 0.5
        %v2387 = vmul.f32 %v2323, 0.5
        %v2388 = vmul.f32 %v2324, 0.5
        %v2389 = vmul.f32 %v2325, 0.5
        %v2390 = vmul.f32 %v2326, 0.5
        %v2391 = vmul.f32 %v2327, 0.5
        %v2392 = vmul.f32 %v2328, 0.5
        %v2393 = vmul.f32 %v2329, 0.5
        %v2394 = vmul.f32 %v2330, 0.5
        %v2395 = vmul.f32 %v2331, 0.5
        %v2396 = vmul.f32 %v2332, 0.5
        %v2397 = vmul.f32 %v2333, 0.5
        %v2398 = vmul.f32 %v2334, 0.5
        %v2399 = vmul.f32 %v2335, 0.5
        %v2400 = vmul.f32 %v2336, 0.5
        %v2401 = vmul.f32 %v2337, 0.5
        %v2402 = vmul.f32 %v2338, 0.5
        %v2403 = vmul.f32 %v2339, 0.5
        %v2404 = vmul.f32 %v2340, 0.5
        %v2405 = vmul.f32 %v2341, 0.5
        %v2406 = vmul.f32 %v2342, 0.5
        %v2407 = vmul.f32 %v2343, 0.5
        %v2408 = vmul.f32 %v2344, 0.5
        %v2409 = vmul.f32 %v2345, 0.5
        %v2410 = vmul.f32 %v2346, 0.5
        %v2411 = vmul.f32 %v2347, 0.5
        %v2412 = vmul.f32 %v2348, 0.5
        %v2413 = vmul.f32 %v2349, 0.5
        %v2414 = vmul.f32 %v2350, 0.5
        %v2415 = vmul.f32 %v2351, 0.5
        %v2416 = vmul.f32 %v2352, 0.5
        %v2417 = vmul.f32 %v2353, 0.5
        %v2418 = vmul.f32 %v2354, 0.5
        %v2419 = vmul.f32 %v2355, 0.5
        %v2420 = vmul.f32 %v2356, 0.5
        %v2421 = vmul.f32 %v2357, 0.5
        %v2422 = vmul.f32 %v2358, 0.5
        %v2423 = vmul.f32 %v2359, 0.5
        %v2424 = vmul.f32 %v2360, 0.5
        %v2425 = vmul.f32 %v2361, 0.5
        %v2426 = vmul.f32 %v2362, 0.5
        %v2427 = vmul.f32 %v2363, 0.5
        %v2428 = vmul.f32 %v2364, 0.5
        %v2429 = vmul.f32 %v2365, 0.5
        %v2430 = vmul.f32 %v2366, 0.5
        %v2431 = vmul.f32 %v2367, 0.5
        %v2432 = vmul.f32 %v2368, 0.5
        %v2433 = vmul.f32 %v2369, 0.5
        %v2434 = vadd.f32 %v2370, 0.5
        %v2435 = vadd.f32 %v2371, 0.5
        %v2436 = vadd.f32 %v2372, 0.5
        %v2437 = vadd.f32 %v2373, 0.5
        %v2438 = vadd.f32 %v2374, 0.5
        %v2439 = vadd.f32 %v2375, 0.5
        %v2440 = vadd.f32 %v2376, 0.5
        %v2441 = vadd.f32 %v2377, 0.5
        %v2442 = vadd.f32 %v2378, 0.5
        %v2443 = vadd.f32 %v2379, 0.5
        %v2444 = vadd.f32 %v2380, 0.5
        %v2445 = vadd.f32 %v2381, 0.5
        %v2446 = vadd.f32 %v2382, 0.5
        %v2447 = vadd.f32 %v2383, 0.5
        %v2448 = vadd.f32 %v2384, 0.5
        %v2449 = vadd.f32 %v2385, 0.5
        %v2450 = vadd.f32 %v2386, 0.5
        %v2451 = vadd.f32 %v2387, 0.5
        %v2452 = vadd.f32 %v2388, 0.5
        %v2453 = vadd.f32 %v2389, 0.5
        %v2454 = vadd.f32 %v2390, 0.5
        %v2455 = vadd.f32 %v2391, 0.5
        %v2456 = vadd.f32 %v2392, 0.5
        %v2457 = vadd.f32 %v2393, 0.5
        %v2458 = vadd.f32 %v2394, 0.5
        %v2459 = vadd.f32 %v2395, 0.5
        %v2460 = vadd.f32 %v2396, 0.5
        %v2461 = vadd.f32 %v2397, 0.5
        %v2462 = vadd.f32 %v2398, 0.5
        %v2463 = vadd.f32 %v2399, 0.5
        %v2464 = vadd.f32 %v2400, 0.5
        %v2465 = vadd.f32 %v2401, 0.5
        %v2466 = vadd.f32 %v2402, 0.5
        %v2467 = vadd.f32 %v2403, 0.5
        %v2468 = vadd.f32 %v2404, 0.5
        %v2469 = vadd.f32 %v2405, 0.5
        %v2470 = vadd.f32 %v2406, 0.5
        %v2471 = vadd.f32 %v2407, 0.5
        %v2472 = vadd.f32 %v2408, 0.5
        %v2473 = vadd.f32 %v2409, 0.5
        %v2474 = vadd.f32 %v2410, 0.5
        %v2475 = vadd.f32 %v2411, 0.5
        %v2476 = vadd.f32 %v2412, 0.5
        %v2477 = vadd.f32 %v2413, 0.5
        %v2478 = vadd.f32 %v2414, 0.5
        %v2479 = vadd.f32 %v2415, 0.5
        %v2480 = vadd.f32 %v2416, 0.5
        %v2481 = vadd.f32 %v2417, 0.5
        %v2482 = vadd.f32 %v2418, 0.5
        %v2483 = vadd.f32 %v2419, 0.5
        %v2484 = vadd.f32 %v2420, 0.5
        %v2485 = vadd.f32 %v2421, 0.5
        %v2486 = vadd.f32 %v2422, 0.5
        %v2487 = vadd.f32 %v2423, 0.5
        %v2488 = vadd.f32 %v2424, 0.5
        %v2489 = vadd.f32 %v2425, 0.5
        %v2490 = vadd.f32 %v2426, 0.5
        %v2491 = vadd.f32 %v2427, 0.5
        %v2492 = vadd.f32 %v2428, 0.5
        %v2493 = vadd.f32 %v2429, 0.5
        %v2494 = vadd.f32 %v2430, 0.5
        %v2495 = vadd.f32 %v2431, 0.5
        %v2496 = vadd.f32 %v2432, 0.5
        %v2497 = vadd.f32 %v2433, 0.5
        %v2498 = vld [vmem:[%s7] sm:$0xff]
        %v2499 = vld [vmem:[%s7 + $0x8] sm:$0xff]
        %v2500 = vld [vmem:[%s7 + $0x10] sm:$0xff]
        %v2501 = vld [vmem:[%s7 + $0x18] sm:$0xff]
        %v2502 = vld [vmem:[%s7 + $0x20] sm:$0xff]
        %v2503 = vld [vmem:[%s7 + $0x28] sm:$0xff]
        %v2504 = vld [vmem:[%s7 + $0x30] sm:$0xff]
        %v2505 = vld [vmem:[%s7 + $0x38] sm:$0xff]
        %v2506 = vld [vmem:[%s7 + $0x40] sm:$0xff]
        %v2507 = vld [vmem:[%s7 + $0x48] sm:$0xff]
        %v2508 = vld [vmem:[%s7 + $0x50] sm:$0xff]
        %v2509 = vld [vmem:[%s7 + $0x58] sm:$0xff]
        %v2510 = vld [vmem:[%s7 + $0x60] sm:$0xff]
        %v2511 = vld [vmem:[%s7 + $0x68] sm:$0xff]
        %v2512 = vld [vmem:[%s7 + $0x70] sm:$0xff]
        %v2513 = vld [vmem:[%s7 + $0x78] sm:$0xff]
        %v2514 = vld [vmem:[%s8] sm:$0x1]
        %v2516 = vlaneseq
        %v2517 = vshrl.u32 %v2516, 7
        %v2518 = vsub.s32 0, %v2517
        %v2519 = vrot.slane %v2514, %v2518
        %2521 = vmatprep.subr.mxu0 0.0
        %2522 = vmatpush1.msra.mxu0 %v2513
        %2523 = vmatprep.subr.mxu0 0.0
        %2524 = vmatpush1.msra.mxu0 %v2512
        %2525 = vmatprep.subr.mxu0 0.0
        %2526 = vmatpush1.msra.mxu0 %v2511
        %2527 = vmatprep.subr.mxu0 0.0
        %2528 = vmatpush1.msra.mxu0 %v2510
        %2529 = vmatprep.subr.mxu0 0.0
        %2530 = vmatpush1.msra.mxu0 %v2509
        %2531 = vmatprep.subr.mxu0 0.0
        %2532 = vmatpush1.msra.mxu0 %v2508
        %2533 = vmatprep.subr.mxu0 0.0
        %2534 = vmatpush1.msra.mxu0 %v2507
        %2535 = vmatprep.subr.mxu0 0.0
        %2536 = vmatpush1.msra.mxu0 %v2506
        %2537 = vmatprep.subr.mxu0 0.0
        %2538 = vmatpush1.msra.mxu0 %v2505
        %2539 = vmatprep.subr.mxu0 0.0
        %2540 = vmatpush1.msra.mxu0 %v2504
        %2541 = vmatprep.subr.mxu0 0.0
        %2542 = vmatpush1.msra.mxu0 %v2503
        %2543 = vmatprep.subr.mxu0 0.0
        %2544 = vmatpush1.msra.mxu0 %v2502
        %2545 = vmatprep.subr.mxu0 0.0
        %2546 = vmatpush1.msra.mxu0 %v2501
        %2547 = vmatprep.subr.mxu0 0.0
        %2548 = vmatpush1.msra.mxu0 %v2500
        %2549 = vmatprep.subr.mxu0 0.0
        %2550 = vmatpush1.msra.mxu0 %v2499
        %2551 = vmatprep.subr.mxu0 0.0
        %2552 = vmatpush1.msra.mxu0 %v2498
        %2553 = vmatprep.subr.mxu0 0.0
        %2554 = vmatpush2.msra.mxu0 0.0
        %2555 = vmatprep.subr.mxu0 0.0
        %2556 = vmatpush2.msra.mxu0 0.0
        %2557 = vmatprep.subr.mxu0 0.0
        %2558 = vmatpush2.msra.mxu0 0.0
        %2559 = vmatprep.subr.mxu0 0.0
        %2560 = vmatpush2.msra.mxu0 0.0
        %2561 = vmatprep.subr.mxu0 0.0
        %2562 = vmatpush2.msra.mxu0 0.0
        %2563 = vmatprep.subr.mxu0 0.0
        %2564 = vmatpush2.msra.mxu0 0.0
        %2565 = vmatprep.subr.mxu0 0.0
        %2566 = vmatpush2.msra.mxu0 0.0
        %2567 = vmatprep.subr.mxu0 0.0
        %2568 = vmatpush2.msra.mxu0 0.0
        %2569 = vmatprep.subr.mxu0 0.0
        %2570 = vmatpush2.msra.mxu0 0.0
        %2571 = vmatprep.subr.mxu0 0.0
        %2572 = vmatpush2.msra.mxu0 0.0
        %2573 = vmatprep.subr.mxu0 0.0
        %2574 = vmatpush2.msra.mxu0 0.0
        %2575 = vmatprep.subr.mxu0 0.0
        %2576 = vmatpush2.msra.mxu0 0.0
        %2577 = vmatprep.subr.mxu0 0.0
        %2578 = vmatpush2.msra.mxu0 0.0
        %2579 = vmatprep.subr.mxu0 0.0
        %2580 = vmatpush2.msra.mxu0 0.0
        %2581 = vmatprep.subr.mxu0 0.0
        %2582 = vmatpush2.msra.mxu0 0.0
        %2583 = vmatprep.subr.mxu0 0.0
        %2584 = vmatpush2.msra.mxu0 0.0
        %2585 = vmatprep.mubr.f32.mxu0 0.0
        %2586 = vmatmul.mubr.f32.gmra.mxu0 %v2434
        %v2587 = vpop.f32.mrf.mxu0
        %v2588 = vadd.f32 %v2519, %v2587
        %v2589 = vpop.f32.mrf.mxu0
        %2590 = vmatprep.mubr.f32.mxu0 0.0
        %2591 = vmatmul.mubr.f32.gmra.mxu0 %v2435
        %v2592 = vpop.f32.mrf.mxu0
        %v2593 = vadd.f32 %v2519, %v2592
        %v2594 = vpop.f32.mrf.mxu0
        %2595 = vmatprep.mubr.f32.mxu0 0.0
        %2596 = vmatmul.mubr.f32.gmra.mxu0 %v2436
        %v2597 = vpop.f32.mrf.mxu0
        %v2598 = vadd.f32 %v2519, %v2597
        %v2599 = vpop.f32.mrf.mxu0
        %2600 = vmatprep.mubr.f32.mxu0 0.0
        %2601 = vmatmul.mubr.f32.gmra.mxu0 %v2437
        %v2602 = vpop.f32.mrf.mxu0
        %v2603 = vadd.f32 %v2519, %v2602
        %v2604 = vpop.f32.mrf.mxu0
        %2605 = vmatprep.mubr.f32.mxu0 0.0
        %2606 = vmatmul.mubr.f32.gmra.mxu0 %v2438
        %v2607 = vpop.f32.mrf.mxu0
        %v2608 = vadd.f32 %v2519, %v2607
        %v2609 = vpop.f32.mrf.mxu0
        %2610 = vmatprep.mubr.f32.mxu0 0.0
        %2611 = vmatmul.mubr.f32.gmra.mxu0 %v2439
        %v2612 = vpop.f32.mrf.mxu0
        %v2613 = vadd.f32 %v2519, %v2612
        %v2614 = vpop.f32.mrf.mxu0
        %2615 = vmatprep.mubr.f32.mxu0 0.0
        %2616 = vmatmul.mubr.f32.gmra.mxu0 %v2440
        %v2617 = vpop.f32.mrf.mxu0
        %v2618 = vadd.f32 %v2519, %v2617
        %v2619 = vpop.f32.mrf.mxu0
        %2620 = vmatprep.mubr.f32.mxu0 0.0
        %2621 = vmatmul.mubr.f32.gmra.mxu0 %v2441
        %v2622 = vpop.f32.mrf.mxu0
        %v2623 = vadd.f32 %v2519, %v2622
        %v2624 = vpop.f32.mrf.mxu0
        %2625 = vmatprep.mubr.f32.mxu0 0.0
        %2626 = vmatmul.mubr.f32.gmra.mxu0 %v2442
        %v2627 = vpop.f32.mrf.mxu0
        %v2628 = vadd.f32 %v2519, %v2627
        %v2629 = vpop.f32.mrf.mxu0
        %2630 = vmatprep.mubr.f32.mxu0 0.0
        %2631 = vmatmul.mubr.f32.gmra.mxu0 %v2443
        %v2632 = vpop.f32.mrf.mxu0
        %v2633 = vadd.f32 %v2519, %v2632
        %v2634 = vpop.f32.mrf.mxu0
        %2635 = vmatprep.mubr.f32.mxu0 0.0
        %2636 = vmatmul.mubr.f32.gmra.mxu0 %v2444
        %v2637 = vpop.f32.mrf.mxu0
        %v2638 = vadd.f32 %v2519, %v2637
        %v2639 = vpop.f32.mrf.mxu0
        %2640 = vmatprep.mubr.f32.mxu0 0.0
        %2641 = vmatmul.mubr.f32.gmra.mxu0 %v2445
        %v2642 = vpop.f32.mrf.mxu0
        %v2643 = vadd.f32 %v2519, %v2642
        %v2644 = vpop.f32.mrf.mxu0
        %2645 = vmatprep.mubr.f32.mxu0 0.0
        %2646 = vmatmul.mubr.f32.gmra.mxu0 %v2446
        %v2647 = vpop.f32.mrf.mxu0
        %v2648 = vadd.f32 %v2519, %v2647
        %v2649 = vpop.f32.mrf.mxu0
        %2650 = vmatprep.mubr.f32.mxu0 0.0
        %2651 = vmatmul.mubr.f32.gmra.mxu0 %v2447
        %v2652 = vpop.f32.mrf.mxu0
        %v2653 = vadd.f32 %v2519, %v2652
        %v2654 = vpop.f32.mrf.mxu0
        %2655 = vmatprep.mubr.f32.mxu0 0.0
        %2656 = vmatmul.mubr.f32.gmra.mxu0 %v2448
        %v2657 = vpop.f32.mrf.mxu0
        %v2658 = vadd.f32 %v2519, %v2657
        %v2659 = vpop.f32.mrf.mxu0
        %2660 = vmatprep.mubr.f32.mxu0 0.0
        %2661 = vmatmul.mubr.f32.gmra.mxu0 %v2449
        %v2662 = vpop.f32.mrf.mxu0
        %v2663 = vadd.f32 %v2519, %v2662
        %v2664 = vpop.f32.mrf.mxu0
        %2665 = vmatprep.mubr.f32.mxu0 0.0
        %2666 = vmatmul.mubr.f32.gmra.mxu0 %v2450
        %v2667 = vpop.f32.mrf.mxu0
        %v2668 = vadd.f32 %v2519, %v2667
        %v2669 = vpop.f32.mrf.mxu0
        %2670 = vmatprep.mubr.f32.mxu0 0.0
        %2671 = vmatmul.mubr.f32.gmra.mxu0 %v2451
        %v2672 = vpop.f32.mrf.mxu0
        %v2673 = vadd.f32 %v2519, %v2672
        %v2674 = vpop.f32.mrf.mxu0
        %2675 = vmatprep.mubr.f32.mxu0 0.0
        %2676 = vmatmul.mubr.f32.gmra.mxu0 %v2452
        %v2677 = vpop.f32.mrf.mxu0
        %v2678 = vadd.f32 %v2519, %v2677
        %v2679 = vpop.f32.mrf.mxu0
        %2680 = vmatprep.mubr.f32.mxu0 0.0
        %2681 = vmatmul.mubr.f32.gmra.mxu0 %v2453
        %v2682 = vpop.f32.mrf.mxu0
        %v2683 = vadd.f32 %v2519, %v2682
        %v2684 = vpop.f32.mrf.mxu0
        %2685 = vmatprep.mubr.f32.mxu0 0.0
        %2686 = vmatmul.mubr.f32.gmra.mxu0 %v2454
        %v2687 = vpop.f32.mrf.mxu0
        %v2688 = vadd.f32 %v2519, %v2687
        %v2689 = vpop.f32.mrf.mxu0
        %2690 = vmatprep.mubr.f32.mxu0 0.0
        %2691 = vmatmul.mubr.f32.gmra.mxu0 %v2455
        %v2692 = vpop.f32.mrf.mxu0
        %v2693 = vadd.f32 %v2519, %v2692
        %v2694 = vpop.f32.mrf.mxu0
        %2695 = vmatprep.mubr.f32.mxu0 0.0
        %2696 = vmatmul.mubr.f32.gmra.mxu0 %v2456
        %v2697 = vpop.f32.mrf.mxu0
        %v2698 = vadd.f32 %v2519, %v2697
        %v2699 = vpop.f32.mrf.mxu0
        %2700 = vmatprep.mubr.f32.mxu0 0.0
        %2701 = vmatmul.mubr.f32.gmra.mxu0 %v2457
        %v2702 = vpop.f32.mrf.mxu0
        %v2703 = vadd.f32 %v2519, %v2702
        %v2704 = vpop.f32.mrf.mxu0
        %2705 = vmatprep.mubr.f32.mxu0 0.0
        %2706 = vmatmul.mubr.f32.gmra.mxu0 %v2458
        %v2707 = vpop.f32.mrf.mxu0
        %v2708 = vadd.f32 %v2519, %v2707
        %v2709 = vpop.f32.mrf.mxu0
        %2710 = vmatprep.mubr.f32.mxu0 0.0
        %2711 = vmatmul.mubr.f32.gmra.mxu0 %v2459
        %v2712 = vpop.f32.mrf.mxu0
        %v2713 = vadd.f32 %v2519, %v2712
        %v2714 = vpop.f32.mrf.mxu0
        %2715 = vmatprep.mubr.f32.mxu0 0.0
        %2716 = vmatmul.mubr.f32.gmra.mxu0 %v2460
        %v2717 = vpop.f32.mrf.mxu0
        %v2718 = vadd.f32 %v2519, %v2717
        %v2719 = vpop.f32.mrf.mxu0
        %2720 = vmatprep.mubr.f32.mxu0 0.0
        %2721 = vmatmul.mubr.f32.gmra.mxu0 %v2461
        %v2722 = vpop.f32.mrf.mxu0
        %v2723 = vadd.f32 %v2519, %v2722
        %v2724 = vpop.f32.mrf.mxu0
        %2725 = vmatprep.mubr.f32.mxu0 0.0
        %2726 = vmatmul.mubr.f32.gmra.mxu0 %v2462
        %v2727 = vpop.f32.mrf.mxu0
        %v2728 = vadd.f32 %v2519, %v2727
        %v2729 = vpop.f32.mrf.mxu0
        %2730 = vmatprep.mubr.f32.mxu0 0.0
        %2731 = vmatmul.mubr.f32.gmra.mxu0 %v2463
        %v2732 = vpop.f32.mrf.mxu0
        %v2733 = vadd.f32 %v2519, %v2732
        %v2734 = vpop.f32.mrf.mxu0
        %2735 = vmatprep.mubr.f32.mxu0 0.0
        %2736 = vmatmul.mubr.f32.gmra.mxu0 %v2464
        %v2737 = vpop.f32.mrf.mxu0
        %v2738 = vadd.f32 %v2519, %v2737
        %v2739 = vpop.f32.mrf.mxu0
        %2740 = vmatprep.mubr.f32.mxu0 0.0
        %2741 = vmatmul.mubr.f32.gmra.mxu0 %v2465
        %v2742 = vpop.f32.mrf.mxu0
        %v2743 = vadd.f32 %v2519, %v2742
        %v2744 = vpop.f32.mrf.mxu0
        %2745 = vmatprep.mubr.f32.mxu0 0.0
        %2746 = vmatmul.mubr.f32.gmra.mxu0 %v2466
        %v2747 = vpop.f32.mrf.mxu0
        %v2748 = vadd.f32 %v2519, %v2747
        %v2749 = vpop.f32.mrf.mxu0
        %2750 = vmatprep.mubr.f32.mxu0 0.0
        %2751 = vmatmul.mubr.f32.gmra.mxu0 %v2467
        %v2752 = vpop.f32.mrf.mxu0
        %v2753 = vadd.f32 %v2519, %v2752
        %v2754 = vpop.f32.mrf.mxu0
        %2755 = vmatprep.mubr.f32.mxu0 0.0
        %2756 = vmatmul.mubr.f32.gmra.mxu0 %v2468
        %v2757 = vpop.f32.mrf.mxu0
        %v2758 = vadd.f32 %v2519, %v2757
        %v2759 = vpop.f32.mrf.mxu0
        %2760 = vmatprep.mubr.f32.mxu0 0.0
        %2761 = vmatmul.mubr.f32.gmra.mxu0 %v2469
        %v2762 = vpop.f32.mrf.mxu0
        %v2763 = vadd.f32 %v2519, %v2762
        %v2764 = vpop.f32.mrf.mxu0
        %2765 = vmatprep.mubr.f32.mxu0 0.0
        %2766 = vmatmul.mubr.f32.gmra.mxu0 %v2470
        %v2767 = vpop.f32.mrf.mxu0
        %v2768 = vadd.f32 %v2519, %v2767
        %v2769 = vpop.f32.mrf.mxu0
        %2770 = vmatprep.mubr.f32.mxu0 0.0
        %2771 = vmatmul.mubr.f32.gmra.mxu0 %v2471
        %v2772 = vpop.f32.mrf.mxu0
        %v2773 = vadd.f32 %v2519, %v2772
        %v2774 = vpop.f32.mrf.mxu0
        %2775 = vmatprep.mubr.f32.mxu0 0.0
        %2776 = vmatmul.mubr.f32.gmra.mxu0 %v2472
        %v2777 = vpop.f32.mrf.mxu0
        %v2778 = vadd.f32 %v2519, %v2777
        %v2779 = vpop.f32.mrf.mxu0
        %2780 = vmatprep.mubr.f32.mxu0 0.0
        %2781 = vmatmul.mubr.f32.gmra.mxu0 %v2473
        %v2782 = vpop.f32.mrf.mxu0
        %v2783 = vadd.f32 %v2519, %v2782
        %v2784 = vpop.f32.mrf.mxu0
        %2785 = vmatprep.mubr.f32.mxu0 0.0
        %2786 = vmatmul.mubr.f32.gmra.mxu0 %v2474
        %v2787 = vpop.f32.mrf.mxu0
        %v2788 = vadd.f32 %v2519, %v2787
        %v2789 = vpop.f32.mrf.mxu0
        %2790 = vmatprep.mubr.f32.mxu0 0.0
        %2791 = vmatmul.mubr.f32.gmra.mxu0 %v2475
        %v2792 = vpop.f32.mrf.mxu0
        %v2793 = vadd.f32 %v2519, %v2792
        %v2794 = vpop.f32.mrf.mxu0
        %2795 = vmatprep.mubr.f32.mxu0 0.0
        %2796 = vmatmul.mubr.f32.gmra.mxu0 %v2476
        %v2797 = vpop.f32.mrf.mxu0
        %v2798 = vadd.f32 %v2519, %v2797
        %v2799 = vpop.f32.mrf.mxu0
        %2800 = vmatprep.mubr.f32.mxu0 0.0
        %2801 = vmatmul.mubr.f32.gmra.mxu0 %v2477
        %v2802 = vpop.f32.mrf.mxu0
        %v2803 = vadd.f32 %v2519, %v2802
        %v2804 = vpop.f32.mrf.mxu0
        %2805 = vmatprep.mubr.f32.mxu0 0.0
        %2806 = vmatmul.mubr.f32.gmra.mxu0 %v2478
        %v2807 = vpop.f32.mrf.mxu0
        %v2808 = vadd.f32 %v2519, %v2807
        %v2809 = vpop.f32.mrf.mxu0
        %2810 = vmatprep.mubr.f32.mxu0 0.0
        %2811 = vmatmul.mubr.f32.gmra.mxu0 %v2479
        %v2812 = vpop.f32.mrf.mxu0
        %v2813 = vadd.f32 %v2519, %v2812
        %v2814 = vpop.f32.mrf.mxu0
        %2815 = vmatprep.mubr.f32.mxu0 0.0
        %2816 = vmatmul.mubr.f32.gmra.mxu0 %v2480
        %v2817 = vpop.f32.mrf.mxu0
        %v2818 = vadd.f32 %v2519, %v2817
        %v2819 = vpop.f32.mrf.mxu0
        %2820 = vmatprep.mubr.f32.mxu0 0.0
        %2821 = vmatmul.mubr.f32.gmra.mxu0 %v2481
        %v2822 = vpop.f32.mrf.mxu0
        %v2823 = vadd.f32 %v2519, %v2822
        %v2824 = vpop.f32.mrf.mxu0
        %2825 = vmatprep.mubr.f32.mxu0 0.0
        %2826 = vmatmul.mubr.f32.gmra.mxu0 %v2482
        %v2827 = vpop.f32.mrf.mxu0
        %v2828 = vadd.f32 %v2519, %v2827
        %v2829 = vpop.f32.mrf.mxu0
        %2830 = vmatprep.mubr.f32.mxu0 0.0
        %2831 = vmatmul.mubr.f32.gmra.mxu0 %v2483
        %v2832 = vpop.f32.mrf.mxu0
        %v2833 = vadd.f32 %v2519, %v2832
        %v2834 = vpop.f32.mrf.mxu0
        %2835 = vmatprep.mubr.f32.mxu0 0.0
        %2836 = vmatmul.mubr.f32.gmra.mxu0 %v2484
        %v2837 = vpop.f32.mrf.mxu0
        %v2838 = vadd.f32 %v2519, %v2837
        %v2839 = vpop.f32.mrf.mxu0
        %2840 = vmatprep.mubr.f32.mxu0 0.0
        %2841 = vmatmul.mubr.f32.gmra.mxu0 %v2485
        %v2842 = vpop.f32.mrf.mxu0
        %v2843 = vadd.f32 %v2519, %v2842
        %v2844 = vpop.f32.mrf.mxu0
        %2845 = vmatprep.mubr.f32.mxu0 0.0
        %2846 = vmatmul.mubr.f32.gmra.mxu0 %v2486
        %v2847 = vpop.f32.mrf.mxu0
        %v2848 = vadd.f32 %v2519, %v2847
        %v2849 = vpop.f32.mrf.mxu0
        %2850 = vmatprep.mubr.f32.mxu0 0.0
        %2851 = vmatmul.mubr.f32.gmra.mxu0 %v2487
        %v2852 = vpop.f32.mrf.mxu0
        %v2853 = vadd.f32 %v2519, %v2852
        %v2854 = vpop.f32.mrf.mxu0
        %2855 = vmatprep.mubr.f32.mxu0 0.0
        %2856 = vmatmul.mubr.f32.gmra.mxu0 %v2488
        %v2857 = vpop.f32.mrf.mxu0
        %v2858 = vadd.f32 %v2519, %v2857
        %v2859 = vpop.f32.mrf.mxu0
        %2860 = vmatprep.mubr.f32.mxu0 0.0
        %2861 = vmatmul.mubr.f32.gmra.mxu0 %v2489
        %v2862 = vpop.f32.mrf.mxu0
        %v2863 = vadd.f32 %v2519, %v2862
        %v2864 = vpop.f32.mrf.mxu0
        %2865 = vmatprep.mubr.f32.mxu0 0.0
        %2866 = vmatmul.mubr.f32.gmra.mxu0 %v2490
        %v2867 = vpop.f32.mrf.mxu0
        %v2868 = vadd.f32 %v2519, %v2867
        %v2869 = vpop.f32.mrf.mxu0
        %2870 = vmatprep.mubr.f32.mxu0 0.0
        %2871 = vmatmul.mubr.f32.gmra.mxu0 %v2491
        %v2872 = vpop.f32.mrf.mxu0
        %v2873 = vadd.f32 %v2519, %v2872
        %v2874 = vpop.f32.mrf.mxu0
        %2875 = vmatprep.mubr.f32.mxu0 0.0
        %2876 = vmatmul.mubr.f32.gmra.mxu0 %v2492
        %v2877 = vpop.f32.mrf.mxu0
        %v2878 = vadd.f32 %v2519, %v2877
        %v2879 = vpop.f32.mrf.mxu0
        %2880 = vmatprep.mubr.f32.mxu0 0.0
        %2881 = vmatmul.mubr.f32.gmra.mxu0 %v2493
        %v2882 = vpop.f32.mrf.mxu0
        %v2883 = vadd.f32 %v2519, %v2882
        %v2884 = vpop.f32.mrf.mxu0
        %2885 = vmatprep.mubr.f32.mxu0 0.0
        %2886 = vmatmul.mubr.f32.gmra.mxu0 %v2494
        %v2887 = vpop.f32.mrf.mxu0
        %v2888 = vadd.f32 %v2519, %v2887
        %v2889 = vpop.f32.mrf.mxu0
        %2890 = vmatprep.mubr.f32.mxu0 0.0
        %2891 = vmatmul.mubr.f32.gmra.mxu0 %v2495
        %v2892 = vpop.f32.mrf.mxu0
        %v2893 = vadd.f32 %v2519, %v2892
        %v2894 = vpop.f32.mrf.mxu0
        %2895 = vmatprep.mubr.f32.mxu0 0.0
        %2896 = vmatmul.mubr.f32.gmra.mxu0 %v2496
        %v2897 = vpop.f32.mrf.mxu0
        %v2898 = vadd.f32 %v2519, %v2897
        %v2899 = vpop.f32.mrf.mxu0
        %2900 = vmatprep.mubr.f32.mxu0 0.0
        %2901 = vmatmul.mubr.f32.gmra.mxu0 %v2497
        %v2902 = vpop.f32.mrf.mxu0
        %v2903 = vadd.f32 %v2519, %v2902
        %v2904 = vpop.f32.mrf.mxu0
        %2905 = vdwg.mxu0
        %v2906 = vmul.f32 %v2588, 0.5
        %v2907 = vmul.f32 %v2593, 0.5
        %v2908 = vmul.f32 %v2598, 0.5
        %v2909 = vmul.f32 %v2603, 0.5
        %v2910 = vmul.f32 %v2608, 0.5
        %v2911 = vmul.f32 %v2613, 0.5
        %v2912 = vmul.f32 %v2618, 0.5
        %v2913 = vmul.f32 %v2623, 0.5
        %v2914 = vmul.f32 %v2628, 0.5
        %v2915 = vmul.f32 %v2633, 0.5
        %v2916 = vmul.f32 %v2638, 0.5
        %v2917 = vmul.f32 %v2643, 0.5
        %v2918 = vmul.f32 %v2648, 0.5
        %v2919 = vmul.f32 %v2653, 0.5
        %v2920 = vmul.f32 %v2658, 0.5
        %v2921 = vmul.f32 %v2663, 0.5
        %v2922 = vmul.f32 %v2668, 0.5
        %v2923 = vmul.f32 %v2673, 0.5
        %v2924 = vmul.f32 %v2678, 0.5
        %v2925 = vmul.f32 %v2683, 0.5
        %v2926 = vmul.f32 %v2688, 0.5
        %v2927 = vmul.f32 %v2693, 0.5
        %v2928 = vmul.f32 %v2698, 0.5
        %v2929 = vmul.f32 %v2703, 0.5
        %v2930 = vmul.f32 %v2708, 0.5
        %v2931 = vmul.f32 %v2713, 0.5
        %v2932 = vmul.f32 %v2718, 0.5
        %v2933 = vmul.f32 %v2723, 0.5
        %v2934 = vmul.f32 %v2728, 0.5
        %v2935 = vmul.f32 %v2733, 0.5
        %v2936 = vmul.f32 %v2738, 0.5
        %v2937 = vmul.f32 %v2743, 0.5
        %v2938 = vmul.f32 %v2748, 0.5
        %v2939 = vmul.f32 %v2753, 0.5
        %v2940 = vmul.f32 %v2758, 0.5
        %v2941 = vmul.f32 %v2763, 0.5
        %v2942 = vmul.f32 %v2768, 0.5
        %v2943 = vmul.f32 %v2773, 0.5
        %v2944 = vmul.f32 %v2778, 0.5
        %v2945 = vmul.f32 %v2783, 0.5
        %v2946 = vmul.f32 %v2788, 0.5
        %v2947 = vmul.f32 %v2793, 0.5
        %v2948 = vmul.f32 %v2798, 0.5
        %v2949 = vmul.f32 %v2803, 0.5
        %v2950 = vmul.f32 %v2808, 0.5
        %v2951 = vmul.f32 %v2813, 0.5
        %v2952 = vmul.f32 %v2818, 0.5
        %v2953 = vmul.f32 %v2823, 0.5
        %v2954 = vmul.f32 %v2828, 0.5
        %v2955 = vmul.f32 %v2833, 0.5
        %v2956 = vmul.f32 %v2838, 0.5
        %v2957 = vmul.f32 %v2843, 0.5
        %v2958 = vmul.f32 %v2848, 0.5
        %v2959 = vmul.f32 %v2853, 0.5
        %v2960 = vmul.f32 %v2858, 0.5
        %v2961 = vmul.f32 %v2863, 0.5
        %v2962 = vmul.f32 %v2868, 0.5
        %v2963 = vmul.f32 %v2873, 0.5
        %v2964 = vmul.f32 %v2878, 0.5
        %v2965 = vmul.f32 %v2883, 0.5
        %v2966 = vmul.f32 %v2888, 0.5
        %v2967 = vmul.f32 %v2893, 0.5
        %v2968 = vmul.f32 %v2898, 0.5
        %v2969 = vmul.f32 %v2903, 0.5
        %v2970 = vtanh.pop %v2906
        %v2971 = vtanh.pop %v2907
        %v2972 = vtanh.pop %v2908
        %v2973 = vtanh.pop %v2909
        %v2974 = vtanh.pop %v2910
        %v2975 = vtanh.pop %v2911
        %v2976 = vtanh.pop %v2912
        %v2977 = vtanh.pop %v2913
        %v2978 = vtanh.pop %v2914
        %v2979 = vtanh.pop %v2915
        %v2980 = vtanh.pop %v2916
        %v2981 = vtanh.pop %v2917
        %v2982 = vtanh.pop %v2918
        %v2983 = vtanh.pop %v2919
        %v2984 = vtanh.pop %v2920
        %v2985 = vtanh.pop %v2921
        %v2986 = vtanh.pop %v2922
        %v2987 = vtanh.pop %v2923
        %v2988 = vtanh.pop %v2924
        %v2989 = vtanh.pop %v2925
        %v2990 = vtanh.pop %v2926
        %v2991 = vtanh.pop %v2927
        %v2992 = vtanh.pop %v2928
        %v2993 = vtanh.pop %v2929
        %v2994 = vtanh.pop %v2930
        %v2995 = vtanh.pop %v2931
        %v2996 = vtanh.pop %v2932
        %v2997 = vtanh.pop %v2933
        %v2998 = vtanh.pop %v2934
        %v2999 = vtanh.pop %v2935
        %v3000 = vtanh.pop %v2936
        %v3001 = vtanh.pop %v2937
        %v3002 = vtanh.pop %v2938
        %v3003 = vtanh.pop %v2939
        %v3004 = vtanh.pop %v2940
        %v3005 = vtanh.pop %v2941
        %v3006 = vtanh.pop %v2942
        %v3007 = vtanh.pop %v2943
        %v3008 = vtanh.pop %v2944
        %v3009 = vtanh.pop %v2945
        %v3010 = vtanh.pop %v2946
        %v3011 = vtanh.pop %v2947
        %v3012 = vtanh.pop %v2948
        %v3013 = vtanh.pop %v2949
        %v3014 = vtanh.pop %v2950
        %v3015 = vtanh.pop %v2951
        %v3016 = vtanh.pop %v2952
        %v3017 = vtanh.pop %v2953
        %v3018 = vtanh.pop %v2954
        %v3019 = vtanh.pop %v2955
        %v3020 = vtanh.pop %v2956
        %v3021 = vtanh.pop %v2957
        %v3022 = vtanh.pop %v2958
        %v3023 = vtanh.pop %v2959
        %v3024 = vtanh.pop %v2960
        %v3025 = vtanh.pop %v2961
        %v3026 = vtanh.pop %v2962
        %v3027 = vtanh.pop %v2963
        %v3028 = vtanh.pop %v2964
        %v3029 = vtanh.pop %v2965
        %v3030 = vtanh.pop %v2966
        %v3031 = vtanh.pop %v2967
        %v3032 = vtanh.pop %v2968
        %v3033 = vtanh.pop %v2969
        %v3034 = vmul.f32 %v2970, 0.5
        %v3035 = vmul.f32 %v2971, 0.5
        %v3036 = vmul.f32 %v2972, 0.5
        %v3037 = vmul.f32 %v2973, 0.5
        %v3038 = vmul.f32 %v2974, 0.5
        %v3039 = vmul.f32 %v2975, 0.5
        %v3040 = vmul.f32 %v2976, 0.5
        %v3041 = vmul.f32 %v2977, 0.5
        %v3042 = vmul.f32 %v2978, 0.5
        %v3043 = vmul.f32 %v2979, 0.5
        %v3044 = vmul.f32 %v2980, 0.5
        %v3045 = vmul.f32 %v2981, 0.5
        %v3046 = vmul.f32 %v2982, 0.5
        %v3047 = vmul.f32 %v2983, 0.5
        %v3048 = vmul.f32 %v2984, 0.5
        %v3049 = vmul.f32 %v2985, 0.5
        %v3050 = vmul.f32 %v2986, 0.5
        %v3051 = vmul.f32 %v2987, 0.5
        %v3052 = vmul.f32 %v2988, 0.5
        %v3053 = vmul.f32 %v2989, 0.5
        %v3054 = vmul.f32 %v2990, 0.5
        %v3055 = vmul.f32 %v2991, 0.5
        %v3056 = vmul.f32 %v2992, 0.5
        %v3057 = vmul.f32 %v2993, 0.5
        %v3058 = vmul.f32 %v2994, 0.5
        %v3059 = vmul.f32 %v2995, 0.5
        %v3060 = vmul.f32 %v2996, 0.5
        %v3061 = vmul.f32 %v2997, 0.5
        %v3062 = vmul.f32 %v2998, 0.5
        %v3063 = vmul.f32 %v2999, 0.5
        %v3064 = vmul.f32 %v3000, 0.5
        %v3065 = vmul.f32 %v3001, 0.5
        %v3066 = vmul.f32 %v3002, 0.5
        %v3067 = vmul.f32 %v3003, 0.5
        %v3068 = vmul.f32 %v3004, 0.5
        %v3069 = vmul.f32 %v3005, 0.5
        %v3070 = vmul.f32 %v3006, 0.5
        %v3071 = vmul.f32 %v3007, 0.5
        %v3072 = vmul.f32 %v3008, 0.5
        %v3073 = vmul.f32 %v3009, 0.5
        %v3074 = vmul.f32 %v3010, 0.5
        %v3075 = vmul.f32 %v3011, 0.5
        %v3076 = vmul.f32 %v3012, 0.5
        %v3077 = vmul.f32 %v3013, 0.5
        %v3078 = vmul.f32 %v3014, 0.5
        %v3079 = vmul.f32 %v3015, 0.5
        %v3080 = vmul.f32 %v3016, 0.5
        %v3081 = vmul.f32 %v3017, 0.5
        %v3082 = vmul.f32 %v3018, 0.5
        %v3083 = vmul.f32 %v3019, 0.5
        %v3084 = vmul.f32 %v3020, 0.5
        %v3085 = vmul.f32 %v3021, 0.5
        %v3086 = vmul.f32 %v3022, 0.5
        %v3087 = vmul.f32 %v3023, 0.5
        %v3088 = vmul.f32 %v3024, 0.5
        %v3089 = vmul.f32 %v3025, 0.5
        %v3090 = vmul.f32 %v3026, 0.5
        %v3091 = vmul.f32 %v3027, 0.5
        %v3092 = vmul.f32 %v3028, 0.5
        %v3093 = vmul.f32 %v3029, 0.5
        %v3094 = vmul.f32 %v3030, 0.5
        %v3095 = vmul.f32 %v3031, 0.5
        %v3096 = vmul.f32 %v3032, 0.5
        %v3097 = vmul.f32 %v3033, 0.5
        %v3098 = vadd.f32 %v3034, 0.5
        %v3099 = vadd.f32 %v3035, 0.5
        %v3100 = vadd.f32 %v3036, 0.5
        %v3101 = vadd.f32 %v3037, 0.5
        %v3102 = vadd.f32 %v3038, 0.5
        %v3103 = vadd.f32 %v3039, 0.5
        %v3104 = vadd.f32 %v3040, 0.5
        %v3105 = vadd.f32 %v3041, 0.5
        %v3106 = vadd.f32 %v3042, 0.5
        %v3107 = vadd.f32 %v3043, 0.5
        %v3108 = vadd.f32 %v3044, 0.5
        %v3109 = vadd.f32 %v3045, 0.5
        %v3110 = vadd.f32 %v3046, 0.5
        %v3111 = vadd.f32 %v3047, 0.5
        %v3112 = vadd.f32 %v3048, 0.5
        %v3113 = vadd.f32 %v3049, 0.5
        %v3114 = vadd.f32 %v3050, 0.5
        %v3115 = vadd.f32 %v3051, 0.5
        %v3116 = vadd.f32 %v3052, 0.5
        %v3117 = vadd.f32 %v3053, 0.5
        %v3118 = vadd.f32 %v3054, 0.5
        %v3119 = vadd.f32 %v3055, 0.5
        %v3120 = vadd.f32 %v3056, 0.5
        %v3121 = vadd.f32 %v3057, 0.5
        %v3122 = vadd.f32 %v3058, 0.5
        %v3123 = vadd.f32 %v3059, 0.5
        %v3124 = vadd.f32 %v3060, 0.5
        %v3125 = vadd.f32 %v3061, 0.5
        %v3126 = vadd.f32 %v3062, 0.5
        %v3127 = vadd.f32 %v3063, 0.5
        %v3128 = vadd.f32 %v3064, 0.5
        %v3129 = vadd.f32 %v3065, 0.5
        %v3130 = vadd.f32 %v3066, 0.5
        %v3131 = vadd.f32 %v3067, 0.5
        %v3132 = vadd.f32 %v3068, 0.5
        %v3133 = vadd.f32 %v3069, 0.5
        %v3134 = vadd.f32 %v3070, 0.5
        %v3135 = vadd.f32 %v3071, 0.5
        %v3136 = vadd.f32 %v3072, 0.5
        %v3137 = vadd.f32 %v3073, 0.5
        %v3138 = vadd.f32 %v3074, 0.5
        %v3139 = vadd.f32 %v3075, 0.5
        %v3140 = vadd.f32 %v3076, 0.5
        %v3141 = vadd.f32 %v3077, 0.5
        %v3142 = vadd.f32 %v3078, 0.5
        %v3143 = vadd.f32 %v3079, 0.5
        %v3144 = vadd.f32 %v3080, 0.5
        %v3145 = vadd.f32 %v3081, 0.5
        %v3146 = vadd.f32 %v3082, 0.5
        %v3147 = vadd.f32 %v3083, 0.5
        %v3148 = vadd.f32 %v3084, 0.5
        %v3149 = vadd.f32 %v3085, 0.5
        %v3150 = vadd.f32 %v3086, 0.5
        %v3151 = vadd.f32 %v3087, 0.5
        %v3152 = vadd.f32 %v3088, 0.5
        %v3153 = vadd.f32 %v3089, 0.5
        %v3154 = vadd.f32 %v3090, 0.5
        %v3155 = vadd.f32 %v3091, 0.5
        %v3156 = vadd.f32 %v3092, 0.5
        %v3157 = vadd.f32 %v3093, 0.5
        %v3158 = vadd.f32 %v3094, 0.5
        %v3159 = vadd.f32 %v3095, 0.5
        %v3160 = vadd.f32 %v3096, 0.5
        %v3161 = vadd.f32 %v3097, 0.5
        %v3162 = vld [vmem:[%s9] sm:$0xff]
        %v3163 = vld [vmem:[%s10] sm:$0xff]
        %3165 = vset.pattern.permute.xlu0 0
        %3166 = vperm.xlu0 %3165, %v3163
        %v3167 = vpop.permute.xlu0 %3166
        %3169 = vmatprep.subr.mxu0 0.0
        %3170 = vmatpush1.xpose.msra.mxu0 %v3113
        %3171 = vmatprep.subr.mxu0 0.0
        %3172 = vmatpush1.xpose.msra.mxu0 %v3112
        %3173 = vmatprep.subr.mxu0 0.0
        %3174 = vmatpush1.xpose.msra.mxu0 %v3111
        %3175 = vmatprep.subr.mxu0 0.0
        %3176 = vmatpush1.xpose.msra.mxu0 %v3110
        %3177 = vmatprep.subr.mxu0 0.0
        %3178 = vmatpush1.xpose.msra.mxu0 %v3109
        %3179 = vmatprep.subr.mxu0 0.0
        %3180 = vmatpush1.xpose.msra.mxu0 %v3108
        %3181 = vmatprep.subr.mxu0 0.0
        %3182 = vmatpush1.xpose.msra.mxu0 %v3107
        %3183 = vmatprep.subr.mxu0 0.0
        %3184 = vmatpush1.xpose.msra.mxu0 %v3106
        %3185 = vmatprep.subr.mxu0 0.0
        %3186 = vmatpush1.xpose.msra.mxu0 %v3105
        %3187 = vmatprep.subr.mxu0 0.0
        %3188 = vmatpush1.xpose.msra.mxu0 %v3104
        %3189 = vmatprep.subr.mxu0 0.0
        %3190 = vmatpush1.xpose.msra.mxu0 %v3103
        %3191 = vmatprep.subr.mxu0 0.0
        %3192 = vmatpush1.xpose.msra.mxu0 %v3102
        %3193 = vmatprep.subr.mxu0 0.0
        %3194 = vmatpush1.xpose.msra.mxu0 %v3101
        %3195 = vmatprep.subr.mxu0 0.0
        %3196 = vmatpush1.xpose.msra.mxu0 %v3100
        %3197 = vmatprep.subr.mxu0 0.0
        %3198 = vmatpush1.xpose.msra.mxu0 %v3099
        %3199 = vmatprep.subr.mxu0 0.0
        %3200 = vmatpush1.xpose.msra.mxu0 %v3098
        %3201 = vmatprep.subr.mxu0 0.0
        %3202 = vmatpush2.xpose.msra.mxu0 %v3129
        %3203 = vmatprep.subr.mxu0 0.0
        %3204 = vmatpush2.xpose.msra.mxu0 %v3128
        %3205 = vmatprep.subr.mxu0 0.0
        %3206 = vmatpush2.xpose.msra.mxu0 %v3127
        %3207 = vmatprep.subr.mxu0 0.0
        %3208 = vmatpush2.xpose.msra.mxu0 %v3126
        %3209 = vmatprep.subr.mxu0 0.0
        %3210 = vmatpush2.xpose.msra.mxu0 %v3125
        %3211 = vmatprep.subr.mxu0 0.0
        %3212 = vmatpush2.xpose.msra.mxu0 %v3124
        %3213 = vmatprep.subr.mxu0 0.0
        %3214 = vmatpush2.xpose.msra.mxu0 %v3123
        %3215 = vmatprep.subr.mxu0 0.0
        %3216 = vmatpush2.xpose.msra.mxu0 %v3122
        %3217 = vmatprep.subr.mxu0 0.0
        %3218 = vmatpush2.xpose.msra.mxu0 %v3121
        %3219 = vmatprep.subr.mxu0 0.0
        %3220 = vmatpush2.xpose.msra.mxu0 %v3120
        %3221 = vmatprep.subr.mxu0 0.0
        %3222 = vmatpush2.xpose.msra.mxu0 %v3119
        %3223 = vmatprep.subr.mxu0 0.0
        %3224 = vmatpush2.xpose.msra.mxu0 %v3118
        %3225 = vmatprep.subr.mxu0 0.0
        %3226 = vmatpush2.xpose.msra.mxu0 %v3117
        %3227 = vmatprep.subr.mxu0 0.0
        %3228 = vmatpush2.xpose.msra.mxu0 %v3116
        %3229 = vmatprep.subr.mxu0 0.0
        %3230 = vmatpush2.xpose.msra.mxu0 %v3115
        %3231 = vmatprep.subr.mxu0 0.0
        %3232 = vmatpush2.xpose.msra.mxu0 %v3114
        %3233 = vmatprep.mubr.f32.mxu0 0.0
        %3234 = vmatmul.mubr.f32.gmra.mxu0 %v3162
        %v3235 = vpop.f32.mrf.mxu0
        %v3236 = vadd.f32 %v3167, %v3235
        %v3237 = vpop.f32.mrf.mxu0
        %v3238 = vadd.f32 %v3167, %v3237
        %3239 = vdwg.mxu0
        %3240 = vmatprep.subr.mxu0 0.0
        %3241 = vmatpush1.xpose.msra.mxu0 %v3145
        %3242 = vmatprep.subr.mxu0 0.0
        %3243 = vmatpush1.xpose.msra.mxu0 %v3144
        %3244 = vmatprep.subr.mxu0 0.0
        %3245 = vmatpush1.xpose.msra.mxu0 %v3143
        %3246 = vmatprep.subr.mxu0 0.0
        %3247 = vmatpush1.xpose.msra.mxu0 %v3142
        %3248 = vmatprep.subr.mxu0 0.0
        %3249 = vmatpush1.xpose.msra.mxu0 %v3141
        %3250 = vmatprep.subr.mxu0 0.0
        %3251 = vmatpush1.xpose.msra.mxu0 %v3140
        %3252 = vmatprep.subr.mxu0 0.0
        %3253 = vmatpush1.xpose.msra.mxu0 %v3139
        %3254 = vmatprep.subr.mxu0 0.0
        %3255 = vmatpush1.xpose.msra.mxu0 %v3138
        %3256 = vmatprep.subr.mxu0 0.0
        %3257 = vmatpush1.xpose.msra.mxu0 %v3137
        %3258 = vmatprep.subr.mxu0 0.0
        %3259 = vmatpush1.xpose.msra.mxu0 %v3136
        %3260 = vmatprep.subr.mxu0 0.0
        %3261 = vmatpush1.xpose.msra.mxu0 %v3135
        %3262 = vmatprep.subr.mxu0 0.0
        %3263 = vmatpush1.xpose.msra.mxu0 %v3134
        %3264 = vmatprep.subr.mxu0 0.0
        %3265 = vmatpush1.xpose.msra.mxu0 %v3133
        %3266 = vmatprep.subr.mxu0 0.0
        %3267 = vmatpush1.xpose.msra.mxu0 %v3132
        %3268 = vmatprep.subr.mxu0 0.0
        %3269 = vmatpush1.xpose.msra.mxu0 %v3131
        %3270 = vmatprep.subr.mxu0 0.0
        %3271 = vmatpush1.xpose.msra.mxu0 %v3130
        %3272 = vmatprep.subr.mxu0 0.0
        %3273 = vmatpush2.xpose.msra.mxu0 %v3161
        %3274 = vmatprep.subr.mxu0 0.0
        %3275 = vmatpush2.xpose.msra.mxu0 %v3160
        %3276 = vmatprep.subr.mxu0 0.0
        %3277 = vmatpush2.xpose.msra.mxu0 %v3159
        %3278 = vmatprep.subr.mxu0 0.0
        %3279 = vmatpush2.xpose.msra.mxu0 %v3158
        %3280 = vmatprep.subr.mxu0 0.0
        %3281 = vmatpush2.xpose.msra.mxu0 %v3157
        %3282 = vmatprep.subr.mxu0 0.0
        %3283 = vmatpush2.xpose.msra.mxu0 %v3156
        %3284 = vmatprep.subr.mxu0 0.0
        %3285 = vmatpush2.xpose.msra.mxu0 %v3155
        %3286 = vmatprep.subr.mxu0 0.0
        %3287 = vmatpush2.xpose.msra.mxu0 %v3154
        %3288 = vmatprep.subr.mxu0 0.0
        %3289 = vmatpush2.xpose.msra.mxu0 %v3153
        %3290 = vmatprep.subr.mxu0 0.0
        %3291 = vmatpush2.xpose.msra.mxu0 %v3152
        %3292 = vmatprep.subr.mxu0 0.0
        %3293 = vmatpush2.xpose.msra.mxu0 %v3151
        %3294 = vmatprep.subr.mxu0 0.0
        %3295 = vmatpush2.xpose.msra.mxu0 %v3150
        %3296 = vmatprep.subr.mxu0 0.0
        %3297 = vmatpush2.xpose.msra.mxu0 %v3149
        %3298 = vmatprep.subr.mxu0 0.0
        %3299 = vmatpush2.xpose.msra.mxu0 %v3148
        %3300 = vmatprep.subr.mxu0 0.0
        %3301 = vmatpush2.xpose.msra.mxu0 %v3147
        %3302 = vmatprep.subr.mxu0 0.0
        %3303 = vmatpush2.xpose.msra.mxu0 %v3146
        %3304 = vmatprep.mubr.f32.mxu0 0.0
        %3305 = vmatmul.mubr.f32.gmra.mxu0 %v3162
        %v3306 = vpop.f32.mrf.mxu0
        %v3307 = vadd.f32 %v3167, %v3306
        %v3308 = vpop.f32.mrf.mxu0
        %v3309 = vadd.f32 %v3167, %v3308
        %3310 = vdwg.mxu0
        %3311 = vst [vmem:[%s380] sm:$0xff] %v3236
        %3312 = vst [vmem:[%s380 + $0x8] sm:$0xff] %v3238
        %3313 = vst [vmem:[%s380 + $0x10] sm:$0xff] %v3307
        %3314 = vst [vmem:[%s380 + $0x18] sm:$0xff] %v3309
        %s3315 = sand.u32 %s269, 1
        %s3316 = scalar_lea.sflag [#allocation3], %s3315
        %s3317 = sand.u32 %s269, 1
        %s3318 = smul.addr %s3317, 32
        %s3319 = scalar_lea.vmem [#allocation2], %s3318
        // Predicated region
        $region65: #{tpu_custom_call.1} parent=63 // pred_check
          %p3320 = pneg %p279
        $region66: #{tpu_custom_call.1} parent=63 // pred_check_branch
          %3322 = sbr.rel (%p3320) target = $region68
        $region67: #{tpu_custom_call.1} parent=63 // pred_region
          %s3323 = smul.u32 4, %s25
          %s3325 = ssub.s32 512, 512
          %3326 = vsyncadd %s3316, %s3325
          %s3327 = smul.addr %s3323, 128
          %s3328 = scalar_lea.hbm %s11, %s3327
          %s3330 = sshll.u32 %s3319, 4
          %s3331 = int_to_ptr.vmem [resolvable:$true] %s3330
          %3333 = dma.vmem_to_hbm [thread:$0]  %s3331, 512, %s3328, %s3316
        $region68: #{tpu_custom_call.1} parent=63 // pred_fallthru
          _
      $region64: #{tpu_custom_call.1} parent=5 // pred_fallthru
        _
      %p3334 = scmp.le.s32.totalorder 2, %s20
      // Predicated region
      $region69: #{tpu_custom_call.1} parent=5 // pred_check
        %p3335 = pneg %p3334
      $region70: #{tpu_custom_call.1} parent=5 // pred_check_branch
        %3337 = sbr.rel (%p3335) target = $region72
      $region71: #{tpu_custom_call.1} parent=5 // pred_region
        %s3338 = ssub.s32 %s20, 2
        // Predicated region
        $region73: #{tpu_custom_call.1} parent=71 // pred_check
          %p3339 = pneg %p285
        $region74: #{tpu_custom_call.1} parent=71 // pred_check_branch
          %3341 = sbr.rel (%p3339) target = $region76
        $region75: #{tpu_custom_call.1} parent=71 // pred_region
          %s3342 = sand.u32 %s270, 1
          %s3343 = scalar_lea.sflag [#allocation3], %s3342
          %s3344 = sand.u32 %s270, 1
          %s3345 = smul.addr %s3344, 32
          %s3346 = scalar_lea.vmem [#allocation2], %s3345
          %3347 = dma.done %s3343, 512
        $region76: #{tpu_custom_call.1} parent=71 // pred_fallthru
          _
      $region72: #{tpu_custom_call.1} parent=5 // pred_fallthru
        _
    $region6: #{tpu_custom_call.1} parent=1 // loop_footer
      %s24 = sadd.s32 1, %s20
    $region7: #{tpu_custom_call.1} parent=1 // loop_footer_branch
      %19 = sbr.rel target = $region3
    $region8: #{tpu_custom_call.1} parent=1 // loop_exit
      _
    %3348 = vsyncpa [#allocation3], 1
    %s3349 = scalar_lea.sflag [#allocation3], 1
    %3350 = vsyncpa %s3349, 1

</llo_original>
